<compile_context>
chip_gen: v7x
topology: tpu7x:2x2x1
jax: 0.10.0
libtpu: 0.0.40
codegen_flags: <defaults>
</compile_context>

<pallas_src>
import functools

import jax
import jax.numpy as jnp
import numpy as np
from jax.experimental import pallas as pl
from jax.experimental.pallas import tpu as pltpu


# ----------------------------- Pallas kernel --------------------------------
def _conv_bn_silu_kernel(x_ref, w_ref, b_ref, o_ref, *,
                         k, s, tile_h, wo, c1, fuse_taps, act):
    """One (batch, row-tile) step of SiLU(BN(conv(x))) with BN folded into w / b.

    x_ref: (1, HP, WP, C1)       zero-padded NHWC image of this batch (bf16)
    w_ref: (k*k*C1, C2P)         if fuse_taps else (k*k, C1, C2P)  (bf16, BN scale folded)
    b_ref: (1, C2P)              folded BN bias (f32)
    o_ref: (1, tile_h*wo, C2P)   output tile (bf16)
    """
    i = pl.program_id(1)
    row0 = i * (tile_h * s)
    m = tile_h * wo

    def ds(start, size):
        return pl.ds(start, size) if s == 1 else pl.ds(start, size, stride=s)

    def tap(di, dj):
        # (tile_h, wo, C1) window for tap (di, dj), sliced straight off the Ref,
        # then a leading-dim merge to (m, C1) for the MXU.
        sl = x_ref[0, ds(row0 + di, tile_h), ds(dj, wo), :]
        return sl.reshape(m, c1)

    if fuse_taps:
        # Fused im2col: one matmul with K = k*k*C1 instead of k*k matmuls with K = C1.
        parts = [tap(di, dj) for di in range(k) for dj in range(k)]
        patch = parts[0] if len(parts) == 1 else jnp.concatenate(parts, axis=-1)
        acc = jnp.dot(patch, w_ref[...], preferred_element_type=jnp.float32)
    else:
        # Large-C1 path: per-tap matmuls, accumulated in a value (vregs / MRB).
        acc = None
        for di in range(k):
            for dj in range(k):
                part = jnp.dot(tap(di, dj), w_ref[di * k + dj],
                               preferred_element_type=jnp.float32)
                acc = part if acc is None else acc + part

    y = acc + b_ref[...]                       # folded BN bias (f32)
    if act:
        y = y * jax.nn.sigmoid(y)              # SiLU, f32 (EUP sigmoid)
    o_ref[0] = y.astype(o_ref.dtype)           # single lane-dense bf16 store


# ------------------------------- helpers --------------------------------------
def autopad(k, p=None, d=1):
    if d > 1:
        k = d * (k - 1) + 1
    if p is None:
        p = k // 2
    return p


def _ceil_to(x, m):
    return ((x + m - 1) // m) * m


def _vmem_block_bytes(block_shape, dtype):
    """Approximate VMEM footprint of one buffer of a block (lane/sublane padding)."""
    itemsize = jnp.dtype(dtype).itemsize
    dims = list(block_shape)
    if dims:
        dims[-1] = _ceil_to(dims[-1], 128)
    if len(dims) >= 2:
        dims[-2] = _ceil_to(dims[-2], 32 // itemsize)
    n = itemsize
    for d in dims:
        n *= d
    return n


# ------------------------------- wrapper -------------------------------------
@functools.partial(jax.jit,
                   static_argnames=("k", "s", "p", "tile_h", "fuse_taps", "act"))
def _conv_forward_impl(x_nchw, conv_w, bn_gamma, bn_beta, bn_mean, bn_var,
                       *, k, s, p, tile_h, fuse_taps, act, eps=1e-5):
    B, C1, H, W = x_nchw.shape
    C2 = conv_w.shape[0]
    Ho = (H + 2 * p - k) // s + 1
    Wo = (W + 2 * p - k) // s + 1

    # Row-tile selection: ~512 output rows per grid step, m = tile_h*Wo multiple of 8.
    if tile_h is None:
        tile_h = max(1, min(Ho, 512 // max(Wo, 1)))
    if (tile_h * Wo) % 8 != 0:
        tile_h = _ceil_to(tile_h, 8)
    n_row_tiles = pl.cdiv(Ho, tile_h)
    Ho_pad = n_row_tiles * tile_h
    m = tile_h * Wo

    C2P = _ceil_to(C2, 128)                      # lane-dense output channels
    # TODO(synk): on v6e/v7x (256-wide MXU) pad C2P/m to 256 when C2 >= 256.
    WP = W + 2 * p
    HP = max(H + 2 * p, (Ho_pad - 1) * s + k)    # rows needed by padded row tiles

    # NCHW -> NHWC, spatial zero-pad, bf16 (MXU-native).
    # TODO(synk): in a full network keep activations NHWC bf16 between layers and drop
    # these transposes / re-pads (2 extra HBM passes per layer for mem-bound convs).
    x_nhwc = jnp.transpose(x_nchw, (0, 2, 3, 1))
    x_pad = jnp.pad(
        x_nhwc, ((0, 0), (p, HP - H - p), (p, p), (0, 0))).astype(jnp.bfloat16)

    # Fold eval-mode BatchNorm into the conv weight (scale) and a bias vector.
    inv_std = bn_gamma / jnp.sqrt(bn_var + eps)                   # (C2,)
    w_kkcc = jnp.transpose(conv_w, (2, 3, 1, 0))                  # (k, k, C1, C2)
    w_folded = w_kkcc * inv_std                                   # broadcast over C2
    bias = (bn_beta - bn_mean * inv_std).astype(jnp.float32)
    b_pad = jnp.pad(bias, (0, C2P - C2)).reshape(1, C2P)

    if fuse_taps:
        w_in = jnp.pad(w_folded.reshape(k * k * C1, C2),
                       ((0, 0), (0, C2P - C2))).astype(jnp.bfloat16)
        w_spec = pl.BlockSpec((k * k * C1, C2P), lambda b, i: (0, 0))
    else:
        w_in = jnp.pad(w_folded.reshape(k * k, C1, C2),
                       ((0, 0), (0, 0), (0, C2P - C2))).astype(jnp.bfloat16)
        w_spec = pl.BlockSpec((k * k, C1, C2P), lambda b, i: (0, 0, 0))

    kernel = functools.partial(
        _conv_bn_silu_kernel, k=k, s=s, tile_h=tile_h, wo=Wo, c1=C1,
        fuse_taps=fuse_taps, act=act)

    # VMEM budget derived from the actual (padded) block footprints, double-buffered,
    # plus headroom; capped below the smallest physical VMEM (v7x: 64 MiB).
    need = 2 * (_vmem_block_bytes((1, HP, WP, C1), jnp.bfloat16)
                + _vmem_block_bytes(w_in.shape, jnp.bfloat16)
                + _vmem_block_bytes((1, C2P), jnp.float32)
                + _vmem_block_bytes((1, m, C2P), jnp.bfloat16))
    vmem_limit = int(min(max(need + (8 << 20), 32 << 20), 48 << 20))

    out = pl.pallas_call(
        kernel,
        out_shape=jax.ShapeDtypeStruct((B, Ho_pad * Wo, C2P), jnp.bfloat16),
        grid_spec=pltpu.PrefetchScalarGridSpec(
            num_scalar_prefetch=0,
            grid=(B, n_row_tiles),
            in_specs=[
                # Whole padded image of batch b: DMA'd once per batch, reused by all
                # row tiles (index map ignores i).
                pl.BlockSpec((1, HP, WP, C1), lambda b, i: (b, 0, 0, 0)),
                w_spec,
                pl.BlockSpec((1, C2P), lambda b, i: (0, 0)),
            ],
            out_specs=pl.BlockSpec((1, m, C2P), lambda b, i: (b, i, 0)),
        ),
        compiler_params=pltpu.CompilerParams(
            dimension_semantics=("parallel", "parallel"),
            vmem_limit_bytes=vmem_limit,
        ),
    )(x_pad, w_in, b_pad)

    # Drop row / channel padding, back to NCHW (bf16).
    out = out[:, :Ho * Wo, :C2].reshape(B, Ho, Wo, C2)
    return jnp.transpose(out, (0, 3, 1, 2))


def conv_forward(x_nchw, conv_w, bn_gamma, bn_beta, bn_mean, bn_var,
                 *, k, s, p, tile_h=None, act=True, eps=1e-5):
    """Equivalent of Conv.forward: SiLU(BN(Conv2d(x, bias=False))), BN in eval mode."""
    C1 = x_nchw.shape[1]
    prefer_fused = k * k * C1 <= 256     # merge taps into one matmul for small C1
    if prefer_fused:
        try:
            return _conv_forward_impl(x_nchw, conv_w, bn_gamma, bn_beta, bn_mean,
                                      bn_var, k=k, s=s, p=p, tile_h=tile_h,
                                      fuse_taps=True, act=act, eps=eps)
        except Exception:
            # Robustness guard: if the fused-patch path fails to lower on this
            # backend, fall back to per-tap MXU accumulation (same numerics).
            pass
    return _conv_forward_impl(x_nchw, conv_w, bn_gamma, bn_beta, bn_mean, bn_var,
                              k=k, s=s, p=p, tile_h=tile_h,
                              fuse_taps=False, act=act, eps=eps)


# ------------------------------- reference -----------------------------------
def conv_forward_ref(x_nchw, conv_w, bn_gamma, bn_beta, bn_mean, bn_var,
                     *, k, s, p, eps=1e-5):
    out = jax.lax.conv_general_dilated(
        x_nchw, conv_w,
        window_strides=(s, s),
        padding=((p, p), (p, p)),
        dimension_numbers=("NCHW", "OIHW", "NCHW"),
    )
    scale = (bn_gamma / jnp.sqrt(bn_var + eps)).reshape(1, -1, 1, 1)
    bias = (bn_beta - bn_mean * bn_gamma / jnp.sqrt(bn_var + eps)).reshape(1, -1, 1, 1)
    y = out * scale + bias
    return y * jax.nn.sigmoid(y)


# --------------------------------- main ---------------------------------------
if __name__ == "__main__":
    B, C1, H, W = 2, 4, 16, 16
    C2 = 8

    key = jax.random.PRNGKey(0)
    kx, kw3, kw1 = jax.random.split(key, 3)

    x = jax.random.normal(kx, (B, C1, H, W), dtype=jnp.float32)

    # Deterministic synthetic BN parameters (eval mode).
    bn_gamma = jnp.linspace(0.5, 1.5, C2, dtype=jnp.float32)
    bn_beta = jnp.linspace(-0.2, 0.2, C2, dtype=jnp.float32)
    bn_mean = jnp.linspace(-0.1, 0.1, C2, dtype=jnp.float32)
    bn_var = jnp.linspace(0.8, 1.2, C2, dtype=jnp.float32)

    # Conv(c1=4, c2=8, k=3, s=1) -> "same" padding; tile_h=8 -> 2 row tiles per image.
    K3, S3 = 3, 1
    P3 = autopad(K3)
    w3 = jax.random.normal(kw3, (C2, C1, K3, K3), dtype=jnp.float32) * 0.1
    out3 = jax.block_until_ready(
        conv_forward(x, w3, bn_gamma, bn_beta, bn_mean, bn_var,
                     k=K3, s=S3, p=P3, tile_h=8))
    ref3 = conv_forward_ref(x, w3, bn_gamma, bn_beta, bn_mean, bn_var,
                            k=K3, s=S3, p=P3)
    np.testing.assert_allclose(np.asarray(out3.astype(jnp.float32)),
                               np.asarray(ref3), rtol=2e-2, atol=2e-2)

    # Conv(c1=4, c2=8, k=1, s=1) -> pointwise conv path (auto tile_h, single row tile).
    K1, S1 = 1, 1
    P1 = autopad(K1)
    w1 = jax.random.normal(kw1, (C2, C1, K1, K1), dtype=jnp.float32) * 0.1
    out1 = jax.block_until_ready(
        conv_forward(x, w1, bn_gamma, bn_beta, bn_mean, bn_var,
                     k=K1, s=S1, p=P1))
    ref1 = conv_forward_ref(x, w1, bn_gamma, bn_beta, bn_mean, bn_var,
                            k=K1, s=S1, p=P1)
    np.testing.assert_allclose(np.asarray(out1.astype(jnp.float32)),
                               np.asarray(ref1), rtol=2e-2, atol=2e-2)

    print("KERNEL_OK")
</pallas_src>

<mosaic_0001>
module attributes {stable_mosaic.version = 11 : i64} {
  func.func @_conv_bn_silu_kernel(%arg0: i32, %arg1: i32, %arg2: memref<1x18x18x4xbf16, #tpu.memory_space<vmem>>, %arg3: memref<36x128xbf16, #tpu.memory_space<vmem>>, %arg4: memref<1x128xf32, #tpu.memory_space<vmem>>, %arg5: memref<1x128x128xbf16, #tpu.memory_space<vmem>>) attributes {dimension_semantics = [#tpu.dimension_semantics<parallel>, #tpu.dimension_semantics<parallel>], iteration_bounds = array<i64: 2, 2>, scalar_prefetch = 0 : i64, scratch_operands = 0 : i64, tpu.core_type = #tpu.core_type<tc>, window_params = [{transform_indices = @transform_0, window_bounds = array<i64: 1, 18, 18, 4>}, {pipeline_mode = #tpu.pipeline_mode<synchronous>, transform_indices = @transform_1, window_bounds = array<i64: 36, 128>}, {pipeline_mode = #tpu.pipeline_mode<synchronous>, transform_indices = @transform_2, window_bounds = array<i64: 1, 128>}, {transform_indices = @transform_3, window_bounds = array<i64: 1, 128, 128>}]} {
    %c8_i32 = arith.constant 8 : i32
    %0 = arith.muli %arg1, %c8_i32 : i32
    %c0_i32 = arith.constant 0 : i32
    %1 = arith.addi %0, %c0_i32 : i32
    %c0 = arith.constant 0 : index
    %2 = arith.index_cast %1 : i32 to index
    %c0_0 = arith.constant 0 : index
    %c0_1 = arith.constant 0 : index
    %3 = vector.load %arg2[%c0, %2, %c0_0, %c0_1] : memref<1x18x18x4xbf16, #tpu.memory_space<vmem>>, vector<1x8x16x4xbf16>
    %4 = vector.shape_cast %3 : vector<1x8x16x4xbf16> to vector<8x16x4xbf16>
    %5 = vector.shape_cast %4 : vector<8x16x4xbf16> to vector<128x4xbf16>
    %c0_i32_2 = arith.constant 0 : i32
    %6 = arith.addi %0, %c0_i32_2 : i32
    %c0_3 = arith.constant 0 : index
    %7 = arith.index_cast %6 : i32 to index
    %c1 = arith.constant 1 : index
    %c0_4 = arith.constant 0 : index
    %8 = vector.load %arg2[%c0_3, %7, %c1, %c0_4] : memref<1x18x18x4xbf16, #tpu.memory_space<vmem>>, vector<1x8x16x4xbf16>
    %9 = vector.shape_cast %8 : vector<1x8x16x4xbf16> to vector<8x16x4xbf16>
    %10 = vector.shape_cast %9 : vector<8x16x4xbf16> to vector<128x4xbf16>
    %c0_i32_5 = arith.constant 0 : i32
    %11 = arith.addi %0, %c0_i32_5 : i32
    %c0_6 = arith.constant 0 : index
    %12 = arith.index_cast %11 : i32 to index
    %c2 = arith.constant 2 : index
    %c0_7 = arith.constant 0 : index
    %13 = vector.load %arg2[%c0_6, %12, %c2, %c0_7] : memref<1x18x18x4xbf16, #tpu.memory_space<vmem>>, vector<1x8x16x4xbf16>
    %14 = vector.shape_cast %13 : vector<1x8x16x4xbf16> to vector<8x16x4xbf16>
    %15 = vector.shape_cast %14 : vector<8x16x4xbf16> to vector<128x4xbf16>
    %c1_i32 = arith.constant 1 : i32
    %16 = arith.addi %0, %c1_i32 : i32
    %c0_8 = arith.constant 0 : index
    %17 = arith.index_cast %16 : i32 to index
    %c0_9 = arith.constant 0 : index
    %c0_10 = arith.constant 0 : index
    %18 = vector.load %arg2[%c0_8, %17, %c0_9, %c0_10] : memref<1x18x18x4xbf16, #tpu.memory_space<vmem>>, vector<1x8x16x4xbf16>
    %19 = vector.shape_cast %18 : vector<1x8x16x4xbf16> to vector<8x16x4xbf16>
    %20 = vector.shape_cast %19 : vector<8x16x4xbf16> to vector<128x4xbf16>
    %c1_i32_11 = arith.constant 1 : i32
    %21 = arith.addi %0, %c1_i32_11 : i32
    %c0_12 = arith.constant 0 : index
    %22 = arith.index_cast %21 : i32 to index
    %c1_13 = arith.constant 1 : index
    %c0_14 = arith.constant 0 : index
    %23 = vector.load %arg2[%c0_12, %22, %c1_13, %c0_14] : memref<1x18x18x4xbf16, #tpu.memory_space<vmem>>, vector<1x8x16x4xbf16>
    %24 = vector.shape_cast %23 : vector<1x8x16x4xbf16> to vector<8x16x4xbf16>
    %25 = vector.shape_cast %24 : vector<8x16x4xbf16> to vector<128x4xbf16>
    %c1_i32_15 = arith.constant 1 : i32
    %26 = arith.addi %0, %c1_i32_15 : i32
    %c0_16 = arith.constant 0 : index
    %27 = arith.index_cast %26 : i32 to index
    %c2_17 = arith.constant 2 : index
    %c0_18 = arith.constant 0 : index
    %28 = vector.load %arg2[%c0_16, %27, %c2_17, %c0_18] : memref<1x18x18x4xbf16, #tpu.memory_space<vmem>>, vector<1x8x16x4xbf16>
    %29 = vector.shape_cast %28 : vector<1x8x16x4xbf16> to vector<8x16x4xbf16>
    %30 = vector.shape_cast %29 : vector<8x16x4xbf16> to vector<128x4xbf16>
    %c2_i32 = arith.constant 2 : i32
    %31 = arith.addi %0, %c2_i32 : i32
    %c0_19 = arith.constant 0 : index
    %32 = arith.index_cast %31 : i32 to index
    %c0_20 = arith.constant 0 : index
    %c0_21 = arith.constant 0 : index
    %33 = vector.load %arg2[%c0_19, %32, %c0_20, %c0_21] : memref<1x18x18x4xbf16, #tpu.memory_space<vmem>>, vector<1x8x16x4xbf16>
    %34 = vector.shape_cast %33 : vector<1x8x16x4xbf16> to vector<8x16x4xbf16>
    %35 = vector.shape_cast %34 : vector<8x16x4xbf16> to vector<128x4xbf16>
    %c2_i32_22 = arith.constant 2 : i32
    %36 = arith.addi %0, %c2_i32_22 : i32
    %c0_23 = arith.constant 0 : index
    %37 = arith.index_cast %36 : i32 to index
    %c1_24 = arith.constant 1 : index
    %c0_25 = arith.constant 0 : index
    %38 = vector.load %arg2[%c0_23, %37, %c1_24, %c0_25] : memref<1x18x18x4xbf16, #tpu.memory_space<vmem>>, vector<1x8x16x4xbf16>
    %39 = vector.shape_cast %38 : vector<1x8x16x4xbf16> to vector<8x16x4xbf16>
    %40 = vector.shape_cast %39 : vector<8x16x4xbf16> to vector<128x4xbf16>
    %c2_i32_26 = arith.constant 2 : i32
    %41 = arith.addi %0, %c2_i32_26 : i32
    %c0_27 = arith.constant 0 : index
    %42 = arith.index_cast %41 : i32 to index
    %c2_28 = arith.constant 2 : index
    %c0_29 = arith.constant 0 : index
    %43 = vector.load %arg2[%c0_27, %42, %c2_28, %c0_29] : memref<1x18x18x4xbf16, #tpu.memory_space<vmem>>, vector<1x8x16x4xbf16>
    %44 = vector.shape_cast %43 : vector<1x8x16x4xbf16> to vector<8x16x4xbf16>
    %45 = vector.shape_cast %44 : vector<8x16x4xbf16> to vector<128x4xbf16>
    %46 = tpu.concatenate %5, %10, %15, %20, %25, %30, %35, %40, %45 in 1 : vector<128x4xbf16>, vector<128x4xbf16>, vector<128x4xbf16>, vector<128x4xbf16>, vector<128x4xbf16>, vector<128x4xbf16>, vector<128x4xbf16>, vector<128x4xbf16>, vector<128x4xbf16> -> vector<128x36xbf16>
    %c0_30 = arith.constant 0 : index
    %c0_31 = arith.constant 0 : index
    %47 = vector.load %arg3[%c0_30, %c0_31] : memref<36x128xbf16, #tpu.memory_space<vmem>>, vector<36x128xbf16>
    %cst = arith.constant dense<0.000000e+00> : vector<128x128xf32>
    %48 = tpu.matmul %46, %47, %cst {dimension_numbers = #tpu.dot_dimension_numbers<[1], [0], [0], [1], [0, 0, 1, 1], [], []>} : vector<128x36xbf16>, vector<36x128xbf16>, vector<128x128xf32> -> vector<128x128xf32>
    %c0_32 = arith.constant 0 : index
    %c0_33 = arith.constant 0 : index
    %49 = vector.load %arg4[%c0_32, %c0_33] : memref<1x128xf32, #tpu.memory_space<vmem>>, vector<1x128xf32>
    %50 = vector.broadcast %49 : vector<1x128xf32> to vector<128x128xf32>
    %51 = arith.addf %48, %50 : vector<128x128xf32>
    %52 = arith.negf %51 : vector<128x128xf32>
    %53 = math.exp %52 : vector<128x128xf32>
    %cst_34 = arith.constant 1.000000e+00 : f32
    %54 = vector.broadcast %cst_34 : f32 to vector<128x128xf32>
    %55 = arith.addf %54, %53 : vector<128x128xf32>
    %56 = arith.divf %54, %55 : vector<128x128xf32>
    %57 = arith.mulf %51, %56 : vector<128x128xf32>
    %58 = arith.truncf %57 : vector<128x128xf32> to vector<128x128xbf16>
    %c0_35 = arith.constant 0 : index
    %c0_36 = arith.constant 0 : index
    %c0_37 = arith.constant 0 : index
    %59 = vector.load %arg5[%c0_35, %c0_36, %c0_37] : memref<1x128x128xbf16, #tpu.memory_space<vmem>>, vector<1x128x128xbf16>
    %60 = vector.shape_cast %59 : vector<1x128x128xbf16> to vector<128x128xbf16>
    %61 = vector.shape_cast %58 : vector<128x128xbf16> to vector<1x128x128xbf16>
    tpu.vector_store %arg5[%c0_35, %c0_36, %c0_37], %61 {strides = array<i32>} : memref<1x128x128xbf16, #tpu.memory_space<vmem>>, vector<1x128x128xbf16>,
    return
  }
  func.func @transform_0(%arg0: i32, %arg1: i32) -> (i32, i32, i32, i32) {
    %c0_i32 = arith.constant 0 : i32
    %c0_i32_0 = arith.constant 0 : i32
    %c0_i32_1 = arith.constant 0 : i32
    %c0_i32_2 = arith.constant 0 : i32
    return %arg0, %c0_i32, %c0_i32_0, %c0_i32_1 : i32, i32, i32, i32
  }
  func.func @transform_1(%arg0: i32, %arg1: i32) -> (i32, i32) {
    %c0_i32 = arith.constant 0 : i32
    %c0_i32_0 = arith.constant 0 : i32
    %c0_i32_1 = arith.constant 0 : i32
    return %c0_i32, %c0_i32_0 : i32, i32
  }
  func.func @transform_2(%arg0: i32, %arg1: i32) -> (i32, i32) {
    %c0_i32 = arith.constant 0 : i32
    %c0_i32_0 = arith.constant 0 : i32
    %c0_i32_1 = arith.constant 0 : i32
    return %c0_i32, %c0_i32_0 : i32, i32
  }
  func.func @transform_3(%arg0: i32, %arg1: i32) -> (i32, i32, i32) {
    %c0_i32 = arith.constant 0 : i32
    %c0_i32_0 = arith.constant 0 : i32
    return %arg0, %arg1, %c0_i32 : i32, i32, i32
  }
}

module attributes {stable_mosaic.version = 11 : i64} {
  func.func @_conv_bn_silu_kernel(%arg0: i32, %arg1: i32, %arg2: memref<1x18x18x4xbf16, #tpu.memory_space<vmem>>, %arg3: memref<9x4x128xbf16, #tpu.memory_space<vmem>>, %arg4: memref<1x128xf32, #tpu.memory_space<vmem>>, %arg5: memref<1x128x128xbf16, #tpu.memory_space<vmem>>) attributes {dimension_semantics = [#tpu.dimension_semantics<parallel>, #tpu.dimension_semantics<parallel>], iteration_bounds = array<i64: 2, 2>, scalar_prefetch = 0 : i64, scratch_operands = 0 : i64, tpu.core_type = #tpu.core_type<tc>, window_params = [{transform_indices = @transform_0, window_bounds = array<i64: 1, 18, 18, 4>}, {pipeline_mode = #tpu.pipeline_mode<synchronous>, transform_indices = @transform_1, window_bounds = array<i64: 9, 4, 128>}, {pipeline_mode = #tpu.pipeline_mode<synchronous>, transform_indices = @transform_2, window_bounds = array<i64: 1, 128>}, {transform_indices = @transform_3, window_bounds = array<i64: 1, 128, 128>}]} {
    %c8_i32 = arith.constant 8 : i32
    %0 = arith.muli %arg1, %c8_i32 : i32
    %c0_i32 = arith.constant 0 : i32
    %1 = arith.addi %0, %c0_i32 : i32
    %c0 = arith.constant 0 : index
    %2 = arith.index_cast %1 : i32 to index
    %c0_0 = arith.constant 0 : index
    %c0_1 = arith.constant 0 : index
    %3 = vector.load %arg2[%c0, %2, %c0_0, %c0_1] : memref<1x18x18x4xbf16, #tpu.memory_space<vmem>>, vector<1x8x16x4xbf16>
    %4 = vector.shape_cast %3 : vector<1x8x16x4xbf16> to vector<8x16x4xbf16>
    %5 = vector.shape_cast %4 : vector<8x16x4xbf16> to vector<128x4xbf16>
    %c0_2 = arith.constant 0 : index
    %c0_3 = arith.constant 0 : index
    %c0_4 = arith.constant 0 : index
    %6 = vector.load %arg3[%c0_2, %c0_3, %c0_4] : memref<9x4x128xbf16, #tpu.memory_space<vmem>>, vector<1x4x128xbf16>
    %7 = vector.shape_cast %6 : vector<1x4x128xbf16> to vector<4x128xbf16>
    %cst = arith.constant dense<0.000000e+00> : vector<128x128xf32>
    %8 = tpu.matmul %5, %7, %cst {dimension_numbers = #tpu.dot_dimension_numbers<[1], [0], [0], [1], [0, 0, 1, 1], [], []>} : vector<128x4xbf16>, vector<4x128xbf16>, vector<128x128xf32> -> vector<128x128xf32>
    %c0_i32_5 = arith.constant 0 : i32
    %9 = arith.addi %0, %c0_i32_5 : i32
    %c0_6 = arith.constant 0 : index
    %10 = arith.index_cast %9 : i32 to index
    %c1 = arith.constant 1 : index
    %c0_7 = arith.constant 0 : index
    %11 = vector.load %arg2[%c0_6, %10, %c1, %c0_7] : memref<1x18x18x4xbf16, #tpu.memory_space<vmem>>, vector<1x8x16x4xbf16>
    %12 = vector.shape_cast %11 : vector<1x8x16x4xbf16> to vector<8x16x4xbf16>
    %13 = vector.shape_cast %12 : vector<8x16x4xbf16> to vector<128x4xbf16>
    %c1_8 = arith.constant 1 : index
    %c0_9 = arith.constant 0 : index
    %c0_10 = arith.constant 0 : index
    %14 = vector.load %arg3[%c1_8, %c0_9, %c0_10] : memref<9x4x128xbf16, #tpu.memory_space<vmem>>, vector<1x4x128xbf16>
    %15 = vector.shape_cast %14 : vector<1x4x128xbf16> to vector<4x128xbf16>
    %cst_11 = arith.constant dense<0.000000e+00> : vector<128x128xf32>
    %16 = tpu.matmul %13, %15, %cst_11 {dimension_numbers = #tpu.dot_dimension_numbers<[1], [0], [0], [1], [0, 0, 1, 1], [], []>} : vector<128x4xbf16>, vector<4x128xbf16>, vector<128x128xf32> -> vector<128x128xf32>
    %17 = arith.addf %8, %16 : vector<128x128xf32>
    %c0_i32_12 = arith.constant 0 : i32
    %18 = arith.addi %0, %c0_i32_12 : i32
    %c0_13 = arith.constant 0 : index
    %19 = arith.index_cast %18 : i32 to index
    %c2 = arith.constant 2 : index
    %c0_14 = arith.constant 0 : index
    %20 = vector.load %arg2[%c0_13, %19, %c2, %c0_14] : memref<1x18x18x4xbf16, #tpu.memory_space<vmem>>, vector<1x8x16x4xbf16>
    %21 = vector.shape_cast %20 : vector<1x8x16x4xbf16> to vector<8x16x4xbf16>
    %22 = vector.shape_cast %21 : vector<8x16x4xbf16> to vector<128x4xbf16>
    %c2_15 = arith.constant 2 : index
    %c0_16 = arith.constant 0 : index
    %c0_17 = arith.constant 0 : index
    %23 = vector.load %arg3[%c2_15, %c0_16, %c0_17] : memref<9x4x128xbf16, #tpu.memory_space<vmem>>, vector<1x4x128xbf16>
    %24 = vector.shape_cast %23 : vector<1x4x128xbf16> to vector<4x128xbf16>
    %cst_18 = arith.constant dense<0.000000e+00> : vector<128x128xf32>
    %25 = tpu.matmul %22, %24, %cst_18 {dimension_numbers = #tpu.dot_dimension_numbers<[1], [0], [0], [1], [0, 0, 1, 1], [], []>} : vector<128x4xbf16>, vector<4x128xbf16>, vector<128x128xf32> -> vector<128x128xf32>
    %26 = arith.addf %17, %25 : vector<128x128xf32>
    %c1_i32 = arith.constant 1 : i32
    %27 = arith.addi %0, %c1_i32 : i32
    %c0_19 = arith.constant 0 : index
    %28 = arith.index_cast %27 : i32 to index
    %c0_20 = arith.constant 0 : index
    %c0_21 = arith.constant 0 : index
    %29 = vector.load %arg2[%c0_19, %28, %c0_20, %c0_21] : memref<1x18x18x4xbf16, #tpu.memory_space<vmem>>, vector<1x8x16x4xbf16>
    %30 = vector.shape_cast %29 : vector<1x8x16x4xbf16> to vector<8x16x4xbf16>
    %31 = vector.shape_cast %30 : vector<8x16x4xbf16> to vector<128x4xbf16>
    %c3 = arith.constant 3 : index
    %c0_22 = arith.constant 0 : index
    %c0_23 = arith.constant 0 : index
    %32 = vector.load %arg3[%c3, %c0_22, %c0_23] : memref<9x4x128xbf16, #tpu.memory_space<vmem>>, vector<1x4x128xbf16>
    %33 = vector.shape_cast %32 : vector<1x4x128xbf16> to vector<4x128xbf16>
    %cst_24 = arith.constant dense<0.000000e+00> : vector<128x128xf32>
    %34 = tpu.matmul %31, %33, %cst_24 {dimension_numbers = #tpu.dot_dimension_numbers<[1], [0], [0], [1], [0, 0, 1, 1], [], []>} : vector<128x4xbf16>, vector<4x128xbf16>, vector<128x128xf32> -> vector<128x128xf32>
    %35 = arith.addf %26, %34 : vector<128x128xf32>
    %c1_i32_25 = arith.constant 1 : i32
    %36 = arith.addi %0, %c1_i32_25 : i32
    %c0_26 = arith.constant 0 : index
    %37 = arith.index_cast %36 : i32 to index
    %c1_27 = arith.constant 1 : index
    %c0_28 = arith.constant 0 : index
    %38 = vector.load %arg2[%c0_26, %37, %c1_27, %c0_28] : memref<1x18x18x4xbf16, #tpu.memory_space<vmem>>, vector<1x8x16x4xbf16>
    %39 = vector.shape_cast %38 : vector<1x8x16x4xbf16> to vector<8x16x4xbf16>
    %40 = vector.shape_cast %39 : vector<8x16x4xbf16> to vector<128x4xbf16>
    %c4 = arith.constant 4 : index
    %c0_29 = arith.constant 0 : index
    %c0_30 = arith.constant 0 : index
    %41 = vector.load %arg3[%c4, %c0_29, %c0_30] : memref<9x4x128xbf16, #tpu.memory_space<vmem>>, vector<1x4x128xbf16>
    %42 = vector.shape_cast %41 : vector<1x4x128xbf16> to vector<4x128xbf16>
    %cst_31 = arith.constant dense<0.000000e+00> : vector<128x128xf32>
    %43 = tpu.matmul %40, %42, %cst_31 {dimension_numbers = #tpu.dot_dimension_numbers<[1], [0], [0], [1], [0, 0, 1, 1], [], []>} : vector<128x4xbf16>, vector<4x128xbf16>, vector<128x128xf32> -> vector<128x128xf32>
    %44 = arith.addf %35, %43 : vector<128x128xf32>
    %c1_i32_32 = arith.constant 1 : i32
    %45 = arith.addi %0, %c1_i32_32 : i32
    %c0_33 = arith.constant 0 : index
    %46 = arith.index_cast %45 : i32 to index
    %c2_34 = arith.constant 2 : index
    %c0_35 = arith.constant 0 : index
    %47 = vector.load %arg2[%c0_33, %46, %c2_34, %c0_35] : memref<1x18x18x4xbf16, #tpu.memory_space<vmem>>, vector<1x8x16x4xbf16>
    %48 = vector.shape_cast %47 : vector<1x8x16x4xbf16> to vector<8x16x4xbf16>
    %49 = vector.shape_cast %48 : vector<8x16x4xbf16> to vector<128x4xbf16>
    %c5 = arith.constant 5 : index
    %c0_36 = arith.constant 0 : index
    %c0_37 = arith.constant 0 : index
    %50 = vector.load %arg3[%c5, %c0_36, %c0_37] : memref<9x4x128xbf16, #tpu.memory_space<vmem>>, vector<1x4x128xbf16>
    %51 = vector.shape_cast %50 : vector<1x4x128xbf16> to vector<4x128xbf16>
    %cst_38 = arith.constant dense<0.000000e+00> : vector<128x128xf32>
    %52 = tpu.matmul %49, %51, %cst_38 {dimension_numbers = #tpu.dot_dimension_numbers<[1], [0], [0], [1], [0, 0, 1, 1], [], []>} : vector<128x4xbf16>, vector<4x128xbf16>, vector<128x128xf32> -> vector<128x128xf32>
    %53 = arith.addf %44, %52 : vector<128x128xf32>
    %c2_i32 = arith.constant 2 : i32
    %54 = arith.addi %0, %c2_i32 : i32
    %c0_39 = arith.constant 0 : index
    %55 = arith.index_cast %54 : i32 to index
    %c0_40 = arith.constant 0 : index
    %c0_41 = arith.constant 0 : index
    %56 = vector.load %arg2[%c0_39, %55, %c0_40, %c0_41] : memref<1x18x18x4xbf16, #tpu.memory_space<vmem>>, vector<1x8x16x4xbf16>
    %57 = vector.shape_cast %56 : vector<1x8x16x4xbf16> to vector<8x16x4xbf16>
    %58 = vector.shape_cast %57 : vector<8x16x4xbf16> to vector<128x4xbf16>
    %c6 = arith.constant 6 : index
    %c0_42 = arith.constant 0 : index
    %c0_43 = arith.constant 0 : index
    %59 = vector.load %arg3[%c6, %c0_42, %c0_43] : memref<9x4x128xbf16, #tpu.memory_space<vmem>>, vector<1x4x128xbf16>
    %60 = vector.shape_cast %59 : vector<1x4x128xbf16> to vector<4x128xbf16>
    %cst_44 = arith.constant dense<0.000000e+00> : vector<128x128xf32>
    %61 = tpu.matmul %58, %60, %cst_44 {dimension_numbers = #tpu.dot_dimension_numbers<[1], [0], [0], [1], [0, 0, 1, 1], [], []>} : vector<128x4xbf16>, vector<4x128xbf16>, vector<128x128xf32> -> vector<128x128xf32>
    %62 = arith.addf %53, %61 : vector<128x128xf32>
    %c2_i32_45 = arith.constant 2 : i32
    %63 = arith.addi %0, %c2_i32_45 : i32
    %c0_46 = arith.constant 0 : index
    %64 = arith.index_cast %63 : i32 to index
    %c1_47 = arith.constant 1 : index
    %c0_48 = arith.constant 0 : index
    %65 = vector.load %arg2[%c0_46, %64, %c1_47, %c0_48] : memref<1x18x18x4xbf16, #tpu.memory_space<vmem>>, vector<1x8x16x4xbf16>
    %66 = vector.shape_cast %65 : vector<1x8x16x4xbf16> to vector<8x16x4xbf16>
    %67 = vector.shape_cast %66 : vector<8x16x4xbf16> to vector<128x4xbf16>
    %c7 = arith.constant 7 : index
    %c0_49 = arith.constant 0 : index
    %c0_50 = arith.constant 0 : index
    %68 = vector.load %arg3[%c7, %c0_49, %c0_50] : memref<9x4x128xbf16, #tpu.memory_space<vmem>>, vector<1x4x128xbf16>
    %69 = vector.shape_cast %68 : vector<1x4x128xbf16> to vector<4x128xbf16>
    %cst_51 = arith.constant dense<0.000000e+00> : vector<128x128xf32>
    %70 = tpu.matmul %67, %69, %cst_51 {dimension_numbers = #tpu.dot_dimension_numbers<[1], [0], [0], [1], [0, 0, 1, 1], [], []>} : vector<128x4xbf16>, vector<4x128xbf16>, vector<128x128xf32> -> vector<128x128xf32>
    %71 = arith.addf %62, %70 : vector<128x128xf32>
    %c2_i32_52 = arith.constant 2 : i32
    %72 = arith.addi %0, %c2_i32_52 : i32
    %c0_53 = arith.constant 0 : index
    %73 = arith.index_cast %72 : i32 to index
    %c2_54 = arith.constant 2 : index
    %c0_55 = arith.constant 0 : index
    %74 = vector.load %arg2[%c0_53, %73, %c2_54, %c0_55] : memref<1x18x18x4xbf16, #tpu.memory_space<vmem>>, vector<1x8x16x4xbf16>
    %75 = vector.shape_cast %74 : vector<1x8x16x4xbf16> to vector<8x16x4xbf16>
    %76 = vector.shape_cast %75 : vector<8x16x4xbf16> to vector<128x4xbf16>
    %c8 = arith.constant 8 : index
    %c0_56 = arith.constant 0 : index
    %c0_57 = arith.constant 0 : index
    %77 = vector.load %arg3[%c8, %c0_56, %c0_57] : memref<9x4x128xbf16, #tpu.memory_space<vmem>>, vector<1x4x128xbf16>
    %78 = vector.shape_cast %77 : vector<1x4x128xbf16> to vector<4x128xbf16>
    %cst_58 = arith.constant dense<0.000000e+00> : vector<128x128xf32>
    %79 = tpu.matmul %76, %78, %cst_58 {dimension_numbers = #tpu.dot_dimension_numbers<[1], [0], [0], [1], [0, 0, 1, 1], [], []>} : vector<128x4xbf16>, vector<4x128xbf16>, vector<128x128xf32> -> vector<128x128xf32>
    %80 = arith.addf %71, %79 : vector<128x128xf32>
    %c0_59 = arith.constant 0 : index
    %c0_60 = arith.constant 0 : index
    %81 = vector.load %arg4[%c0_59, %c0_60] : memref<1x128xf32, #tpu.memory_space<vmem>>, vector<1x128xf32>
    %82 = vector.broadcast %81 : vector<1x128xf32> to vector<128x128xf32>
    %83 = arith.addf %80, %82 : vector<128x128xf32>
    %84 = arith.negf %83 : vector<128x128xf32>
    %85 = math.exp %84 : vector<128x128xf32>
    %cst_61 = arith.constant 1.000000e+00 : f32
    %86 = vector.broadcast %cst_61 : f32 to vector<128x128xf32>
    %87 = arith.addf %86, %85 : vector<128x128xf32>
    %88 = arith.divf %86, %87 : vector<128x128xf32>
    %89 = arith.mulf %83, %88 : vector<128x128xf32>
    %90 = arith.truncf %89 : vector<128x128xf32> to vector<128x128xbf16>
    %c0_62 = arith.constant 0 : index
    %c0_63 = arith.constant 0 : index
    %c0_64 = arith.constant 0 : index
    %91 = vector.load %arg5[%c0_62, %c0_63, %c0_64] : memref<1x128x128xbf16, #tpu.memory_space<vmem>>, vector<1x128x128xbf16>
    %92 = vector.shape_cast %91 : vector<1x128x128xbf16> to vector<128x128xbf16>
    %93 = vector.shape_cast %90 : vector<128x128xbf16> to vector<1x128x128xbf16>
    tpu.vector_store %arg5[%c0_62, %c0_63, %c0_64], %93 {strides = array<i32>} : memref<1x128x128xbf16, #tpu.memory_space<vmem>>, vector<1x128x128xbf16>,
    return
  }
  func.func @transform_0(%arg0: i32, %arg1: i32) -> (i32, i32, i32, i32) {
    %c0_i32 = arith.constant 0 : i32
    %c0_i32_0 = arith.constant 0 : i32
    %c0_i32_1 = arith.constant 0 : i32
    %c0_i32_2 = arith.constant 0 : i32
    return %arg0, %c0_i32, %c0_i32_0, %c0_i32_1 : i32, i32, i32, i32
  }
  func.func @transform_1(%arg0: i32, %arg1: i32) -> (i32, i32, i32) {
    %c0_i32 = arith.constant 0 : i32
    %c0_i32_0 = arith.constant 0 : i32
    %c0_i32_1 = arith.constant 0 : i32
    %c0_i32_2 = arith.constant 0 : i32
    return %c0_i32, %c0_i32_0, %c0_i32_1 : i32, i32, i32
  }
  func.func @transform_2(%arg0: i32, %arg1: i32) -> (i32, i32) {
    %c0_i32 = arith.constant 0 : i32
    %c0_i32_0 = arith.constant 0 : i32
    %c0_i32_1 = arith.constant 0 : i32
    return %c0_i32, %c0_i32_0 : i32, i32
  }
  func.func @transform_3(%arg0: i32, %arg1: i32) -> (i32, i32, i32) {
    %c0_i32 = arith.constant 0 : i32
    %c0_i32_0 = arith.constant 0 : i32
    return %arg0, %arg1, %c0_i32 : i32, i32, i32
  }
}

</mosaic_0001>

<llo_original>
// kernel: _conv_forward_impl.1
$region0: #{_conv_forward_impl.1}
  #allocation0 [shape = 'u32[]', space=smem, size = 0x4, offset = 0x4, fixed_abs, tag = 'smem constant byte address 0x4 - core index']
  #allocation1 [shape = 'u32[144,128]{1,0:T(1,128)}', space=vmem, size = 0x12000, scoped, tag = 'internal scratch']
  %s0 = inlined_call_operand.vmem [shape: bf16[2,18,18,4], index: 0, kind: input, shape index: {}]
  %s1 = inlined_call_operand.vmem [shape: bf16[36,128], index: 1, kind: input, shape index: {}]
  %s2 = inlined_call_operand.vmem [shape: f32[1,128], index: 2, kind: input, shape index: {}]
  %s3 = inlined_call_operand.vmem [shape: bf16[2,256,128], index: 3, kind: output, shape index: {}]
  %s4 = sld [smem:[#allocation0]]
  $region45: #{_conv_forward_impl.1} parent=0
    _
  %s6 = ssub.s32 1, %s4
  %s7 = scalar_select 0, %s6, %s4
  loop: start=0, step=1, limit=6
  $region2: #{_conv_forward_impl.1} parent=0 // loop_pre_header
    _
  $region3: #{_conv_forward_impl.1} parent=0 // loop_header
    %s9 = sphi 0, %s13
    %p10 = scmp.ge.s32.totalorder %s9, 6
    %s16 = sphi 0, %s28
    %s17 = sphi 0, %s24
    %s18 = sphi 0, %s16
    %s19 = sphi 0, %s17
    %s20 = sphi 0, %s18
    %s21 = sphi 0, %s19
    %s31 = sphi 0, %s33
    %s34 = sphi 0, %s31
    %s35 = sphi 0, %s34
    %s51 = sphi 0, %s35
    %s55 = sphi 0, %s55
    %s57 = sphi 0, %s55
    %s58 = sphi 0, %s57
    %s72 = sphi 0, %s58
    %s76 = sphi 0, %s76
    %s78 = sphi 0, %s76
    %s79 = sphi 0, %s78
    %s93 = sphi 0, %s79
    %s101 = sphi 0, %s103
    %s104 = sphi 0, %s101
    %s105 = sphi 0, %s104
    %s121 = sphi 0, %s105
  $region4: #{_conv_forward_impl.1} parent=0 // loop_header_branch
    %12 = sbr.rel (%p10) target = $region8
  $region5: #{_conv_forward_impl.1} parent=0 // loop_body
    %s14 = ssub.s32 %s9, 1
    %s15 = ssub.s32 %s9, 2
    %s22 = sadd.s32 1, %s17
    %p23 = scmp.ge.s32.totalorder %s22, 2
    %s24 = scalar_select %p23, 0, %s22
    %s25 = sadd.s32 1, %s16
    %s26 = scalar_select %p23, %s25, %s16
    %p27 = scmp.ge.s32.totalorder %s26, 2
    %s28 = scalar_select %p27, 0, %s26
    %s29 = ssub.s32 %s16, %s28
    %p30 = scmp.eq.s32.totalorder %s29, 0
    %s32 = sadd.s32 %s31, 1
    %s33 = scalar_select %p30, %s31, %s32
    %p36 = pneg %p30
    %p37 = scmp.eq.s32.totalorder %s9, 3
    %p38 = por %p36, %p37
    %p39 = scmp.ne.s32.totalorder %s31, %s34
    %p40 = scmp.eq.s32.totalorder %s9, 0
    %p41 = por %p39, %p40
    %p42 = scmp.ne.s32.totalorder %s31, %s34
    %p43 = scmp.eq.s32.totalorder %s14, 3
    %p44 = por %p42, %p43
    %p45 = scmp.ne.s32.totalorder %s34, %s35
    %p46 = scmp.eq.s32.totalorder %s14, 0
    %p47 = por %p45, %p46
    %p48 = scmp.ne.s32.totalorder %s34, %s35
    %p49 = scmp.eq.s32.totalorder %s15, 3
    %p50 = por %p48, %p49
    %p52 = scmp.ne.s32.totalorder %s35, %s51
    %p53 = scmp.eq.s32.totalorder %s15, 0
    %p54 = por %p52, %p53
    %s56 = sadd.s32 %s55, 1
    %p59 = scmp.eq.s32.totalorder %s9, 3
    %p60 = scmp.ne.s32.totalorder %s55, %s57
    %p61 = scmp.eq.s32.totalorder %s9, 0
    %p62 = por %p60, %p61
    %p63 = scmp.ne.s32.totalorder %s55, %s57
    %p64 = scmp.eq.s32.totalorder %s14, 3
    %p65 = por %p63, %p64
    %p66 = scmp.ne.s32.totalorder %s57, %s58
    %p67 = scmp.eq.s32.totalorder %s14, 0
    %p68 = por %p66, %p67
    %p69 = scmp.ne.s32.totalorder %s57, %s58
    %p70 = scmp.eq.s32.totalorder %s15, 3
    %p71 = por %p69, %p70
    %p73 = scmp.ne.s32.totalorder %s58, %s72
    %p74 = scmp.eq.s32.totalorder %s15, 0
    %p75 = por %p73, %p74
    %s77 = sadd.s32 %s76, 1
    %p80 = scmp.eq.s32.totalorder %s9, 3
    %p81 = scmp.ne.s32.totalorder %s76, %s78
    %p82 = scmp.eq.s32.totalorder %s9, 0
    %p83 = por %p81, %p82
    %p84 = scmp.ne.s32.totalorder %s76, %s78
    %p85 = scmp.eq.s32.totalorder %s14, 3
    %p86 = por %p84, %p85
    %p87 = scmp.ne.s32.totalorder %s78, %s79
    %p88 = scmp.eq.s32.totalorder %s14, 0
    %p89 = por %p87, %p88
    %p90 = scmp.ne.s32.totalorder %s78, %s79
    %p91 = scmp.eq.s32.totalorder %s15, 3
    %p92 = por %p90, %p91
    %p94 = scmp.ne.s32.totalorder %s79, %s93
    %p95 = scmp.eq.s32.totalorder %s15, 0
    %p96 = por %p94, %p95
    %s97 = ssub.s32 %s16, %s28
    %s98 = ssub.s32 %s17, %s24
    %s99 = sor.u32 %s97, %s98
    %p100 = scmp.eq.s32.totalorder %s99, 0
    %s102 = sadd.s32 %s101, 1
    %s103 = scalar_select %p100, %s101, %s102
    %p106 = pneg %p100
    %p107 = scmp.eq.s32.totalorder %s9, 3
    %p108 = por %p106, %p107
    %p109 = scmp.ne.s32.totalorder %s101, %s104
    %p110 = scmp.eq.s32.totalorder %s9, 0
    %p111 = por %p109, %p110
    %p112 = scmp.ne.s32.totalorder %s101, %s104
    %p113 = scmp.eq.s32.totalorder %s14, 3
    %p114 = por %p112, %p113
    %p115 = scmp.ne.s32.totalorder %s104, %s105
    %p116 = scmp.eq.s32.totalorder %s14, 0
    %p117 = por %p115, %p116
    %p118 = scmp.ne.s32.totalorder %s104, %s105
    %p119 = scmp.eq.s32.totalorder %s15, 3
    %p120 = por %p118, %p119
    %p122 = scmp.ne.s32.totalorder %s105, %s121
    %p123 = scmp.eq.s32.totalorder %s15, 0
    %p124 = por %p122, %p123
    %p125 = scmp.le.s32.totalorder 1, %s9
    %p126 = scmp.lt.s32.totalorder %s9, 5
    %p127 = pnand %p125, %p126
    %p128 = pneg %p127
    // Predicated region
    $region9: #{_conv_forward_impl.1} parent=5 // pred_check
      _
    $region10: #{_conv_forward_impl.1} parent=5 // pred_check_branch
      %130 = sbr.rel (%p127) target = $region12
    $region11: #{_conv_forward_impl.1} parent=5 // pred_region
      %s131 = ssub.s32 %s9, 1
      // Predicated region
      $region13: #{_conv_forward_impl.1} parent=11 // pred_check
        %p132 = pneg %p68
      $region14: #{_conv_forward_impl.1} parent=11 // pred_check_branch
        %134 = sbr.rel (%p132) target = $region16
      $region15: #{_conv_forward_impl.1} parent=11 // pred_region
        _
      $region16: #{_conv_forward_impl.1} parent=11 // pred_fallthru
        _
      // Predicated region
      $region17: #{_conv_forward_impl.1} parent=11 // pred_check
        %p135 = pneg %p89
      $region18: #{_conv_forward_impl.1} parent=11 // pred_check_branch
        %137 = sbr.rel (%p135) target = $region20
      $region19: #{_conv_forward_impl.1} parent=11 // pred_region
        _
      $region20: #{_conv_forward_impl.1} parent=11 // pred_fallthru
        _
    $region12: #{_conv_forward_impl.1} parent=5 // pred_fallthru
      _
    %p138 = scmp.lt.s32.totalorder %s9, 4
    // Predicated region
    $region21: #{_conv_forward_impl.1} parent=5 // pred_check
      %p139 = pneg %p138
    $region22: #{_conv_forward_impl.1} parent=5 // pred_check_branch
      %141 = sbr.rel (%p139) target = $region24
    $region23: #{_conv_forward_impl.1} parent=5 // pred_region
      // Predicated region
      $region25: #{_conv_forward_impl.1} parent=23 // pred_check
        %p142 = pneg %p41
      $region26: #{_conv_forward_impl.1} parent=23 // pred_check_branch
        %144 = sbr.rel (%p142) target = $region28
      $region27: #{_conv_forward_impl.1} parent=23 // pred_region
        %p145 = scmp.lt.s32.totalorder %s16, 1
        %s146 = scalar_select %p145, %s16, 1
        %s147 = smul.addr %s146, 54
        %s148 = smul.addr %s147, 4
        %s149 = scalar_lea.vmem %s0, %s148
      $region28: #{_conv_forward_impl.1} parent=23 // pred_fallthru
        _
    $region24: #{_conv_forward_impl.1} parent=5 // pred_fallthru
      _
    %p150 = scmp.le.s32.totalorder 1, %s9
    %p151 = scmp.lt.s32.totalorder %s9, 5
    %p152 = pnand %p150, %p151
    %p153 = pneg %p152
    // Predicated region
    $region29: #{_conv_forward_impl.1} parent=5 // pred_check
      _
    $region30: #{_conv_forward_impl.1} parent=5 // pred_check_branch
      %155 = sbr.rel (%p152) target = $region32
    $region31: #{_conv_forward_impl.1} parent=5 // pred_region
      %s156 = ssub.s32 %s9, 1
      %p157 = scmp.lt.s32.totalorder %s18, 1
      %s158 = scalar_select %p157, %s18, 1
      %s159 = smul.addr %s158, 54
      %s160 = smul.addr %s159, 4
      %s161 = scalar_lea.vmem %s0, %s160
      %p162 = pneg %p47
      %p163 = pneg %p44
      %p164 = pneg %p68
      %p165 = pneg %p65
      %p166 = pneg %p89
      %p167 = pneg %p86
      %p168 = pneg %p117
      %p169 = pneg %p114
      %s170 = smul.u32 16, %s19
      %p171 = scmp.lt.s32.totalorder %s18, 1
      %s172 = scalar_select %p171, %s18, 1
      %p173 = scmp.lt.s32.totalorder %s170, 31
      %s174 = scalar_select %p173, %s170, 31
      %s175 = smul.addr %s172, 32
      %s176 = sadd.s32 %s174, %s175
      %s177 = smul.addr %s176, 4
      %s178 = scalar_lea.vmem %s3, %s177
      %p179 = scmp.lt.s32.totalorder %s18, 1
      %s180 = scalar_select %p179, %s18, 1
      %s181 = smul.addr %s180, 54
      %s182 = smul.addr %s181, 4
      %s183 = scalar_lea.vmem %s0, %s182
      %s184 = smul.u32 16, %s19
      %p185 = scmp.lt.s32.totalorder %s18, 1
      %s186 = scalar_select %p185, %s18, 1
      %p187 = scmp.lt.s32.totalorder %s184, 31
      %s188 = scalar_select %p187, %s184, 31
      %s189 = smul.addr %s186, 32
      %s190 = sadd.s32 %s188, %s189
      %s191 = smul.addr %s190, 4
      %s192 = scalar_lea.vmem %s3, %s191
      %s193 = smul.u32 16, %s19
      %s195 = smul.u32 %s19, 8
      %s196 = smul.u32 %s195, 3
      %s197 = smul.addr %s196, 4
      %s198 = scalar_lea.vmem %s183, %s197
      %v199 = vld [vmem:[%s198] sm:$0xf]
      %v200 = vld [vmem:[%s198 + $0x4] sm:$0xf]
      %v201 = vld [vmem:[%s198 + $0xc] sm:$0xf]
      %v202 = vld [vmem:[%s198 + $0x10] sm:$0xf]
      %v203 = vld [vmem:[%s198 + $0x18] sm:$0xf]
      %v204 = vld [vmem:[%s198 + $0x1c] sm:$0xf]
      %v205 = vld [vmem:[%s198 + $0x24] sm:$0xf]
      %v206 = vld [vmem:[%s198 + $0x28] sm:$0xf]
      %v207 = vld [vmem:[%s198 + $0x30] sm:$0xf]
      %v208 = vld [vmem:[%s198 + $0x34] sm:$0xf]
      %v209 = vld [vmem:[%s198 + $0x3c] sm:$0xf]
      %v210 = vld [vmem:[%s198 + $0x40] sm:$0xf]
      %v211 = vld [vmem:[%s198 + $0x48] sm:$0xf]
      %v212 = vld [vmem:[%s198 + $0x4c] sm:$0xf]
      %v213 = vld [vmem:[%s198 + $0x54] sm:$0xf]
      %v214 = vld [vmem:[%s198 + $0x58] sm:$0xf]
      %v215 = vld [vmem:[%s198 + $0x8] sm:$0x1]
      %v216 = vld [vmem:[%s198 + $0x14] sm:$0x1]
      %v217 = vld [vmem:[%s198 + $0x20] sm:$0x1]
      %v218 = vld [vmem:[%s198 + $0x2c] sm:$0x1]
      %v219 = vld [vmem:[%s198 + $0x38] sm:$0x1]
      %v220 = vld [vmem:[%s198 + $0x44] sm:$0x1]
      %v221 = vld [vmem:[%s198 + $0x50] sm:$0x1]
      %v222 = vld [vmem:[%s198 + $0x5c] sm:$0x1]
      %vm223 = vsmask.f32 3328
      %vm224 = vsmask.f32 7440
      %vm225 = vmor %vm223, %vm224
      %v227 = vshrl.u32 %v199, 16
      %v229 = vrot.slane %v227, 4
      %v230 = vshll.u32 %v199, 16
      %v232 = vrot.slane %v230, 5
      %v233 = vor.u32 %v229, %v232
      %v234 = vrot.slane %v233, 4
      %v236 = vshll.u32 %v200, 16
      %v238 = vrot.slane %v236, 5
      %v239 = vsel %vm225, %v234, %v238
      %v240 = vshrl.u32 %v200, 16
      %v242 = vrot.slane %v240, 4
      %v243 = vor.u32 %v242, %v238
      %v244 = vrot.slane %v243, 4
      %v246 = vshll.u32 %v215, 16
      %v248 = vrot.slane %v246, 5
      %v249 = vsel %vm225, %v244, %v248
      %v251 = vshrl.u32 %v201, 16
      %v253 = vrot.slane %v251, 4
      %v254 = vshll.u32 %v201, 16
      %v256 = vrot.slane %v254, 5
      %v257 = vor.u32 %v253, %v256
      %v258 = vrot.slane %v257, 4
      %v260 = vshll.u32 %v202, 16
      %v262 = vrot.slane %v260, 5
      %v263 = vsel %vm225, %v258, %v262
      %v264 = vshrl.u32 %v202, 16
      %v266 = vrot.slane %v264, 4
      %v267 = vor.u32 %v266, %v262
      %v268 = vrot.slane %v267, 4
      %v270 = vshll.u32 %v216, 16
      %v272 = vrot.slane %v270, 5
      %v273 = vsel %vm225, %v268, %v272
      %v275 = vshrl.u32 %v203, 16
      %v277 = vrot.slane %v275, 4
      %v278 = vshll.u32 %v203, 16
      %v280 = vrot.slane %v278, 5
      %v281 = vor.u32 %v277, %v280
      %v282 = vrot.slane %v281, 4
      %v284 = vshll.u32 %v204, 16
      %v286 = vrot.slane %v284, 5
      %v287 = vsel %vm225, %v282, %v286
      %v288 = vshrl.u32 %v204, 16
      %v290 = vrot.slane %v288, 4
      %v291 = vor.u32 %v290, %v286
      %v292 = vrot.slane %v291, 4
      %v294 = vshll.u32 %v217, 16
      %v296 = vrot.slane %v294, 5
      %v297 = vsel %vm225, %v292, %v296
      %v299 = vshrl.u32 %v205, 16
      %v301 = vrot.slane %v299, 4
      %v302 = vshll.u32 %v205, 16
      %v304 = vrot.slane %v302, 5
      %v305 = vor.u32 %v301, %v304
      %v306 = vrot.slane %v305, 4
      %v308 = vshll.u32 %v206, 16
      %v310 = vrot.slane %v308, 5
      %v311 = vsel %vm225, %v306, %v310
      %v312 = vshrl.u32 %v206, 16
      %v314 = vrot.slane %v312, 4
      %v315 = vor.u32 %v314, %v310
      %v316 = vrot.slane %v315, 4
      %v318 = vshll.u32 %v218, 16
      %v320 = vrot.slane %v318, 5
      %v321 = vsel %vm225, %v316, %v320
      %v323 = vshrl.u32 %v207, 16
      %v325 = vrot.slane %v323, 4
      %v326 = vshll.u32 %v207, 16
      %v328 = vrot.slane %v326, 5
      %v329 = vor.u32 %v325, %v328
      %v330 = vrot.slane %v329, 4
      %v332 = vshll.u32 %v208, 16
      %v334 = vrot.slane %v332, 5
      %v335 = vsel %vm225, %v330, %v334
      %v336 = vshrl.u32 %v208, 16
      %v338 = vrot.slane %v336, 4
      %v339 = vor.u32 %v338, %v334
      %v340 = vrot.slane %v339, 4
      %v342 = vshll.u32 %v219, 16
      %v344 = vrot.slane %v342, 5
      %v345 = vsel %vm225, %v340, %v344
      %v347 = vshrl.u32 %v209, 16
      %v349 = vrot.slane %v347, 4
      %v350 = vshll.u32 %v209, 16
      %v352 = vrot.slane %v350, 5
      %v353 = vor.u32 %v349, %v352
      %v354 = vrot.slane %v353, 4
      %v356 = vshll.u32 %v210, 16
      %v358 = vrot.slane %v356, 5
      %v359 = vsel %vm225, %v354, %v358
      %v360 = vshrl.u32 %v210, 16
      %v362 = vrot.slane %v360, 4
      %v363 = vor.u32 %v362, %v358
      %v364 = vrot.slane %v363, 4
      %v366 = vshll.u32 %v220, 16
      %v368 = vrot.slane %v366, 5
      %v369 = vsel %vm225, %v364, %v368
      %v371 = vshrl.u32 %v211, 16
      %v373 = vrot.slane %v371, 4
      %v374 = vshll.u32 %v211, 16
      %v376 = vrot.slane %v374, 5
      %v377 = vor.u32 %v373, %v376
      %v378 = vrot.slane %v377, 4
      %v380 = vshll.u32 %v212, 16
      %v382 = vrot.slane %v380, 5
      %v383 = vsel %vm225, %v378, %v382
      %v384 = vshrl.u32 %v212, 16
      %v386 = vrot.slane %v384, 4
      %v387 = vor.u32 %v386, %v382
      %v388 = vrot.slane %v387, 4
      %v390 = vshll.u32 %v221, 16
      %v392 = vrot.slane %v390, 5
      %v393 = vsel %vm225, %v388, %v392
      %v395 = vshrl.u32 %v213, 16
      %v397 = vrot.slane %v395, 4
      %v398 = vshll.u32 %v213, 16
      %v400 = vrot.slane %v398, 5
      %v401 = vor.u32 %v397, %v400
      %v402 = vrot.slane %v401, 4
      %v404 = vshll.u32 %v214, 16
      %v406 = vrot.slane %v404, 5
      %v407 = vsel %vm225, %v402, %v406
      %v408 = vshrl.u32 %v214, 16
      %v410 = vrot.slane %v408, 4
      %v411 = vor.u32 %v410, %v406
      %v412 = vrot.slane %v411, 4
      %v414 = vshll.u32 %v222, 16
      %v416 = vrot.slane %v414, 5
      %v417 = vsel %vm225, %v412, %v416
      %v418 = vld [vmem:[%s198] sm:$0xe]
      %v419 = vld [vmem:[%s198 + $0xc] sm:$0xe]
      %v420 = vld [vmem:[%s198 + $0x18] sm:$0xe]
      %v421 = vld [vmem:[%s198 + $0x24] sm:$0xe]
      %v422 = vld [vmem:[%s198 + $0x30] sm:$0xe]
      %v423 = vld [vmem:[%s198 + $0x3c] sm:$0xe]
      %v424 = vld [vmem:[%s198 + $0x48] sm:$0xe]
      %v425 = vld [vmem:[%s198 + $0x54] sm:$0xe]
      %vm450 = vcmask 1042432
      %vm451 = vcmask 1046532
      %vm452 = vmor %vm450, %vm451
      %v453 = vrot.slane %v418, 5
      %v454 = vrot.slane %v453, 4
      %v455 = vrot.slane %v200, 5
      %v456 = vsel %vm452, %v454, %v455
      %v457 = vrot.slane %v455, 4
      %v458 = vrot.slane %v215, 5
      %v459 = vsel %vm452, %v457, %v458
      %v460 = vrot.slane %v419, 5
      %v461 = vrot.slane %v460, 4
      %v462 = vrot.slane %v202, 5
      %v463 = vsel %vm452, %v461, %v462
      %v464 = vrot.slane %v462, 4
      %v465 = vrot.slane %v216, 5
      %v466 = vsel %vm452, %v464, %v465
      %v467 = vrot.slane %v420, 5
      %v468 = vrot.slane %v467, 4
      %v469 = vrot.slane %v204, 5
      %v470 = vsel %vm452, %v468, %v469
      %v471 = vrot.slane %v469, 4
      %v472 = vrot.slane %v217, 5
      %v473 = vsel %vm452, %v471, %v472
      %v474 = vrot.slane %v421, 5
      %v475 = vrot.slane %v474, 4
      %v476 = vrot.slane %v206, 5
      %v477 = vsel %vm452, %v475, %v476
      %v478 = vrot.slane %v476, 4
      %v479 = vrot.slane %v218, 5
      %v480 = vsel %vm452, %v478, %v479
      %v481 = vrot.slane %v422, 5
      %v482 = vrot.slane %v481, 4
      %v483 = vrot.slane %v208, 5
      %v484 = vsel %vm452, %v482, %v483
      %v485 = vrot.slane %v483, 4
      %v486 = vrot.slane %v219, 5
      %v487 = vsel %vm452, %v485, %v486
      %v488 = vrot.slane %v423, 5
      %v489 = vrot.slane %v488, 4
      %v490 = vrot.slane %v210, 5
      %v491 = vsel %vm452, %v489, %v490
      %v492 = vrot.slane %v490, 4
      %v493 = vrot.slane %v220, 5
      %v494 = vsel %vm452, %v492, %v493
      %v495 = vrot.slane %v424, 5
      %v496 = vrot.slane %v495, 4
      %v497 = vrot.slane %v212, 5
      %v498 = vsel %vm452, %v496, %v497
      %v499 = vrot.slane %v497, 4
      %v500 = vrot.slane %v221, 5
      %v501 = vsel %vm452, %v499, %v500
      %v502 = vrot.slane %v425, 5
      %v503 = vrot.slane %v502, 4
      %v504 = vrot.slane %v214, 5
      %v505 = vsel %vm452, %v503, %v504
      %v506 = vrot.slane %v504, 4
      %v507 = vrot.slane %v222, 5
      %v508 = vsel %vm452, %v506, %v507
      %s509 = sadd.s32 %s195, 1
      %s510 = smul.u32 %s509, 3
      %s511 = smul.addr %s510, 4
      %s512 = scalar_lea.vmem %s183, %s511
      %v513 = vld [vmem:[%s512] sm:$0xf]
      %v514 = vld [vmem:[%s512 + $0x4] sm:$0xf]
      %v515 = vld [vmem:[%s512 + $0xc] sm:$0xf]
      %v516 = vld [vmem:[%s512 + $0x10] sm:$0xf]
      %v517 = vld [vmem:[%s512 + $0x18] sm:$0xf]
      %v518 = vld [vmem:[%s512 + $0x1c] sm:$0xf]
      %v519 = vld [vmem:[%s512 + $0x24] sm:$0xf]
      %v520 = vld [vmem:[%s512 + $0x28] sm:$0xf]
      %v521 = vld [vmem:[%s512 + $0x30] sm:$0xf]
      %v522 = vld [vmem:[%s512 + $0x34] sm:$0xf]
      %v523 = vld [vmem:[%s512 + $0x3c] sm:$0xf]
      %v524 = vld [vmem:[%s512 + $0x40] sm:$0xf]
      %v525 = vld [vmem:[%s512 + $0x48] sm:$0xf]
      %v526 = vld [vmem:[%s512 + $0x4c] sm:$0xf]
      %v527 = vld [vmem:[%s512 + $0x54] sm:$0xf]
      %v528 = vld [vmem:[%s512 + $0x58] sm:$0xf]
      %v529 = vld [vmem:[%s512 + $0x8] sm:$0x1]
      %v530 = vld [vmem:[%s512 + $0x14] sm:$0x1]
      %v531 = vld [vmem:[%s512 + $0x20] sm:$0x1]
      %v532 = vld [vmem:[%s512 + $0x2c] sm:$0x1]
      %v533 = vld [vmem:[%s512 + $0x38] sm:$0x1]
      %v534 = vld [vmem:[%s512 + $0x44] sm:$0x1]
      %v535 = vld [vmem:[%s512 + $0x50] sm:$0x1]
      %v536 = vld [vmem:[%s512 + $0x5c] sm:$0x1]
      %v538 = vshrl.u32 %v513, 16
      %v540 = vrot.slane %v538, 4
      %v541 = vshll.u32 %v513, 16
      %v543 = vrot.slane %v541, 5
      %v544 = vor.u32 %v540, %v543
      %v545 = vrot.slane %v544, 4
      %v547 = vshll.u32 %v514, 16
      %v549 = vrot.slane %v547, 5
      %v550 = vsel %vm225, %v545, %v549
      %v551 = vshrl.u32 %v514, 16
      %v553 = vrot.slane %v551, 4
      %v554 = vor.u32 %v553, %v549
      %v555 = vrot.slane %v554, 4
      %v557 = vshll.u32 %v529, 16
      %v559 = vrot.slane %v557, 5
      %v560 = vsel %vm225, %v555, %v559
      %v562 = vshrl.u32 %v515, 16
      %v564 = vrot.slane %v562, 4
      %v565 = vshll.u32 %v515, 16
      %v567 = vrot.slane %v565, 5
      %v568 = vor.u32 %v564, %v567
      %v569 = vrot.slane %v568, 4
      %v571 = vshll.u32 %v516, 16
      %v573 = vrot.slane %v571, 5
      %v574 = vsel %vm225, %v569, %v573
      %v575 = vshrl.u32 %v516, 16
      %v577 = vrot.slane %v575, 4
      %v578 = vor.u32 %v577, %v573
      %v579 = vrot.slane %v578, 4
      %v581 = vshll.u32 %v530, 16
      %v583 = vrot.slane %v581, 5
      %v584 = vsel %vm225, %v579, %v583
      %v586 = vshrl.u32 %v517, 16
      %v588 = vrot.slane %v586, 4
      %v589 = vshll.u32 %v517, 16
      %v591 = vrot.slane %v589, 5
      %v592 = vor.u32 %v588, %v591
      %v593 = vrot.slane %v592, 4
      %v595 = vshll.u32 %v518, 16
      %v597 = vrot.slane %v595, 5
      %v598 = vsel %vm225, %v593, %v597
      %v599 = vshrl.u32 %v518, 16
      %v601 = vrot.slane %v599, 4
      %v602 = vor.u32 %v601, %v597
      %v603 = vrot.slane %v602, 4
      %v605 = vshll.u32 %v531, 16
      %v607 = vrot.slane %v605, 5
      %v608 = vsel %vm225, %v603, %v607
      %v610 = vshrl.u32 %v519, 16
      %v612 = vrot.slane %v610, 4
      %v613 = vshll.u32 %v519, 16
      %v615 = vrot.slane %v613, 5
      %v616 = vor.u32 %v612, %v615
      %v617 = vrot.slane %v616, 4
      %v619 = vshll.u32 %v520, 16
      %v621 = vrot.slane %v619, 5
      %v622 = vsel %vm225, %v617, %v621
      %v623 = vshrl.u32 %v520, 16
      %v625 = vrot.slane %v623, 4
      %v626 = vor.u32 %v625, %v621
      %v627 = vrot.slane %v626, 4
      %v629 = vshll.u32 %v532, 16
      %v631 = vrot.slane %v629, 5
      %v632 = vsel %vm225, %v627, %v631
      %v634 = vshrl.u32 %v521, 16
      %v636 = vrot.slane %v634, 4
      %v637 = vshll.u32 %v521, 16
      %v639 = vrot.slane %v637, 5
      %v640 = vor.u32 %v636, %v639
      %v641 = vrot.slane %v640, 4
      %v643 = vshll.u32 %v522, 16
      %v645 = vrot.slane %v643, 5
      %v646 = vsel %vm225, %v641, %v645
      %v647 = vshrl.u32 %v522, 16
      %v649 = vrot.slane %v647, 4
      %v650 = vor.u32 %v649, %v645
      %v651 = vrot.slane %v650, 4
      %v653 = vshll.u32 %v533, 16
      %v655 = vrot.slane %v653, 5
      %v656 = vsel %vm225, %v651, %v655
      %v658 = vshrl.u32 %v523, 16
      %v660 = vrot.slane %v658, 4
      %v661 = vshll.u32 %v523, 16
      %v663 = vrot.slane %v661, 5
      %v664 = vor.u32 %v660, %v663
      %v665 = vrot.slane %v664, 4
      %v667 = vshll.u32 %v524, 16
      %v669 = vrot.slane %v667, 5
      %v670 = vsel %vm225, %v665, %v669
      %v671 = vshrl.u32 %v524, 16
      %v673 = vrot.slane %v671, 4
      %v674 = vor.u32 %v673, %v669
      %v675 = vrot.slane %v674, 4
      %v677 = vshll.u32 %v534, 16
      %v679 = vrot.slane %v677, 5
      %v680 = vsel %vm225, %v675, %v679
      %v682 = vshrl.u32 %v525, 16
      %v684 = vrot.slane %v682, 4
      %v685 = vshll.u32 %v525, 16
      %v687 = vrot.slane %v685, 5
      %v688 = vor.u32 %v684, %v687
      %v689 = vrot.slane %v688, 4
      %v691 = vshll.u32 %v526, 16
      %v693 = vrot.slane %v691, 5
      %v694 = vsel %vm225, %v689, %v693
      %v695 = vshrl.u32 %v526, 16
      %v697 = vrot.slane %v695, 4
      %v698 = vor.u32 %v697, %v693
      %v699 = vrot.slane %v698, 4
      %v701 = vshll.u32 %v535, 16
      %v703 = vrot.slane %v701, 5
      %v704 = vsel %vm225, %v699, %v703
      %v706 = vshrl.u32 %v527, 16
      %v708 = vrot.slane %v706, 4
      %v709 = vshll.u32 %v527, 16
      %v711 = vrot.slane %v709, 5
      %v712 = vor.u32 %v708, %v711
      %v713 = vrot.slane %v712, 4
      %v715 = vshll.u32 %v528, 16
      %v717 = vrot.slane %v715, 5
      %v718 = vsel %vm225, %v713, %v717
      %v719 = vshrl.u32 %v528, 16
      %v721 = vrot.slane %v719, 4
      %v722 = vor.u32 %v721, %v717
      %v723 = vrot.slane %v722, 4
      %v725 = vshll.u32 %v536, 16
      %v727 = vrot.slane %v725, 5
      %v728 = vsel %vm225, %v723, %v727
      %v729 = vld [vmem:[%s512] sm:$0xe]
      %v730 = vld [vmem:[%s512 + $0xc] sm:$0xe]
      %v731 = vld [vmem:[%s512 + $0x18] sm:$0xe]
      %v732 = vld [vmem:[%s512 + $0x24] sm:$0xe]
      %v733 = vld [vmem:[%s512 + $0x30] sm:$0xe]
      %v734 = vld [vmem:[%s512 + $0x3c] sm:$0xe]
      %v735 = vld [vmem:[%s512 + $0x48] sm:$0xe]
      %v736 = vld [vmem:[%s512 + $0x54] sm:$0xe]
      %v761 = vrot.slane %v729, 5
      %v762 = vrot.slane %v761, 4
      %v763 = vrot.slane %v514, 5
      %v764 = vsel %vm452, %v762, %v763
      %v765 = vrot.slane %v763, 4
      %v766 = vrot.slane %v529, 5
      %v767 = vsel %vm452, %v765, %v766
      %v768 = vrot.slane %v730, 5
      %v769 = vrot.slane %v768, 4
      %v770 = vrot.slane %v516, 5
      %v771 = vsel %vm452, %v769, %v770
      %v772 = vrot.slane %v770, 4
      %v773 = vrot.slane %v530, 5
      %v774 = vsel %vm452, %v772, %v773
      %v775 = vrot.slane %v731, 5
      %v776 = vrot.slane %v775, 4
      %v777 = vrot.slane %v518, 5
      %v778 = vsel %vm452, %v776, %v777
      %v779 = vrot.slane %v777, 4
      %v780 = vrot.slane %v531, 5
      %v781 = vsel %vm452, %v779, %v780
      %v782 = vrot.slane %v732, 5
      %v783 = vrot.slane %v782, 4
      %v784 = vrot.slane %v520, 5
      %v785 = vsel %vm452, %v783, %v784
      %v786 = vrot.slane %v784, 4
      %v787 = vrot.slane %v532, 5
      %v788 = vsel %vm452, %v786, %v787
      %v789 = vrot.slane %v733, 5
      %v790 = vrot.slane %v789, 4
      %v791 = vrot.slane %v522, 5
      %v792 = vsel %vm452, %v790, %v791
      %v793 = vrot.slane %v791, 4
      %v794 = vrot.slane %v533, 5
      %v795 = vsel %vm452, %v793, %v794
      %v796 = vrot.slane %v734, 5
      %v797 = vrot.slane %v796, 4
      %v798 = vrot.slane %v524, 5
      %v799 = vsel %vm452, %v797, %v798
      %v800 = vrot.slane %v798, 4
      %v801 = vrot.slane %v534, 5
      %v802 = vsel %vm452, %v800, %v801
      %v803 = vrot.slane %v735, 5
      %v804 = vrot.slane %v803, 4
      %v805 = vrot.slane %v526, 5
      %v806 = vsel %vm452, %v804, %v805
      %v807 = vrot.slane %v805, 4
      %v808 = vrot.slane %v535, 5
      %v809 = vsel %vm452, %v807, %v808
      %v810 = vrot.slane %v736, 5
      %v811 = vrot.slane %v810, 4
      %v812 = vrot.slane %v528, 5
      %v813 = vsel %vm452, %v811, %v812
      %v814 = vrot.slane %v812, 4
      %v815 = vrot.slane %v536, 5
      %v816 = vsel %vm452, %v814, %v815
      %s817 = sadd.s32 %s195, 2
      %s818 = smul.u32 %s817, 3
      %s819 = smul.addr %s818, 4
      %s820 = scalar_lea.vmem %s183, %s819
      %v821 = vld [vmem:[%s820] sm:$0xf]
      %v822 = vld [vmem:[%s820 + $0x4] sm:$0xf]
      %v823 = vld [vmem:[%s820 + $0xc] sm:$0xf]
      %v824 = vld [vmem:[%s820 + $0x10] sm:$0xf]
      %v825 = vld [vmem:[%s820 + $0x18] sm:$0xf]
      %v826 = vld [vmem:[%s820 + $0x1c] sm:$0xf]
      %v827 = vld [vmem:[%s820 + $0x24] sm:$0xf]
      %v828 = vld [vmem:[%s820 + $0x28] sm:$0xf]
      %v829 = vld [vmem:[%s820 + $0x30] sm:$0xf]
      %v830 = vld [vmem:[%s820 + $0x34] sm:$0xf]
      %v831 = vld [vmem:[%s820 + $0x3c] sm:$0xf]
      %v832 = vld [vmem:[%s820 + $0x40] sm:$0xf]
      %v833 = vld [vmem:[%s820 + $0x48] sm:$0xf]
      %v834 = vld [vmem:[%s820 + $0x4c] sm:$0xf]
      %v835 = vld [vmem:[%s820 + $0x54] sm:$0xf]
      %v836 = vld [vmem:[%s820 + $0x58] sm:$0xf]
      %v837 = vld [vmem:[%s820 + $0x8] sm:$0x1]
      %v838 = vld [vmem:[%s820 + $0x14] sm:$0x1]
      %v839 = vld [vmem:[%s820 + $0x20] sm:$0x1]
      %v840 = vld [vmem:[%s820 + $0x2c] sm:$0x1]
      %v841 = vld [vmem:[%s820 + $0x38] sm:$0x1]
      %v842 = vld [vmem:[%s820 + $0x44] sm:$0x1]
      %v843 = vld [vmem:[%s820 + $0x50] sm:$0x1]
      %v844 = vld [vmem:[%s820 + $0x5c] sm:$0x1]
      %v846 = vshrl.u32 %v821, 16
      %v848 = vrot.slane %v846, 4
      %v849 = vshll.u32 %v821, 16
      %v851 = vrot.slane %v849, 5
      %v852 = vor.u32 %v848, %v851
      %v853 = vrot.slane %v852, 4
      %v855 = vshll.u32 %v822, 16
      %v857 = vrot.slane %v855, 5
      %v858 = vsel %vm225, %v853, %v857
      %v859 = vshrl.u32 %v822, 16
      %v861 = vrot.slane %v859, 4
      %v862 = vor.u32 %v861, %v857
      %v863 = vrot.slane %v862, 4
      %v865 = vshll.u32 %v837, 16
      %v867 = vrot.slane %v865, 5
      %v868 = vsel %vm225, %v863, %v867
      %v870 = vshrl.u32 %v823, 16
      %v872 = vrot.slane %v870, 4
      %v873 = vshll.u32 %v823, 16
      %v875 = vrot.slane %v873, 5
      %v876 = vor.u32 %v872, %v875
      %v877 = vrot.slane %v876, 4
      %v879 = vshll.u32 %v824, 16
      %v881 = vrot.slane %v879, 5
      %v882 = vsel %vm225, %v877, %v881
      %v883 = vshrl.u32 %v824, 16
      %v885 = vrot.slane %v883, 4
      %v886 = vor.u32 %v885, %v881
      %v887 = vrot.slane %v886, 4
      %v889 = vshll.u32 %v838, 16
      %v891 = vrot.slane %v889, 5
      %v892 = vsel %vm225, %v887, %v891
      %v894 = vshrl.u32 %v825, 16
      %v896 = vrot.slane %v894, 4
      %v897 = vshll.u32 %v825, 16
      %v899 = vrot.slane %v897, 5
      %v900 = vor.u32 %v896, %v899
      %v901 = vrot.slane %v900, 4
      %v903 = vshll.u32 %v826, 16
      %v905 = vrot.slane %v903, 5
      %v906 = vsel %vm225, %v901, %v905
      %v907 = vshrl.u32 %v826, 16
      %v909 = vrot.slane %v907, 4
      %v910 = vor.u32 %v909, %v905
      %v911 = vrot.slane %v910, 4
      %v913 = vshll.u32 %v839, 16
      %v915 = vrot.slane %v913, 5
      %v916 = vsel %vm225, %v911, %v915
      %v918 = vshrl.u32 %v827, 16
      %v920 = vrot.slane %v918, 4
      %v921 = vshll.u32 %v827, 16
      %v923 = vrot.slane %v921, 5
      %v924 = vor.u32 %v920, %v923
      %v925 = vrot.slane %v924, 4
      %v927 = vshll.u32 %v828, 16
      %v929 = vrot.slane %v927, 5
      %v930 = vsel %vm225, %v925, %v929
      %v931 = vshrl.u32 %v828, 16
      %v933 = vrot.slane %v931, 4
      %v934 = vor.u32 %v933, %v929
      %v935 = vrot.slane %v934, 4
      %v937 = vshll.u32 %v840, 16
      %v939 = vrot.slane %v937, 5
      %v940 = vsel %vm225, %v935, %v939
      %v942 = vshrl.u32 %v829, 16
      %v944 = vrot.slane %v942, 4
      %v945 = vshll.u32 %v829, 16
      %v947 = vrot.slane %v945, 5
      %v948 = vor.u32 %v944, %v947
      %v949 = vrot.slane %v948, 4
      %v951 = vshll.u32 %v830, 16
      %v953 = vrot.slane %v951, 5
      %v954 = vsel %vm225, %v949, %v953
      %v955 = vshrl.u32 %v830, 16
      %v957 = vrot.slane %v955, 4
      %v958 = vor.u32 %v957, %v953
      %v959 = vrot.slane %v958, 4
      %v961 = vshll.u32 %v841, 16
      %v963 = vrot.slane %v961, 5
      %v964 = vsel %vm225, %v959, %v963
      %v966 = vshrl.u32 %v831, 16
      %v968 = vrot.slane %v966, 4
      %v969 = vshll.u32 %v831, 16
      %v971 = vrot.slane %v969, 5
      %v972 = vor.u32 %v968, %v971
      %v973 = vrot.slane %v972, 4
      %v975 = vshll.u32 %v832, 16
      %v977 = vrot.slane %v975, 5
      %v978 = vsel %vm225, %v973, %v977
      %v979 = vshrl.u32 %v832, 16
      %v981 = vrot.slane %v979, 4
      %v982 = vor.u32 %v981, %v977
      %v983 = vrot.slane %v982, 4
      %v985 = vshll.u32 %v842, 16
      %v987 = vrot.slane %v985, 5
      %v988 = vsel %vm225, %v983, %v987
      %v990 = vshrl.u32 %v833, 16
      %v992 = vrot.slane %v990, 4
      %v993 = vshll.u32 %v833, 16
      %v995 = vrot.slane %v993, 5
      %v996 = vor.u32 %v992, %v995
      %v997 = vrot.slane %v996, 4
      %v999 = vshll.u32 %v834, 16
      %v1001 = vrot.slane %v999, 5
      %v1002 = vsel %vm225, %v997, %v1001
      %v1003 = vshrl.u32 %v834, 16
      %v1005 = vrot.slane %v1003, 4
      %v1006 = vor.u32 %v1005, %v1001
      %v1007 = vrot.slane %v1006, 4
      %v1009 = vshll.u32 %v843, 16
      %v1011 = vrot.slane %v1009, 5
      %v1012 = vsel %vm225, %v1007, %v1011
      %v1014 = vshrl.u32 %v835, 16
      %v1016 = vrot.slane %v1014, 4
      %v1017 = vshll.u32 %v835, 16
      %v1019 = vrot.slane %v1017, 5
      %v1020 = vor.u32 %v1016, %v1019
      %v1021 = vrot.slane %v1020, 4
      %v1023 = vshll.u32 %v836, 16
      %v1025 = vrot.slane %v1023, 5
      %v1026 = vsel %vm225, %v1021, %v1025
      %v1027 = vshrl.u32 %v836, 16
      %v1029 = vrot.slane %v1027, 4
      %v1030 = vor.u32 %v1029, %v1025
      %v1031 = vrot.slane %v1030, 4
      %v1033 = vshll.u32 %v844, 16
      %v1035 = vrot.slane %v1033, 5
      %v1036 = vsel %vm225, %v1031, %v1035
      %v1037 = vld [vmem:[%s820] sm:$0xe]
      %v1038 = vld [vmem:[%s820 + $0xc] sm:$0xe]
      %v1039 = vld [vmem:[%s820 + $0x18] sm:$0xe]
      %v1040 = vld [vmem:[%s820 + $0x24] sm:$0xe]
      %v1041 = vld [vmem:[%s820 + $0x30] sm:$0xe]
      %v1042 = vld [vmem:[%s820 + $0x3c] sm:$0xe]
      %v1043 = vld [vmem:[%s820 + $0x48] sm:$0xe]
      %v1044 = vld [vmem:[%s820 + $0x54] sm:$0xe]
      %v1069 = vrot.slane %v1037, 5
      %v1070 = vrot.slane %v1069, 4
      %v1071 = vrot.slane %v822, 5
      %v1072 = vsel %vm452, %v1070, %v1071
      %v1073 = vrot.slane %v1071, 4
      %v1074 = vrot.slane %v837, 5
      %v1075 = vsel %vm452, %v1073, %v1074
      %v1076 = vrot.slane %v1038, 5
      %v1077 = vrot.slane %v1076, 4
      %v1078 = vrot.slane %v824, 5
      %v1079 = vsel %vm452, %v1077, %v1078
      %v1080 = vrot.slane %v1078, 4
      %v1081 = vrot.slane %v838, 5
      %v1082 = vsel %vm452, %v1080, %v1081
      %v1083 = vrot.slane %v1039, 5
      %v1084 = vrot.slane %v1083, 4
      %v1085 = vrot.slane %v826, 5
      %v1086 = vsel %vm452, %v1084, %v1085
      %v1087 = vrot.slane %v1085, 4
      %v1088 = vrot.slane %v839, 5
      %v1089 = vsel %vm452, %v1087, %v1088
      %v1090 = vrot.slane %v1040, 5
      %v1091 = vrot.slane %v1090, 4
      %v1092 = vrot.slane %v828, 5
      %v1093 = vsel %vm452, %v1091, %v1092
      %v1094 = vrot.slane %v1092, 4
      %v1095 = vrot.slane %v840, 5
      %v1096 = vsel %vm452, %v1094, %v1095
      %v1097 = vrot.slane %v1041, 5
      %v1098 = vrot.slane %v1097, 4
      %v1099 = vrot.slane %v830, 5
      %v1100 = vsel %vm452, %v1098, %v1099
      %v1101 = vrot.slane %v1099, 4
      %v1102 = vrot.slane %v841, 5
      %v1103 = vsel %vm452, %v1101, %v1102
      %v1104 = vrot.slane %v1042, 5
      %v1105 = vrot.slane %v1104, 4
      %v1106 = vrot.slane %v832, 5
      %v1107 = vsel %vm452, %v1105, %v1106
      %v1108 = vrot.slane %v1106, 4
      %v1109 = vrot.slane %v842, 5
      %v1110 = vsel %vm452, %v1108, %v1109
      %v1111 = vrot.slane %v1043, 5
      %v1112 = vrot.slane %v1111, 4
      %v1113 = vrot.slane %v834, 5
      %v1114 = vsel %vm452, %v1112, %v1113
      %v1115 = vrot.slane %v1113, 4
      %v1116 = vrot.slane %v843, 5
      %v1117 = vsel %vm452, %v1115, %v1116
      %v1118 = vrot.slane %v1044, 5
      %v1119 = vrot.slane %v1118, 4
      %v1120 = vrot.slane %v836, 5
      %v1121 = vsel %vm452, %v1119, %v1120
      %v1122 = vrot.slane %v1120, 4
      %v1123 = vrot.slane %v844, 5
      %v1124 = vsel %vm452, %v1122, %v1123
      %v1133 = vunpack.c.l.b16 %v199
      %v1134 = vunpack.c.l.b16 %v200
      %v1135 = vunpack.c.l.b16 %v201
      %v1136 = vunpack.c.l.b16 %v202
      %v1137 = vunpack.c.l.b16 %v203
      %v1138 = vunpack.c.l.b16 %v204
      %v1139 = vunpack.c.l.b16 %v205
      %v1140 = vunpack.c.l.b16 %v206
      %v1141 = vunpack.c.l.b16 %v207
      %v1142 = vunpack.c.l.b16 %v208
      %v1143 = vunpack.c.l.b16 %v209
      %v1144 = vunpack.c.l.b16 %v210
      %v1145 = vunpack.c.l.b16 %v211
      %v1146 = vunpack.c.l.b16 %v212
      %v1147 = vunpack.c.l.b16 %v213
      %v1148 = vunpack.c.l.b16 %v214
      %v1149 = vpack.c.b16 %v1134, %v1133
      %v1150 = vpack.c.b16 %v1136, %v1135
      %v1151 = vpack.c.b16 %v1138, %v1137
      %v1152 = vpack.c.b16 %v1140, %v1139
      %v1153 = vpack.c.b16 %v1142, %v1141
      %v1154 = vpack.c.b16 %v1144, %v1143
      %v1155 = vpack.c.b16 %v1146, %v1145
      %v1156 = vpack.c.b16 %v1148, %v1147
      %v1157 = vunpack.c.l.b16 %v239
      %v1158 = vunpack.c.l.b16 %v249
      %v1159 = vunpack.c.l.b16 %v263
      %v1160 = vunpack.c.l.b16 %v273
      %v1161 = vunpack.c.l.b16 %v287
      %v1162 = vunpack.c.l.b16 %v297
      %v1163 = vunpack.c.l.b16 %v311
      %v1164 = vunpack.c.l.b16 %v321
      %v1165 = vunpack.c.l.b16 %v335
      %v1166 = vunpack.c.l.b16 %v345
      %v1167 = vunpack.c.l.b16 %v359
      %v1168 = vunpack.c.l.b16 %v369
      %v1169 = vunpack.c.l.b16 %v383
      %v1170 = vunpack.c.l.b16 %v393
      %v1171 = vunpack.c.l.b16 %v407
      %v1172 = vunpack.c.l.b16 %v417
      %v1173 = vpack.c.b16 %v1158, %v1157
      %v1174 = vpack.c.b16 %v1160, %v1159
      %v1175 = vpack.c.b16 %v1162, %v1161
      %v1176 = vpack.c.b16 %v1164, %v1163
      %v1177 = vpack.c.b16 %v1166, %v1165
      %v1178 = vpack.c.b16 %v1168, %v1167
      %v1179 = vpack.c.b16 %v1170, %v1169
      %v1180 = vpack.c.b16 %v1172, %v1171
      %1181 = vrot.lane.b32.xlu0 %v1173, 4
      %v1182 = vpop.permute.xlu0 %1181
      %1183 = vrot.lane.b32.xlu0 %v1174, 4
      %v1184 = vpop.permute.xlu0 %1183
      %1185 = vrot.lane.b32.xlu0 %v1175, 4
      %v1186 = vpop.permute.xlu0 %1185
      %1187 = vrot.lane.b32.xlu0 %v1176, 4
      %v1188 = vpop.permute.xlu0 %1187
      %1189 = vrot.lane.b32.xlu0 %v1177, 4
      %v1190 = vpop.permute.xlu0 %1189
      %1191 = vrot.lane.b32.xlu0 %v1178, 4
      %v1192 = vpop.permute.xlu0 %1191
      %1193 = vrot.lane.b32.xlu0 %v1179, 4
      %v1194 = vpop.permute.xlu0 %1193
      %1195 = vrot.lane.b32.xlu0 %v1180, 4
      %v1196 = vpop.permute.xlu0 %1195
      %v1197 = vunpack.c.l.b16 %v456
      %v1198 = vunpack.c.l.b16 %v459
      %v1199 = vunpack.c.l.b16 %v463
      %v1200 = vunpack.c.l.b16 %v466
      %v1201 = vunpack.c.l.b16 %v470
      %v1202 = vunpack.c.l.b16 %v473
      %v1203 = vunpack.c.l.b16 %v477
      %v1204 = vunpack.c.l.b16 %v480
      %v1205 = vunpack.c.l.b16 %v484
      %v1206 = vunpack.c.l.b16 %v487
      %v1207 = vunpack.c.l.b16 %v491
      %v1208 = vunpack.c.l.b16 %v494
      %v1209 = vunpack.c.l.b16 %v498
      %v1210 = vunpack.c.l.b16 %v501
      %v1211 = vunpack.c.l.b16 %v505
      %v1212 = vunpack.c.l.b16 %v508
      %v1213 = vpack.c.b16 %v1198, %v1197
      %v1214 = vpack.c.b16 %v1200, %v1199
      %v1215 = vpack.c.b16 %v1202, %v1201
      %v1216 = vpack.c.b16 %v1204, %v1203
      %v1217 = vpack.c.b16 %v1206, %v1205
      %v1218 = vpack.c.b16 %v1208, %v1207
      %v1219 = vpack.c.b16 %v1210, %v1209
      %v1220 = vpack.c.b16 %v1212, %v1211
      %1221 = vrot.lane.b32.xlu0 %v1213, 8
      %v1222 = vpop.permute.xlu0 %1221
      %1223 = vrot.lane.b32.xlu0 %v1214, 8
      %v1224 = vpop.permute.xlu0 %1223
      %1225 = vrot.lane.b32.xlu0 %v1215, 8
      %v1226 = vpop.permute.xlu0 %1225
      %1227 = vrot.lane.b32.xlu0 %v1216, 8
      %v1228 = vpop.permute.xlu0 %1227
      %1229 = vrot.lane.b32.xlu0 %v1217, 8
      %v1230 = vpop.permute.xlu0 %1229
      %1231 = vrot.lane.b32.xlu0 %v1218, 8
      %v1232 = vpop.permute.xlu0 %1231
      %1233 = vrot.lane.b32.xlu0 %v1219, 8
      %v1234 = vpop.permute.xlu0 %1233
      %1235 = vrot.lane.b32.xlu0 %v1220, 8
      %v1236 = vpop.permute.xlu0 %1235
      %v1245 = vunpack.c.l.b16 %v513
      %v1246 = vunpack.c.l.b16 %v514
      %v1247 = vunpack.c.l.b16 %v515
      %v1248 = vunpack.c.l.b16 %v516
      %v1249 = vunpack.c.l.b16 %v517
      %v1250 = vunpack.c.l.b16 %v518
      %v1251 = vunpack.c.l.b16 %v519
      %v1252 = vunpack.c.l.b16 %v520
      %v1253 = vunpack.c.l.b16 %v521
      %v1254 = vunpack.c.l.b16 %v522
      %v1255 = vunpack.c.l.b16 %v523
      %v1256 = vunpack.c.l.b16 %v524
      %v1257 = vunpack.c.l.b16 %v525
      %v1258 = vunpack.c.l.b16 %v526
      %v1259 = vunpack.c.l.b16 %v527
      %v1260 = vunpack.c.l.b16 %v528
      %v1261 = vpack.c.b16 %v1246, %v1245
      %v1262 = vpack.c.b16 %v1248, %v1247
      %v1263 = vpack.c.b16 %v1250, %v1249
      %v1264 = vpack.c.b16 %v1252, %v1251
      %v1265 = vpack.c.b16 %v1254, %v1253
      %v1266 = vpack.c.b16 %v1256, %v1255
      %v1267 = vpack.c.b16 %v1258, %v1257
      %v1268 = vpack.c.b16 %v1260, %v1259
      %1269 = vrot.lane.b32.xlu0 %v1261, 12
      %v1270 = vpop.permute.xlu0 %1269
      %1271 = vrot.lane.b32.xlu0 %v1262, 12
      %v1272 = vpop.permute.xlu0 %1271
      %1273 = vrot.lane.b32.xlu0 %v1263, 12
      %v1274 = vpop.permute.xlu0 %1273
      %1275 = vrot.lane.b32.xlu0 %v1264, 12
      %v1276 = vpop.permute.xlu0 %1275
      %1277 = vrot.lane.b32.xlu0 %v1265, 12
      %v1278 = vpop.permute.xlu0 %1277
      %1279 = vrot.lane.b32.xlu0 %v1266, 12
      %v1280 = vpop.permute.xlu0 %1279
      %1281 = vrot.lane.b32.xlu0 %v1267, 12
      %v1282 = vpop.permute.xlu0 %1281
      %1283 = vrot.lane.b32.xlu0 %v1268, 12
      %v1284 = vpop.permute.xlu0 %1283
      %v1285 = vunpack.c.l.b16 %v550
      %v1286 = vunpack.c.l.b16 %v560
      %v1287 = vunpack.c.l.b16 %v574
      %v1288 = vunpack.c.l.b16 %v584
      %v1289 = vunpack.c.l.b16 %v598
      %v1290 = vunpack.c.l.b16 %v608
      %v1291 = vunpack.c.l.b16 %v622
      %v1292 = vunpack.c.l.b16 %v632
      %v1293 = vunpack.c.l.b16 %v646
      %v1294 = vunpack.c.l.b16 %v656
      %v1295 = vunpack.c.l.b16 %v670
      %v1296 = vunpack.c.l.b16 %v680
      %v1297 = vunpack.c.l.b16 %v694
      %v1298 = vunpack.c.l.b16 %v704
      %v1299 = vunpack.c.l.b16 %v718
      %v1300 = vunpack.c.l.b16 %v728
      %v1301 = vpack.c.b16 %v1286, %v1285
      %v1302 = vpack.c.b16 %v1288, %v1287
      %v1303 = vpack.c.b16 %v1290, %v1289
      %v1304 = vpack.c.b16 %v1292, %v1291
      %v1305 = vpack.c.b16 %v1294, %v1293
      %v1306 = vpack.c.b16 %v1296, %v1295
      %v1307 = vpack.c.b16 %v1298, %v1297
      %v1308 = vpack.c.b16 %v1300, %v1299
      %1309 = vrot.lane.b32.xlu0 %v1301, 16
      %v1310 = vpop.permute.xlu0 %1309
      %1311 = vrot.lane.b32.xlu0 %v1302, 16
      %v1312 = vpop.permute.xlu0 %1311
      %1313 = vrot.lane.b32.xlu0 %v1303, 16
      %v1314 = vpop.permute.xlu0 %1313
      %1315 = vrot.lane.b32.xlu0 %v1304, 16
      %v1316 = vpop.permute.xlu0 %1315
      %1317 = vrot.lane.b32.xlu0 %v1305, 16
      %v1318 = vpop.permute.xlu0 %1317
      %1319 = vrot.lane.b32.xlu0 %v1306, 16
      %v1320 = vpop.permute.xlu0 %1319
      %1321 = vrot.lane.b32.xlu0 %v1307, 16
      %v1322 = vpop.permute.xlu0 %1321
      %1323 = vrot.lane.b32.xlu0 %v1308, 16
      %v1324 = vpop.permute.xlu0 %1323
      %v1325 = vunpack.c.l.b16 %v764
      %v1326 = vunpack.c.l.b16 %v767
      %v1327 = vunpack.c.l.b16 %v771
      %v1328 = vunpack.c.l.b16 %v774
      %v1329 = vunpack.c.l.b16 %v778
      %v1330 = vunpack.c.l.b16 %v781
      %v1331 = vunpack.c.l.b16 %v785
      %v1332 = vunpack.c.l.b16 %v788
      %v1333 = vunpack.c.l.b16 %v792
      %v1334 = vunpack.c.l.b16 %v795
      %v1335 = vunpack.c.l.b16 %v799
      %v1336 = vunpack.c.l.b16 %v802
      %v1337 = vunpack.c.l.b16 %v806
      %v1338 = vunpack.c.l.b16 %v809
      %v1339 = vunpack.c.l.b16 %v813
      %v1340 = vunpack.c.l.b16 %v816
      %v1341 = vpack.c.b16 %v1326, %v1325
      %v1342 = vpack.c.b16 %v1328, %v1327
      %v1343 = vpack.c.b16 %v1330, %v1329
      %v1344 = vpack.c.b16 %v1332, %v1331
      %v1345 = vpack.c.b16 %v1334, %v1333
      %v1346 = vpack.c.b16 %v1336, %v1335
      %v1347 = vpack.c.b16 %v1338, %v1337
      %v1348 = vpack.c.b16 %v1340, %v1339
      %1349 = vrot.lane.b32.xlu0 %v1341, 20
      %v1350 = vpop.permute.xlu0 %1349
      %1351 = vrot.lane.b32.xlu0 %v1342, 20
      %v1352 = vpop.permute.xlu0 %1351
      %1353 = vrot.lane.b32.xlu0 %v1343, 20
      %v1354 = vpop.permute.xlu0 %1353
      %1355 = vrot.lane.b32.xlu0 %v1344, 20
      %v1356 = vpop.permute.xlu0 %1355
      %1357 = vrot.lane.b32.xlu0 %v1345, 20
      %v1358 = vpop.permute.xlu0 %1357
      %1359 = vrot.lane.b32.xlu0 %v1346, 20
      %v1360 = vpop.permute.xlu0 %1359
      %1361 = vrot.lane.b32.xlu0 %v1347, 20
      %v1362 = vpop.permute.xlu0 %1361
      %1363 = vrot.lane.b32.xlu0 %v1348, 20
      %v1364 = vpop.permute.xlu0 %1363
      %v1373 = vunpack.c.l.b16 %v821
      %v1374 = vunpack.c.l.b16 %v822
      %v1375 = vunpack.c.l.b16 %v823
      %v1376 = vunpack.c.l.b16 %v824
      %v1377 = vunpack.c.l.b16 %v825
      %v1378 = vunpack.c.l.b16 %v826
      %v1379 = vunpack.c.l.b16 %v827
      %v1380 = vunpack.c.l.b16 %v828
      %v1381 = vunpack.c.l.b16 %v829
      %v1382 = vunpack.c.l.b16 %v830
      %v1383 = vunpack.c.l.b16 %v831
      %v1384 = vunpack.c.l.b16 %v832
      %v1385 = vunpack.c.l.b16 %v833
      %v1386 = vunpack.c.l.b16 %v834
      %v1387 = vunpack.c.l.b16 %v835
      %v1388 = vunpack.c.l.b16 %v836
      %v1389 = vpack.c.b16 %v1374, %v1373
      %v1390 = vpack.c.b16 %v1376, %v1375
      %v1391 = vpack.c.b16 %v1378, %v1377
      %v1392 = vpack.c.b16 %v1380, %v1379
      %v1393 = vpack.c.b16 %v1382, %v1381
      %v1394 = vpack.c.b16 %v1384, %v1383
      %v1395 = vpack.c.b16 %v1386, %v1385
      %v1396 = vpack.c.b16 %v1388, %v1387
      %1397 = vrot.lane.b32.xlu0 %v1389, 24
      %v1398 = vpop.permute.xlu0 %1397
      %1399 = vrot.lane.b32.xlu0 %v1390, 24
      %v1400 = vpop.permute.xlu0 %1399
      %1401 = vrot.lane.b32.xlu0 %v1391, 24
      %v1402 = vpop.permute.xlu0 %1401
      %1403 = vrot.lane.b32.xlu0 %v1392, 24
      %v1404 = vpop.permute.xlu0 %1403
      %1405 = vrot.lane.b32.xlu0 %v1393, 24
      %v1406 = vpop.permute.xlu0 %1405
      %1407 = vrot.lane.b32.xlu0 %v1394, 24
      %v1408 = vpop.permute.xlu0 %1407
      %1409 = vrot.lane.b32.xlu0 %v1395, 24
      %v1410 = vpop.permute.xlu0 %1409
      %1411 = vrot.lane.b32.xlu0 %v1396, 24
      %v1412 = vpop.permute.xlu0 %1411
      %v1413 = vunpack.c.l.b16 %v858
      %v1414 = vunpack.c.l.b16 %v868
      %v1415 = vunpack.c.l.b16 %v882
      %v1416 = vunpack.c.l.b16 %v892
      %v1417 = vunpack.c.l.b16 %v906
      %v1418 = vunpack.c.l.b16 %v916
      %v1419 = vunpack.c.l.b16 %v930
      %v1420 = vunpack.c.l.b16 %v940
      %v1421 = vunpack.c.l.b16 %v954
      %v1422 = vunpack.c.l.b16 %v964
      %v1423 = vunpack.c.l.b16 %v978
      %v1424 = vunpack.c.l.b16 %v988
      %v1425 = vunpack.c.l.b16 %v1002
      %v1426 = vunpack.c.l.b16 %v1012
      %v1427 = vunpack.c.l.b16 %v1026
      %v1428 = vunpack.c.l.b16 %v1036
      %v1429 = vpack.c.b16 %v1414, %v1413
      %v1430 = vpack.c.b16 %v1416, %v1415
      %v1431 = vpack.c.b16 %v1418, %v1417
      %v1432 = vpack.c.b16 %v1420, %v1419
      %v1433 = vpack.c.b16 %v1422, %v1421
      %v1434 = vpack.c.b16 %v1424, %v1423
      %v1435 = vpack.c.b16 %v1426, %v1425
      %v1436 = vpack.c.b16 %v1428, %v1427
      %1437 = vrot.lane.b32.xlu0 %v1429, 28
      %v1438 = vpop.permute.xlu0 %1437
      %1439 = vrot.lane.b32.xlu0 %v1430, 28
      %v1440 = vpop.permute.xlu0 %1439
      %1441 = vrot.lane.b32.xlu0 %v1431, 28
      %v1442 = vpop.permute.xlu0 %1441
      %1443 = vrot.lane.b32.xlu0 %v1432, 28
      %v1444 = vpop.permute.xlu0 %1443
      %1445 = vrot.lane.b32.xlu0 %v1433, 28
      %v1446 = vpop.permute.xlu0 %1445
      %1447 = vrot.lane.b32.xlu0 %v1434, 28
      %v1448 = vpop.permute.xlu0 %1447
      %1449 = vrot.lane.b32.xlu0 %v1435, 28
      %v1450 = vpop.permute.xlu0 %1449
      %1451 = vrot.lane.b32.xlu0 %v1436, 28
      %v1452 = vpop.permute.xlu0 %1451
      %v1453 = vunpack.c.l.b16 %v1072
      %v1454 = vunpack.c.l.b16 %v1075
      %v1455 = vunpack.c.l.b16 %v1079
      %v1456 = vunpack.c.l.b16 %v1082
      %v1457 = vunpack.c.l.b16 %v1086
      %v1458 = vunpack.c.l.b16 %v1089
      %v1459 = vunpack.c.l.b16 %v1093
      %v1460 = vunpack.c.l.b16 %v1096
      %v1461 = vunpack.c.l.b16 %v1100
      %v1462 = vunpack.c.l.b16 %v1103
      %v1463 = vunpack.c.l.b16 %v1107
      %v1464 = vunpack.c.l.b16 %v1110
      %v1465 = vunpack.c.l.b16 %v1114
      %v1466 = vunpack.c.l.b16 %v1117
      %v1467 = vunpack.c.l.b16 %v1121
      %v1468 = vunpack.c.l.b16 %v1124
      %v1469 = vpack.c.b16 %v1454, %v1453
      %v1470 = vpack.c.b16 %v1456, %v1455
      %v1471 = vpack.c.b16 %v1458, %v1457
      %v1472 = vpack.c.b16 %v1460, %v1459
      %v1473 = vpack.c.b16 %v1462, %v1461
      %v1474 = vpack.c.b16 %v1464, %v1463
      %v1475 = vpack.c.b16 %v1466, %v1465
      %v1476 = vpack.c.b16 %v1468, %v1467
      %1477 = vrot.lane.b32.xlu0 %v1469, 32
      %v1478 = vpop.permute.xlu0 %1477
      %1479 = vrot.lane.b32.xlu0 %v1470, 32
      %v1480 = vpop.permute.xlu0 %1479
      %1481 = vrot.lane.b32.xlu0 %v1471, 32
      %v1482 = vpop.permute.xlu0 %1481
      %1483 = vrot.lane.b32.xlu0 %v1472, 32
      %v1484 = vpop.permute.xlu0 %1483
      %1485 = vrot.lane.b32.xlu0 %v1473, 32
      %v1486 = vpop.permute.xlu0 %1485
      %1487 = vrot.lane.b32.xlu0 %v1474, 32
      %v1488 = vpop.permute.xlu0 %1487
      %1489 = vrot.lane.b32.xlu0 %v1475, 32
      %v1490 = vpop.permute.xlu0 %1489
      %1491 = vrot.lane.b32.xlu0 %v1476, 32
      %v1492 = vpop.permute.xlu0 %1491
      %vm1493 = vcmask 31744
      %v1496 = vsel %vm1493, %v1149, %v1182
      %v1499 = vsel %vm1493, %v1150, %v1184
      %v1502 = vsel %vm1493, %v1151, %v1186
      %v1505 = vsel %vm1493, %v1152, %v1188
      %v1508 = vsel %vm1493, %v1153, %v1190
      %v1511 = vsel %vm1493, %v1154, %v1192
      %v1514 = vsel %vm1493, %v1155, %v1194
      %v1517 = vsel %vm1493, %v1156, %v1196
      %vm1518 = vcmask 64512
      %v1520 = vsel %vm1518, %v1496, %v1222
      %v1522 = vsel %vm1518, %v1499, %v1224
      %v1524 = vsel %vm1518, %v1502, %v1226
      %v1526 = vsel %vm1518, %v1505, %v1228
      %v1528 = vsel %vm1518, %v1508, %v1230
      %v1530 = vsel %vm1518, %v1511, %v1232
      %v1532 = vsel %vm1518, %v1514, %v1234
      %v1534 = vsel %vm1518, %v1517, %v1236
      %vm1535 = vcmask 97280
      %v1537 = vsel %vm1535, %v1520, %v1270
      %v1539 = vsel %vm1535, %v1522, %v1272
      %v1541 = vsel %vm1535, %v1524, %v1274
      %v1543 = vsel %vm1535, %v1526, %v1276
      %v1545 = vsel %vm1535, %v1528, %v1278
      %v1547 = vsel %vm1535, %v1530, %v1280
      %v1549 = vsel %vm1535, %v1532, %v1282
      %v1551 = vsel %vm1535, %v1534, %v1284
      %vm1552 = vcmask 130048
      %v1554 = vsel %vm1552, %v1537, %v1310
      %v1556 = vsel %vm1552, %v1539, %v1312
      %v1558 = vsel %vm1552, %v1541, %v1314
      %v1560 = vsel %vm1552, %v1543, %v1316
      %v1562 = vsel %vm1552, %v1545, %v1318
      %v1564 = vsel %vm1552, %v1547, %v1320
      %v1566 = vsel %vm1552, %v1549, %v1322
      %v1568 = vsel %vm1552, %v1551, %v1324
      %vm1569 = vcmask 162816
      %v1571 = vsel %vm1569, %v1554, %v1350
      %v1573 = vsel %vm1569, %v1556, %v1352
      %v1575 = vsel %vm1569, %v1558, %v1354
      %v1577 = vsel %vm1569, %v1560, %v1356
      %v1579 = vsel %vm1569, %v1562, %v1358
      %v1581 = vsel %vm1569, %v1564, %v1360
      %v1583 = vsel %vm1569, %v1566, %v1362
      %v1585 = vsel %vm1569, %v1568, %v1364
      %vm1586 = vcmask 195584
      %v1588 = vsel %vm1586, %v1571, %v1398
      %v1590 = vsel %vm1586, %v1573, %v1400
      %v1592 = vsel %vm1586, %v1575, %v1402
      %v1594 = vsel %vm1586, %v1577, %v1404
      %v1596 = vsel %vm1586, %v1579, %v1406
      %v1598 = vsel %vm1586, %v1581, %v1408
      %v1600 = vsel %vm1586, %v1583, %v1410
      %v1602 = vsel %vm1586, %v1585, %v1412
      %vm1603 = vcmask 228352
      %v1605 = vsel %vm1603, %v1588, %v1438
      %v1607 = vsel %vm1603, %v1590, %v1440
      %v1609 = vsel %vm1603, %v1592, %v1442
      %v1611 = vsel %vm1603, %v1594, %v1444
      %v1613 = vsel %vm1603, %v1596, %v1446
      %v1615 = vsel %vm1603, %v1598, %v1448
      %v1617 = vsel %vm1603, %v1600, %v1450
      %v1619 = vsel %vm1603, %v1602, %v1452
      %vm1620 = vcmask 261120
      %v1622 = vsel %vm1620, %v1605, %v1478
      %v1624 = vsel %vm1620, %v1607, %v1480
      %v1626 = vsel %vm1620, %v1609, %v1482
      %v1628 = vsel %vm1620, %v1611, %v1484
      %v1630 = vsel %vm1620, %v1613, %v1486
      %v1632 = vsel %vm1620, %v1615, %v1488
      %v1634 = vsel %vm1620, %v1617, %v1490
      %v1636 = vsel %vm1620, %v1619, %v1492
      %v1637 = vld [vmem:[%s1] sm:$0xf]
      %v1638 = vld [vmem:[%s1 + $0x4] sm:$0xf]
      %v1639 = vld [vmem:[%s1 + $0x8] sm:$0xf]
      %v1640 = vld [vmem:[%s1 + $0xc] sm:$0xf]
      %v1641 = vld [vmem:[%s1 + $0x10] sm:$0x3]
      %v1642 = vld [vmem:[%s2] sm:$0x1]
      %v1644 = vlaneseq
      %v1645 = vshrl.u32 %v1644, 7
      %v1646 = vsub.s32 0, %v1645
      %v1647 = vrot.slane %v1642, %v1646
      %v1654 = vunpack.c.l.b16 %v1637
      %v1655 = vunpack.c.l.b16 %v1638
      %v1656 = vunpack.c.l.b16 %v1639
      %v1657 = vunpack.c.l.b16 %v1640
      %v1658 = vunpack.c.l.b16 %v1641
      %v1659 = vpack.c.b16 %v1655, %v1654
      %v1660 = vpack.c.b16 %v1657, %v1656
      %v1661 = vpack.c.b16 %v1658, %v1658
      %vm1664 = vcmask 293888
      %v1665 = vsel %vm1664, %v1622, 0
      %v1667 = vsel %vm1664, %v1624, 0
      %v1669 = vsel %vm1664, %v1626, 0
      %v1671 = vsel %vm1664, %v1628, 0
      %v1673 = vsel %vm1664, %v1630, 0
      %v1675 = vsel %vm1664, %v1632, 0
      %v1677 = vsel %vm1664, %v1634, 0
      %v1679 = vsel %vm1664, %v1636, 0
      %vm1681 = vcmask 1041408
      %v1683 = vsel %vm1681, %v1661, 0
      %1685 = vmatprep.subr.bf16.mxu0 0
      %1686 = vmatpush1.bf16.msra.mxu0 %v1659
      %1687 = vmatprep.subr.bf16.mxu0 0
      %1688 = vmatpush1.bf16.msra.mxu0 %v1660
      %1689 = vmatprep.subr.bf16.mxu0 0
      %1690 = vmatpush1.bf16.msra.mxu0 %v1683
      %1691 = vmatprep.subr.bf16.mxu0 0
      %1692 = vmatpush1.bf16.msra.mxu0 0
      %1693 = vmatprep.subr.bf16.mxu0 0
      %1694 = vmatpush1.bf16.msra.mxu0 0
      %1695 = vmatprep.subr.bf16.mxu0 0
      %1696 = vmatpush1.bf16.msra.mxu0 0
      %1697 = vmatprep.subr.bf16.mxu0 0
      %1698 = vmatpush1.bf16.msra.mxu0 0
      %1699 = vmatprep.subr.bf16.mxu0 0
      %1700 = vmatpush1.bf16.msra.mxu0 0
      %1701 = vmatprep.subr.bf16.mxu0 0
      %1702 = vmatpush1.bf16.msra.mxu0 0
      %1703 = vmatprep.subr.bf16.mxu0 0
      %1704 = vmatpush1.bf16.msra.mxu0 0
      %1705 = vmatprep.subr.bf16.mxu0 0
      %1706 = vmatpush1.bf16.msra.mxu0 0
      %1707 = vmatprep.subr.bf16.mxu0 0
      %1708 = vmatpush1.bf16.msra.mxu0 0
      %1709 = vmatprep.subr.bf16.mxu0 0
      %1710 = vmatpush1.bf16.msra.mxu0 0
      %1711 = vmatprep.subr.bf16.mxu0 0
      %1712 = vmatpush1.bf16.msra.mxu0 0
      %1713 = vmatprep.subr.bf16.mxu0 0
      %1714 = vmatpush1.bf16.msra.mxu0 0
      %1715 = vmatprep.subr.bf16.mxu0 0
      %1716 = vmatpush1.bf16.msra.mxu0 0
      %1717 = vmatprep.mubr.bf16.mxu0 0
      %1718 = vmatmul.mubr.bf16.gmra.mrb[0].mxu0 %v1665
      %v1719 = vpop.f32.mrb[0].mxu0
      %v1720 = vadd.f32 %v1647, %v1719
      %v1721 = vpop.f32.mrb[0].mxu0
      %v1722 = vpop.f32.mrb[0].mxu0
      %v1723 = vadd.f32 %v1647, %v1722
      %v1724 = vpop.f32.mrb[0].mxu0
      %1725 = vmatprep.mubr.bf16.mxu0 0
      %1726 = vmatmul.mubr.bf16.gmra.mrb[0].mxu0 %v1667
      %v1727 = vpop.f32.mrb[0].mxu0
      %v1728 = vadd.f32 %v1647, %v1727
      %v1729 = vpop.f32.mrb[0].mxu0
      %v1730 = vpop.f32.mrb[0].mxu0
      %v1731 = vadd.f32 %v1647, %v1730
      %v1732 = vpop.f32.mrb[0].mxu0
      %1733 = vmatprep.mubr.bf16.mxu0 0
      %1734 = vmatmul.mubr.bf16.gmra.mrb[0].mxu0 %v1669
      %v1735 = vpop.f32.mrb[0].mxu0
      %v1736 = vadd.f32 %v1647, %v1735
      %v1737 = vpop.f32.mrb[0].mxu0
      %v1738 = vpop.f32.mrb[0].mxu0
      %v1739 = vadd.f32 %v1647, %v1738
      %v1740 = vpop.f32.mrb[0].mxu0
      %1741 = vmatprep.mubr.bf16.mxu0 0
      %1742 = vmatmul.mubr.bf16.gmra.mrb[0].mxu0 %v1671
      %v1743 = vpop.f32.mrb[0].mxu0
      %v1744 = vadd.f32 %v1647, %v1743
      %v1745 = vpop.f32.mrb[0].mxu0
      %v1746 = vpop.f32.mrb[0].mxu0
      %v1747 = vadd.f32 %v1647, %v1746
      %v1748 = vpop.f32.mrb[0].mxu0
      %1749 = vmatprep.mubr.bf16.mxu0 0
      %1750 = vmatmul.mubr.bf16.gmra.mrb[0].mxu0 %v1673
      %v1751 = vpop.f32.mrb[0].mxu0
      %v1752 = vadd.f32 %v1647, %v1751
      %v1753 = vpop.f32.mrb[0].mxu0
      %v1754 = vpop.f32.mrb[0].mxu0
      %v1755 = vadd.f32 %v1647, %v1754
      %v1756 = vpop.f32.mrb[0].mxu0
      %1757 = vmatprep.mubr.bf16.mxu0 0
      %1758 = vmatmul.mubr.bf16.gmra.mrb[0].mxu0 %v1675
      %v1759 = vpop.f32.mrb[0].mxu0
      %v1760 = vadd.f32 %v1647, %v1759
      %v1761 = vpop.f32.mrb[0].mxu0
      %v1762 = vpop.f32.mrb[0].mxu0
      %v1763 = vadd.f32 %v1647, %v1762
      %v1764 = vpop.f32.mrb[0].mxu0
      %1765 = vmatprep.mubr.bf16.mxu0 0
      %1766 = vmatmul.mubr.bf16.gmra.mrb[0].mxu0 %v1677
      %v1767 = vpop.f32.mrb[0].mxu0
      %v1768 = vadd.f32 %v1647, %v1767
      %v1769 = vpop.f32.mrb[0].mxu0
      %v1770 = vpop.f32.mrb[0].mxu0
      %v1771 = vadd.f32 %v1647, %v1770
      %v1772 = vpop.f32.mrb[0].mxu0
      %1773 = vmatprep.mubr.bf16.mxu0 0
      %1774 = vmatmul.mubr.bf16.gmra.mrb[0].mxu0 %v1679
      %v1775 = vpop.f32.mrb[0].mxu0
      %v1776 = vadd.f32 %v1647, %v1775
      %v1777 = vpop.f32.mrb[0].mxu0
      %v1778 = vpop.f32.mrb[0].mxu0
      %v1779 = vadd.f32 %v1647, %v1778
      %v1780 = vpop.f32.mrb[0].mxu0
      %1781 = vdwg.mxu0
      %v1782 = vxor.u32 %v1720, 2147483648
      %v1783 = vxor.u32 %v1723, 2147483648
      %v1784 = vxor.u32 %v1728, 2147483648
      %v1785 = vxor.u32 %v1731, 2147483648
      %v1786 = vxor.u32 %v1736, 2147483648
      %v1787 = vxor.u32 %v1739, 2147483648
      %v1788 = vxor.u32 %v1744, 2147483648
      %v1789 = vxor.u32 %v1747, 2147483648
      %v1790 = vxor.u32 %v1752, 2147483648
      %v1791 = vxor.u32 %v1755, 2147483648
      %v1792 = vxor.u32 %v1760, 2147483648
      %v1793 = vxor.u32 %v1763, 2147483648
      %v1794 = vxor.u32 %v1768, 2147483648
      %v1795 = vxor.u32 %v1771, 2147483648
      %v1796 = vxor.u32 %v1776, 2147483648
      %v1797 = vxor.u32 %v1779, 2147483648
      %v1798 = vmul.f32 %v1782, 1.442695
      %v1799 = vpow.pop %v1798
      %v1800 = vmul.f32 %v1783, 1.442695
      %v1801 = vpow.pop %v1800
      %v1802 = vmul.f32 %v1784, 1.442695
      %v1803 = vpow.pop %v1802
      %v1804 = vmul.f32 %v1785, 1.442695
      %v1805 = vpow.pop %v1804
      %v1806 = vmul.f32 %v1786, 1.442695
      %v1807 = vpow.pop %v1806
      %v1808 = vmul.f32 %v1787, 1.442695
      %v1809 = vpow.pop %v1808
      %v1810 = vmul.f32 %v1788, 1.442695
      %v1811 = vpow.pop %v1810
      %v1812 = vmul.f32 %v1789, 1.442695
      %v1813 = vpow.pop %v1812
      %v1814 = vmul.f32 %v1790, 1.442695
      %v1815 = vpow.pop %v1814
      %v1816 = vmul.f32 %v1791, 1.442695
      %v1817 = vpow.pop %v1816
      %v1818 = vmul.f32 %v1792, 1.442695
      %v1819 = vpow.pop %v1818
      %v1820 = vmul.f32 %v1793, 1.442695
      %v1821 = vpow.pop %v1820
      %v1822 = vmul.f32 %v1794, 1.442695
      %v1823 = vpow.pop %v1822
      %v1824 = vmul.f32 %v1795, 1.442695
      %v1825 = vpow.pop %v1824
      %v1826 = vmul.f32 %v1796, 1.442695
      %v1827 = vpow.pop %v1826
      %v1828 = vmul.f32 %v1797, 1.442695
      %v1829 = vpow.pop %v1828
      %v1830 = vadd.f32 %v1799, 1.0
      %v1831 = vadd.f32 %v1801, 1.0
      %v1832 = vadd.f32 %v1803, 1.0
      %v1833 = vadd.f32 %v1805, 1.0
      %v1834 = vadd.f32 %v1807, 1.0
      %v1835 = vadd.f32 %v1809, 1.0
      %v1836 = vadd.f32 %v1811, 1.0
      %v1837 = vadd.f32 %v1813, 1.0
      %v1838 = vadd.f32 %v1815, 1.0
      %v1839 = vadd.f32 %v1817, 1.0
      %v1840 = vadd.f32 %v1819, 1.0
      %v1841 = vadd.f32 %v1821, 1.0
      %v1842 = vadd.f32 %v1823, 1.0
      %v1843 = vadd.f32 %v1825, 1.0
      %v1844 = vadd.f32 %v1827, 1.0
      %v1845 = vadd.f32 %v1829, 1.0
      %v1846 = vrcp.pop %v1830
      %v1847 = vmul.f32 1.0, %v1846
      %v1848 = vrcp.pop %v1831
      %v1849 = vmul.f32 1.0, %v1848
      %v1850 = vrcp.pop %v1832
      %v1851 = vmul.f32 1.0, %v1850
      %v1852 = vrcp.pop %v1833
      %v1853 = vmul.f32 1.0, %v1852
      %v1854 = vrcp.pop %v1834
      %v1855 = vmul.f32 1.0, %v1854
      %v1856 = vrcp.pop %v1835
      %v1857 = vmul.f32 1.0, %v1856
      %v1858 = vrcp.pop %v1836
      %v1859 = vmul.f32 1.0, %v1858
      %v1860 = vrcp.pop %v1837
      %v1861 = vmul.f32 1.0, %v1860
      %v1862 = vrcp.pop %v1838
      %v1863 = vmul.f32 1.0, %v1862
      %v1864 = vrcp.pop %v1839
      %v1865 = vmul.f32 1.0, %v1864
      %v1866 = vrcp.pop %v1840
      %v1867 = vmul.f32 1.0, %v1866
      %v1868 = vrcp.pop %v1841
      %v1869 = vmul.f32 1.0, %v1868
      %v1870 = vrcp.pop %v1842
      %v1871 = vmul.f32 1.0, %v1870
      %v1872 = vrcp.pop %v1843
      %v1873 = vmul.f32 1.0, %v1872
      %v1874 = vrcp.pop %v1844
      %v1875 = vmul.f32 1.0, %v1874
      %v1876 = vrcp.pop %v1845
      %v1877 = vmul.f32 1.0, %v1876
      %v1878 = vmul.f32 %v1720, %v1847
      %v1879 = vmul.f32 %v1723, %v1849
      %v1880 = vmul.f32 %v1728, %v1851
      %v1881 = vmul.f32 %v1731, %v1853
      %v1882 = vmul.f32 %v1736, %v1855
      %v1883 = vmul.f32 %v1739, %v1857
      %v1884 = vmul.f32 %v1744, %v1859
      %v1885 = vmul.f32 %v1747, %v1861
      %v1886 = vmul.f32 %v1752, %v1863
      %v1887 = vmul.f32 %v1755, %v1865
      %v1888 = vmul.f32 %v1760, %v1867
      %v1889 = vmul.f32 %v1763, %v1869
      %v1890 = vmul.f32 %v1768, %v1871
      %v1891 = vmul.f32 %v1771, %v1873
      %v1892 = vmul.f32 %v1776, %v1875
      %v1893 = vmul.f32 %v1779, %v1877
      %v1894 = vpack.c.bf16 %v1879, %v1878
      %v1895 = vpack.c.bf16 %v1881, %v1880
      %v1896 = vpack.c.bf16 %v1883, %v1882
      %v1897 = vpack.c.bf16 %v1885, %v1884
      %v1898 = vpack.c.bf16 %v1887, %v1886
      %v1899 = vpack.c.bf16 %v1889, %v1888
      %v1900 = vpack.c.bf16 %v1891, %v1890
      %v1901 = vpack.c.bf16 %v1893, %v1892
      %v1910 = vunpack.c.l.b16 %v1894
      %v1911 = vunpack.c.h.b16 %v1894
      %v1912 = vunpack.c.l.b16 %v1895
      %v1913 = vunpack.c.h.b16 %v1895
      %v1914 = vunpack.c.l.b16 %v1896
      %v1915 = vunpack.c.h.b16 %v1896
      %v1916 = vunpack.c.l.b16 %v1897
      %v1917 = vunpack.c.h.b16 %v1897
      %v1918 = vunpack.c.l.b16 %v1898
      %v1919 = vunpack.c.h.b16 %v1898
      %v1920 = vunpack.c.l.b16 %v1899
      %v1921 = vunpack.c.h.b16 %v1899
      %v1922 = vunpack.c.l.b16 %v1900
      %v1923 = vunpack.c.h.b16 %v1900
      %v1924 = vunpack.c.l.b16 %v1901
      %v1925 = vunpack.c.h.b16 %v1901
      %v1926 = vpack.c.b16 %v1910, %v1910
      %v1927 = vpack.c.b16 %v1911, %v1911
      %v1928 = vpack.c.b16 %v1912, %v1912
      %v1929 = vpack.c.b16 %v1913, %v1913
      %v1930 = vpack.c.b16 %v1914, %v1914
      %v1931 = vpack.c.b16 %v1915, %v1915
      %v1932 = vpack.c.b16 %v1916, %v1916
      %v1933 = vpack.c.b16 %v1917, %v1917
      %v1934 = vpack.c.b16 %v1918, %v1918
      %v1935 = vpack.c.b16 %v1919, %v1919
      %v1936 = vpack.c.b16 %v1920, %v1920
      %v1937 = vpack.c.b16 %v1921, %v1921
      %v1938 = vpack.c.b16 %v1922, %v1922
      %v1939 = vpack.c.b16 %v1923, %v1923
      %v1940 = vpack.c.b16 %v1924, %v1924
      %v1941 = vpack.c.b16 %v1925, %v1925
      %1958 = vst [vmem:[%s192] sm:$0xf] %v1926
      %1959 = vst [vmem:[%s192 + $0x4] sm:$0xf] %v1927
      %1960 = vst [vmem:[%s192 + $0x8] sm:$0xf] %v1928
      %1961 = vst [vmem:[%s192 + $0xc] sm:$0xf] %v1929
      %1962 = vst [vmem:[%s192 + $0x10] sm:$0xf] %v1930
      %1963 = vst [vmem:[%s192 + $0x14] sm:$0xf] %v1931
      %1964 = vst [vmem:[%s192 + $0x18] sm:$0xf] %v1932
      %1965 = vst [vmem:[%s192 + $0x1c] sm:$0xf] %v1933
      %1966 = vst [vmem:[%s192 + $0x20] sm:$0xf] %v1934
      %1967 = vst [vmem:[%s192 + $0x24] sm:$0xf] %v1935
      %1968 = vst [vmem:[%s192 + $0x28] sm:$0xf] %v1936
      %1969 = vst [vmem:[%s192 + $0x2c] sm:$0xf] %v1937
      %1970 = vst [vmem:[%s192 + $0x30] sm:$0xf] %v1938
      %1971 = vst [vmem:[%s192 + $0x34] sm:$0xf] %v1939
      %1972 = vst [vmem:[%s192 + $0x38] sm:$0xf] %v1940
      %1973 = vst [vmem:[%s192 + $0x3c] sm:$0xf] %v1941
      %s1974 = smul.u32 16, %s19
      %p1975 = scmp.lt.s32.totalorder %s18, 1
      %s1976 = scalar_select %p1975, %s18, 1
      %p1977 = scmp.lt.s32.totalorder %s1974, 31
      %s1978 = scalar_select %p1977, %s1974, 31
      %s1979 = smul.addr %s1976, 32
      %s1980 = sadd.s32 %s1978, %s1979
      %s1981 = smul.addr %s1980, 4
      %s1982 = scalar_lea.vmem %s3, %s1981
      // Predicated region
      $region33: #{_conv_forward_impl.1} parent=31 // pred_check
        %p1983 = pneg %p114
      $region34: #{_conv_forward_impl.1} parent=31 // pred_check_branch
        %1985 = sbr.rel (%p1983) target = $region36
      $region35: #{_conv_forward_impl.1} parent=31 // pred_region
        %s1986 = smul.u32 16, %s19
      $region36: #{_conv_forward_impl.1} parent=31 // pred_fallthru
        _
    $region32: #{_conv_forward_impl.1} parent=5 // pred_fallthru
      _
    %p1987 = scmp.le.s32.totalorder 2, %s9
    // Predicated region
    $region37: #{_conv_forward_impl.1} parent=5 // pred_check
      %p1988 = pneg %p1987
    $region38: #{_conv_forward_impl.1} parent=5 // pred_check_branch
      %1990 = sbr.rel (%p1988) target = $region40
    $region39: #{_conv_forward_impl.1} parent=5 // pred_region
      %s1991 = ssub.s32 %s9, 2
      // Predicated region
      $region41: #{_conv_forward_impl.1} parent=39 // pred_check
        %p1992 = pneg %p120
      $region42: #{_conv_forward_impl.1} parent=39 // pred_check_branch
        %1994 = sbr.rel (%p1992) target = $region44
      $region43: #{_conv_forward_impl.1} parent=39 // pred_region
        %s1995 = smul.u32 16, %s21
        %p1996 = scmp.lt.s32.totalorder %s20, 1
        %s1997 = scalar_select %p1996, %s20, 1
        %p1998 = scmp.lt.s32.totalorder %s1995, 31
        %s1999 = scalar_select %p1998, %s1995, 31
        %s2000 = smul.addr %s1997, 32
        %s2001 = sadd.s32 %s1999, %s2000
        %s2002 = smul.addr %s2001, 4
        %s2003 = scalar_lea.vmem %s3, %s2002
      $region44: #{_conv_forward_impl.1} parent=39 // pred_fallthru
        _
    $region40: #{_conv_forward_impl.1} parent=5 // pred_fallthru
      _
  $region6: #{_conv_forward_impl.1} parent=0 // loop_footer
    %s13 = sadd.s32 1, %s9
  $region7: #{_conv_forward_impl.1} parent=0 // loop_footer_branch
    %8 = sbr.rel target = $region3
  $region8: #{_conv_forward_impl.1} parent=0 // loop_exit
    _

// kernel: _conv_forward_impl.1
$region0: #{_conv_forward_impl.1}
  #allocation0 [shape = 'u32[]', space=smem, size = 0x4, offset = 0x4, fixed_abs, tag = 'smem constant byte address 0x4 - core index']
  #allocation1 [shape = 'u32[144,128]{1,0:T(1,128)}', space=vmem, size = 0x12000, scoped, tag = 'internal scratch']
  %s0 = inlined_call_operand.vmem [shape: bf16[2,18,18,4], index: 0, kind: input, shape index: {}]
  %s1 = inlined_call_operand.vmem [shape: bf16[9,4,128], index: 1, kind: input, shape index: {}]
  %s2 = inlined_call_operand.vmem [shape: f32[1,128], index: 2, kind: input, shape index: {}]
  %s3 = inlined_call_operand.vmem [shape: bf16[2,256,128], index: 3, kind: output, shape index: {}]
  %s4 = sld [smem:[#allocation0]]
  $region45: #{_conv_forward_impl.1} parent=0
    _
  %s6 = ssub.s32 1, %s4
  %s7 = scalar_select 0, %s6, %s4
  loop: start=0, step=1, limit=6
  $region2: #{_conv_forward_impl.1} parent=0 // loop_pre_header
    _
  $region3: #{_conv_forward_impl.1} parent=0 // loop_header
    %s9 = sphi 0, %s13
    %p10 = scmp.ge.s32.totalorder %s9, 6
    %s16 = sphi 0, %s28
    %s17 = sphi 0, %s24
    %s18 = sphi 0, %s16
    %s19 = sphi 0, %s17
    %s20 = sphi 0, %s18
    %s21 = sphi 0, %s19
    %s31 = sphi 0, %s33
    %s34 = sphi 0, %s31
    %s35 = sphi 0, %s34
    %s51 = sphi 0, %s35
    %s55 = sphi 0, %s55
    %s57 = sphi 0, %s55
    %s58 = sphi 0, %s57
    %s72 = sphi 0, %s58
    %s76 = sphi 0, %s76
    %s78 = sphi 0, %s76
    %s79 = sphi 0, %s78
    %s93 = sphi 0, %s79
    %s101 = sphi 0, %s103
    %s104 = sphi 0, %s101
    %s105 = sphi 0, %s104
    %s121 = sphi 0, %s105
  $region4: #{_conv_forward_impl.1} parent=0 // loop_header_branch
    %12 = sbr.rel (%p10) target = $region8
  $region5: #{_conv_forward_impl.1} parent=0 // loop_body
    %s14 = ssub.s32 %s9, 1
    %s15 = ssub.s32 %s9, 2
    %s22 = sadd.s32 1, %s17
    %p23 = scmp.ge.s32.totalorder %s22, 2
    %s24 = scalar_select %p23, 0, %s22
    %s25 = sadd.s32 1, %s16
    %s26 = scalar_select %p23, %s25, %s16
    %p27 = scmp.ge.s32.totalorder %s26, 2
    %s28 = scalar_select %p27, 0, %s26
    %s29 = ssub.s32 %s16, %s28
    %p30 = scmp.eq.s32.totalorder %s29, 0
    %s32 = sadd.s32 %s31, 1
    %s33 = scalar_select %p30, %s31, %s32
    %p36 = pneg %p30
    %p37 = scmp.eq.s32.totalorder %s9, 3
    %p38 = por %p36, %p37
    %p39 = scmp.ne.s32.totalorder %s31, %s34
    %p40 = scmp.eq.s32.totalorder %s9, 0
    %p41 = por %p39, %p40
    %p42 = scmp.ne.s32.totalorder %s31, %s34
    %p43 = scmp.eq.s32.totalorder %s14, 3
    %p44 = por %p42, %p43
    %p45 = scmp.ne.s32.totalorder %s34, %s35
    %p46 = scmp.eq.s32.totalorder %s14, 0
    %p47 = por %p45, %p46
    %p48 = scmp.ne.s32.totalorder %s34, %s35
    %p49 = scmp.eq.s32.totalorder %s15, 3
    %p50 = por %p48, %p49
    %p52 = scmp.ne.s32.totalorder %s35, %s51
    %p53 = scmp.eq.s32.totalorder %s15, 0
    %p54 = por %p52, %p53
    %s56 = sadd.s32 %s55, 1
    %p59 = scmp.eq.s32.totalorder %s9, 3
    %p60 = scmp.ne.s32.totalorder %s55, %s57
    %p61 = scmp.eq.s32.totalorder %s9, 0
    %p62 = por %p60, %p61
    %p63 = scmp.ne.s32.totalorder %s55, %s57
    %p64 = scmp.eq.s32.totalorder %s14, 3
    %p65 = por %p63, %p64
    %p66 = scmp.ne.s32.totalorder %s57, %s58
    %p67 = scmp.eq.s32.totalorder %s14, 0
    %p68 = por %p66, %p67
    %p69 = scmp.ne.s32.totalorder %s57, %s58
    %p70 = scmp.eq.s32.totalorder %s15, 3
    %p71 = por %p69, %p70
    %p73 = scmp.ne.s32.totalorder %s58, %s72
    %p74 = scmp.eq.s32.totalorder %s15, 0
    %p75 = por %p73, %p74
    %s77 = sadd.s32 %s76, 1
    %p80 = scmp.eq.s32.totalorder %s9, 3
    %p81 = scmp.ne.s32.totalorder %s76, %s78
    %p82 = scmp.eq.s32.totalorder %s9, 0
    %p83 = por %p81, %p82
    %p84 = scmp.ne.s32.totalorder %s76, %s78
    %p85 = scmp.eq.s32.totalorder %s14, 3
    %p86 = por %p84, %p85
    %p87 = scmp.ne.s32.totalorder %s78, %s79
    %p88 = scmp.eq.s32.totalorder %s14, 0
    %p89 = por %p87, %p88
    %p90 = scmp.ne.s32.totalorder %s78, %s79
    %p91 = scmp.eq.s32.totalorder %s15, 3
    %p92 = por %p90, %p91
    %p94 = scmp.ne.s32.totalorder %s79, %s93
    %p95 = scmp.eq.s32.totalorder %s15, 0
    %p96 = por %p94, %p95
    %s97 = ssub.s32 %s16, %s28
    %s98 = ssub.s32 %s17, %s24
    %s99 = sor.u32 %s97, %s98
    %p100 = scmp.eq.s32.totalorder %s99, 0
    %s102 = sadd.s32 %s101, 1
    %s103 = scalar_select %p100, %s101, %s102
    %p106 = pneg %p100
    %p107 = scmp.eq.s32.totalorder %s9, 3
    %p108 = por %p106, %p107
    %p109 = scmp.ne.s32.totalorder %s101, %s104
    %p110 = scmp.eq.s32.totalorder %s9, 0
    %p111 = por %p109, %p110
    %p112 = scmp.ne.s32.totalorder %s101, %s104
    %p113 = scmp.eq.s32.totalorder %s14, 3
    %p114 = por %p112, %p113
    %p115 = scmp.ne.s32.totalorder %s104, %s105
    %p116 = scmp.eq.s32.totalorder %s14, 0
    %p117 = por %p115, %p116
    %p118 = scmp.ne.s32.totalorder %s104, %s105
    %p119 = scmp.eq.s32.totalorder %s15, 3
    %p120 = por %p118, %p119
    %p122 = scmp.ne.s32.totalorder %s105, %s121
    %p123 = scmp.eq.s32.totalorder %s15, 0
    %p124 = por %p122, %p123
    %p125 = scmp.le.s32.totalorder 1, %s9
    %p126 = scmp.lt.s32.totalorder %s9, 5
    %p127 = pnand %p125, %p126
    %p128 = pneg %p127
    // Predicated region
    $region9: #{_conv_forward_impl.1} parent=5 // pred_check
      _
    $region10: #{_conv_forward_impl.1} parent=5 // pred_check_branch
      %130 = sbr.rel (%p127) target = $region12
    $region11: #{_conv_forward_impl.1} parent=5 // pred_region
      %s131 = ssub.s32 %s9, 1
      // Predicated region
      $region13: #{_conv_forward_impl.1} parent=11 // pred_check
        %p132 = pneg %p68
      $region14: #{_conv_forward_impl.1} parent=11 // pred_check_branch
        %134 = sbr.rel (%p132) target = $region16
      $region15: #{_conv_forward_impl.1} parent=11 // pred_region
        _
      $region16: #{_conv_forward_impl.1} parent=11 // pred_fallthru
        _
      // Predicated region
      $region17: #{_conv_forward_impl.1} parent=11 // pred_check
        %p135 = pneg %p89
      $region18: #{_conv_forward_impl.1} parent=11 // pred_check_branch
        %137 = sbr.rel (%p135) target = $region20
      $region19: #{_conv_forward_impl.1} parent=11 // pred_region
        _
      $region20: #{_conv_forward_impl.1} parent=11 // pred_fallthru
        _
    $region12: #{_conv_forward_impl.1} parent=5 // pred_fallthru
      _
    %p138 = scmp.lt.s32.totalorder %s9, 4
    // Predicated region
    $region21: #{_conv_forward_impl.1} parent=5 // pred_check
      %p139 = pneg %p138
    $region22: #{_conv_forward_impl.1} parent=5 // pred_check_branch
      %141 = sbr.rel (%p139) target = $region24
    $region23: #{_conv_forward_impl.1} parent=5 // pred_region
      // Predicated region
      $region25: #{_conv_forward_impl.1} parent=23 // pred_check
        %p142 = pneg %p41
      $region26: #{_conv_forward_impl.1} parent=23 // pred_check_branch
        %144 = sbr.rel (%p142) target = $region28
      $region27: #{_conv_forward_impl.1} parent=23 // pred_region
        %p145 = scmp.lt.s32.totalorder %s16, 1
        %s146 = scalar_select %p145, %s16, 1
        %s147 = smul.addr %s146, 54
        %s148 = smul.addr %s147, 4
        %s149 = scalar_lea.vmem %s0, %s148
      $region28: #{_conv_forward_impl.1} parent=23 // pred_fallthru
        _
    $region24: #{_conv_forward_impl.1} parent=5 // pred_fallthru
      _
    %p150 = scmp.le.s32.totalorder 1, %s9
    %p151 = scmp.lt.s32.totalorder %s9, 5
    %p152 = pnand %p150, %p151
    %p153 = pneg %p152
    // Predicated region
    $region29: #{_conv_forward_impl.1} parent=5 // pred_check
      _
    $region30: #{_conv_forward_impl.1} parent=5 // pred_check_branch
      %155 = sbr.rel (%p152) target = $region32
    $region31: #{_conv_forward_impl.1} parent=5 // pred_region
      %s156 = ssub.s32 %s9, 1
      %p157 = scmp.lt.s32.totalorder %s18, 1
      %s158 = scalar_select %p157, %s18, 1
      %s159 = smul.addr %s158, 54
      %s160 = smul.addr %s159, 4
      %s161 = scalar_lea.vmem %s0, %s160
      %p162 = pneg %p47
      %p163 = pneg %p44
      %p164 = pneg %p68
      %p165 = pneg %p65
      %p166 = pneg %p89
      %p167 = pneg %p86
      %p168 = pneg %p117
      %p169 = pneg %p114
      %s170 = smul.u32 16, %s19
      %p171 = scmp.lt.s32.totalorder %s18, 1
      %s172 = scalar_select %p171, %s18, 1
      %p173 = scmp.lt.s32.totalorder %s170, 31
      %s174 = scalar_select %p173, %s170, 31
      %s175 = smul.addr %s172, 32
      %s176 = sadd.s32 %s174, %s175
      %s177 = smul.addr %s176, 4
      %s178 = scalar_lea.vmem %s3, %s177
      %p179 = scmp.lt.s32.totalorder %s18, 1
      %s180 = scalar_select %p179, %s18, 1
      %s181 = smul.addr %s180, 54
      %s182 = smul.addr %s181, 4
      %s183 = scalar_lea.vmem %s0, %s182
      %s184 = smul.u32 16, %s19
      %p185 = scmp.lt.s32.totalorder %s18, 1
      %s186 = scalar_select %p185, %s18, 1
      %p187 = scmp.lt.s32.totalorder %s184, 31
      %s188 = scalar_select %p187, %s184, 31
      %s189 = smul.addr %s186, 32
      %s190 = sadd.s32 %s188, %s189
      %s191 = smul.addr %s190, 4
      %s192 = scalar_lea.vmem %s3, %s191
      %s193 = smul.u32 16, %s19
      %s195 = smul.u32 %s19, 8
      %s196 = smul.u32 %s195, 3
      %s197 = smul.addr %s196, 4
      %s198 = scalar_lea.vmem %s183, %s197
      %v199 = vld [vmem:[%s198] sm:$0xf]
      %v200 = vld [vmem:[%s198 + $0x4] sm:$0xf]
      %v201 = vld [vmem:[%s198 + $0xc] sm:$0xf]
      %v202 = vld [vmem:[%s198 + $0x10] sm:$0xf]
      %v203 = vld [vmem:[%s198 + $0x18] sm:$0xf]
      %v204 = vld [vmem:[%s198 + $0x1c] sm:$0xf]
      %v205 = vld [vmem:[%s198 + $0x24] sm:$0xf]
      %v206 = vld [vmem:[%s198 + $0x28] sm:$0xf]
      %v207 = vld [vmem:[%s198 + $0x30] sm:$0xf]
      %v208 = vld [vmem:[%s198 + $0x34] sm:$0xf]
      %v209 = vld [vmem:[%s198 + $0x3c] sm:$0xf]
      %v210 = vld [vmem:[%s198 + $0x40] sm:$0xf]
      %v211 = vld [vmem:[%s198 + $0x48] sm:$0xf]
      %v212 = vld [vmem:[%s198 + $0x4c] sm:$0xf]
      %v213 = vld [vmem:[%s198 + $0x54] sm:$0xf]
      %v214 = vld [vmem:[%s198 + $0x58] sm:$0xf]
      %v215 = vld [vmem:[%s1] sm:$0x3]
      %v216 = vld [vmem:[%s198 + $0x8] sm:$0x1]
      %v217 = vld [vmem:[%s198 + $0x14] sm:$0x1]
      %v218 = vld [vmem:[%s198 + $0x20] sm:$0x1]
      %v219 = vld [vmem:[%s198 + $0x2c] sm:$0x1]
      %v220 = vld [vmem:[%s198 + $0x38] sm:$0x1]
      %v221 = vld [vmem:[%s198 + $0x44] sm:$0x1]
      %v222 = vld [vmem:[%s198 + $0x50] sm:$0x1]
      %v223 = vld [vmem:[%s198 + $0x5c] sm:$0x1]
      %vm224 = vsmask.f32 3328
      %vm225 = vsmask.f32 7440
      %vm226 = vmor %vm224, %vm225
      %v228 = vshrl.u32 %v199, 16
      %v230 = vrot.slane %v228, 4
      %v231 = vshll.u32 %v199, 16
      %v233 = vrot.slane %v231, 5
      %v234 = vor.u32 %v230, %v233
      %v235 = vrot.slane %v234, 4
      %v237 = vshll.u32 %v200, 16
      %v239 = vrot.slane %v237, 5
      %v240 = vsel %vm226, %v235, %v239
      %v241 = vshrl.u32 %v200, 16
      %v243 = vrot.slane %v241, 4
      %v244 = vor.u32 %v243, %v239
      %v245 = vrot.slane %v244, 4
      %v247 = vshll.u32 %v216, 16
      %v249 = vrot.slane %v247, 5
      %v250 = vsel %vm226, %v245, %v249
      %v252 = vshrl.u32 %v201, 16
      %v254 = vrot.slane %v252, 4
      %v255 = vshll.u32 %v201, 16
      %v257 = vrot.slane %v255, 5
      %v258 = vor.u32 %v254, %v257
      %v259 = vrot.slane %v258, 4
      %v261 = vshll.u32 %v202, 16
      %v263 = vrot.slane %v261, 5
      %v264 = vsel %vm226, %v259, %v263
      %v265 = vshrl.u32 %v202, 16
      %v267 = vrot.slane %v265, 4
      %v268 = vor.u32 %v267, %v263
      %v269 = vrot.slane %v268, 4
      %v271 = vshll.u32 %v217, 16
      %v273 = vrot.slane %v271, 5
      %v274 = vsel %vm226, %v269, %v273
      %v276 = vshrl.u32 %v203, 16
      %v278 = vrot.slane %v276, 4
      %v279 = vshll.u32 %v203, 16
      %v281 = vrot.slane %v279, 5
      %v282 = vor.u32 %v278, %v281
      %v283 = vrot.slane %v282, 4
      %v285 = vshll.u32 %v204, 16
      %v287 = vrot.slane %v285, 5
      %v288 = vsel %vm226, %v283, %v287
      %v289 = vshrl.u32 %v204, 16
      %v291 = vrot.slane %v289, 4
      %v292 = vor.u32 %v291, %v287
      %v293 = vrot.slane %v292, 4
      %v295 = vshll.u32 %v218, 16
      %v297 = vrot.slane %v295, 5
      %v298 = vsel %vm226, %v293, %v297
      %v300 = vshrl.u32 %v205, 16
      %v302 = vrot.slane %v300, 4
      %v303 = vshll.u32 %v205, 16
      %v305 = vrot.slane %v303, 5
      %v306 = vor.u32 %v302, %v305
      %v307 = vrot.slane %v306, 4
      %v309 = vshll.u32 %v206, 16
      %v311 = vrot.slane %v309, 5
      %v312 = vsel %vm226, %v307, %v311
      %v313 = vshrl.u32 %v206, 16
      %v315 = vrot.slane %v313, 4
      %v316 = vor.u32 %v315, %v311
      %v317 = vrot.slane %v316, 4
      %v319 = vshll.u32 %v219, 16
      %v321 = vrot.slane %v319, 5
      %v322 = vsel %vm226, %v317, %v321
      %v324 = vshrl.u32 %v207, 16
      %v326 = vrot.slane %v324, 4
      %v327 = vshll.u32 %v207, 16
      %v329 = vrot.slane %v327, 5
      %v330 = vor.u32 %v326, %v329
      %v331 = vrot.slane %v330, 4
      %v333 = vshll.u32 %v208, 16
      %v335 = vrot.slane %v333, 5
      %v336 = vsel %vm226, %v331, %v335
      %v337 = vshrl.u32 %v208, 16
      %v339 = vrot.slane %v337, 4
      %v340 = vor.u32 %v339, %v335
      %v341 = vrot.slane %v340, 4
      %v343 = vshll.u32 %v220, 16
      %v345 = vrot.slane %v343, 5
      %v346 = vsel %vm226, %v341, %v345
      %v348 = vshrl.u32 %v209, 16
      %v350 = vrot.slane %v348, 4
      %v351 = vshll.u32 %v209, 16
      %v353 = vrot.slane %v351, 5
      %v354 = vor.u32 %v350, %v353
      %v355 = vrot.slane %v354, 4
      %v357 = vshll.u32 %v210, 16
      %v359 = vrot.slane %v357, 5
      %v360 = vsel %vm226, %v355, %v359
      %v361 = vshrl.u32 %v210, 16
      %v363 = vrot.slane %v361, 4
      %v364 = vor.u32 %v363, %v359
      %v365 = vrot.slane %v364, 4
      %v367 = vshll.u32 %v221, 16
      %v369 = vrot.slane %v367, 5
      %v370 = vsel %vm226, %v365, %v369
      %v372 = vshrl.u32 %v211, 16
      %v374 = vrot.slane %v372, 4
      %v375 = vshll.u32 %v211, 16
      %v377 = vrot.slane %v375, 5
      %v378 = vor.u32 %v374, %v377
      %v379 = vrot.slane %v378, 4
      %v381 = vshll.u32 %v212, 16
      %v383 = vrot.slane %v381, 5
      %v384 = vsel %vm226, %v379, %v383
      %v385 = vshrl.u32 %v212, 16
      %v387 = vrot.slane %v385, 4
      %v388 = vor.u32 %v387, %v383
      %v389 = vrot.slane %v388, 4
      %v391 = vshll.u32 %v222, 16
      %v393 = vrot.slane %v391, 5
      %v394 = vsel %vm226, %v389, %v393
      %v396 = vshrl.u32 %v213, 16
      %v398 = vrot.slane %v396, 4
      %v399 = vshll.u32 %v213, 16
      %v401 = vrot.slane %v399, 5
      %v402 = vor.u32 %v398, %v401
      %v403 = vrot.slane %v402, 4
      %v405 = vshll.u32 %v214, 16
      %v407 = vrot.slane %v405, 5
      %v408 = vsel %vm226, %v403, %v407
      %v409 = vshrl.u32 %v214, 16
      %v411 = vrot.slane %v409, 4
      %v412 = vor.u32 %v411, %v407
      %v413 = vrot.slane %v412, 4
      %v415 = vshll.u32 %v223, 16
      %v417 = vrot.slane %v415, 5
      %v418 = vsel %vm226, %v413, %v417
      %s419 = scalar_lea.vmem %s1, 2
      %v420 = vld [vmem:[%s419] sm:$0x3]
      %v421 = vunpack.c.l.b16 %v240
      %v422 = vunpack.c.l.b16 %v250
      %v423 = vunpack.c.l.b16 %v264
      %v424 = vunpack.c.l.b16 %v274
      %v425 = vunpack.c.l.b16 %v288
      %v426 = vunpack.c.l.b16 %v298
      %v427 = vunpack.c.l.b16 %v312
      %v428 = vunpack.c.l.b16 %v322
      %v429 = vunpack.c.l.b16 %v336
      %v430 = vunpack.c.l.b16 %v346
      %v431 = vunpack.c.l.b16 %v360
      %v432 = vunpack.c.l.b16 %v370
      %v433 = vunpack.c.l.b16 %v384
      %v434 = vunpack.c.l.b16 %v394
      %v435 = vunpack.c.l.b16 %v408
      %v436 = vunpack.c.l.b16 %v418
      %v437 = vpack.c.b16 %v422, %v421
      %v438 = vpack.c.b16 %v424, %v423
      %v439 = vpack.c.b16 %v426, %v425
      %v440 = vpack.c.b16 %v428, %v427
      %v441 = vpack.c.b16 %v430, %v429
      %v442 = vpack.c.b16 %v432, %v431
      %v443 = vpack.c.b16 %v434, %v433
      %v444 = vpack.c.b16 %v436, %v435
      %vm445 = vcmask 31744
      %v447 = vsel %vm445, %v437, 0
      %v450 = vsel %vm445, %v438, 0
      %v453 = vsel %vm445, %v439, 0
      %v456 = vsel %vm445, %v440, 0
      %v459 = vsel %vm445, %v441, 0
      %v462 = vsel %vm445, %v442, 0
      %v465 = vsel %vm445, %v443, 0
      %v468 = vsel %vm445, %v444, 0
      %vm470 = vcmask 1041408
      %v472 = vsel %vm470, %v420, 0
      %474 = vmatprep.subr.bf16.mxu0 0
      %475 = vmatpush1.bf16.msra.mxu0 %v472
      %476 = vmatprep.subr.bf16.mxu0 0
      %477 = vmatpush1.bf16.msra.mxu0 0
      %478 = vmatprep.subr.bf16.mxu0 0
      %479 = vmatpush1.bf16.msra.mxu0 0
      %480 = vmatprep.subr.bf16.mxu0 0
      %481 = vmatpush1.bf16.msra.mxu0 0
      %482 = vmatprep.subr.bf16.mxu0 0
      %483 = vmatpush1.bf16.msra.mxu0 0
      %484 = vmatprep.subr.bf16.mxu0 0
      %485 = vmatpush1.bf16.msra.mxu0 0
      %486 = vmatprep.subr.bf16.mxu0 0
      %487 = vmatpush1.bf16.msra.mxu0 0
      %488 = vmatprep.subr.bf16.mxu0 0
      %489 = vmatpush1.bf16.msra.mxu0 0
      %490 = vmatprep.subr.bf16.mxu0 0
      %491 = vmatpush1.bf16.msra.mxu0 0
      %492 = vmatprep.subr.bf16.mxu0 0
      %493 = vmatpush1.bf16.msra.mxu0 0
      %494 = vmatprep.subr.bf16.mxu0 0
      %495 = vmatpush1.bf16.msra.mxu0 0
      %496 = vmatprep.subr.bf16.mxu0 0
      %497 = vmatpush1.bf16.msra.mxu0 0
      %498 = vmatprep.subr.bf16.mxu0 0
      %499 = vmatpush1.bf16.msra.mxu0 0
      %500 = vmatprep.subr.bf16.mxu0 0
      %501 = vmatpush1.bf16.msra.mxu0 0
      %502 = vmatprep.subr.bf16.mxu0 0
      %503 = vmatpush1.bf16.msra.mxu0 0
      %504 = vmatprep.subr.bf16.mxu0 0
      %505 = vmatpush1.bf16.msra.mxu0 0
      %506 = vmatprep.mubr.bf16.mxu0 0
      %507 = vmatmul.mubr.bf16.gmra.mrb[0].mxu0 %v447
      %v508 = vpop.f32.mrb[0].mxu0
      %v509 = vadd.f32 0.0, %v508
      %v510 = vpop.f32.mrb[0].mxu0
      %v511 = vpop.f32.mrb[0].mxu0
      %v512 = vadd.f32 0.0, %v511
      %v513 = vpop.f32.mrb[0].mxu0
      %514 = vmatprep.mubr.bf16.mxu0 0
      %515 = vmatmul.mubr.bf16.gmra.mrb[0].mxu0 %v450
      %v516 = vpop.f32.mrb[0].mxu0
      %v517 = vadd.f32 0.0, %v516
      %v518 = vpop.f32.mrb[0].mxu0
      %v519 = vpop.f32.mrb[0].mxu0
      %v520 = vadd.f32 0.0, %v519
      %v521 = vpop.f32.mrb[0].mxu0
      %522 = vmatprep.mubr.bf16.mxu0 0
      %523 = vmatmul.mubr.bf16.gmra.mrb[0].mxu0 %v453
      %v524 = vpop.f32.mrb[0].mxu0
      %v525 = vadd.f32 0.0, %v524
      %v526 = vpop.f32.mrb[0].mxu0
      %v527 = vpop.f32.mrb[0].mxu0
      %v528 = vadd.f32 0.0, %v527
      %v529 = vpop.f32.mrb[0].mxu0
      %530 = vmatprep.mubr.bf16.mxu0 0
      %531 = vmatmul.mubr.bf16.gmra.mrb[0].mxu0 %v456
      %v532 = vpop.f32.mrb[0].mxu0
      %v533 = vadd.f32 0.0, %v532
      %v534 = vpop.f32.mrb[0].mxu0
      %v535 = vpop.f32.mrb[0].mxu0
      %v536 = vadd.f32 0.0, %v535
      %v537 = vpop.f32.mrb[0].mxu0
      %538 = vmatprep.mubr.bf16.mxu0 0
      %539 = vmatmul.mubr.bf16.gmra.mrb[0].mxu0 %v459
      %v540 = vpop.f32.mrb[0].mxu0
      %v541 = vadd.f32 0.0, %v540
      %v542 = vpop.f32.mrb[0].mxu0
      %v543 = vpop.f32.mrb[0].mxu0
      %v544 = vadd.f32 0.0, %v543
      %v545 = vpop.f32.mrb[0].mxu0
      %546 = vmatprep.mubr.bf16.mxu0 0
      %547 = vmatmul.mubr.bf16.gmra.mrb[0].mxu0 %v462
      %v548 = vpop.f32.mrb[0].mxu0
      %v549 = vadd.f32 0.0, %v548
      %v550 = vpop.f32.mrb[0].mxu0
      %v551 = vpop.f32.mrb[0].mxu0
      %v552 = vadd.f32 0.0, %v551
      %v553 = vpop.f32.mrb[0].mxu0
      %554 = vmatprep.mubr.bf16.mxu0 0
      %555 = vmatmul.mubr.bf16.gmra.mrb[0].mxu0 %v465
      %v556 = vpop.f32.mrb[0].mxu0
      %v557 = vadd.f32 0.0, %v556
      %v558 = vpop.f32.mrb[0].mxu0
      %v559 = vpop.f32.mrb[0].mxu0
      %v560 = vadd.f32 0.0, %v559
      %v561 = vpop.f32.mrb[0].mxu0
      %562 = vmatprep.mubr.bf16.mxu0 0
      %563 = vmatmul.mubr.bf16.gmra.mrb[0].mxu0 %v468
      %v564 = vpop.f32.mrb[0].mxu0
      %v565 = vadd.f32 0.0, %v564
      %v566 = vpop.f32.mrb[0].mxu0
      %v567 = vpop.f32.mrb[0].mxu0
      %v568 = vadd.f32 0.0, %v567
      %v569 = vpop.f32.mrb[0].mxu0
      %570 = vdwg.mxu0
      %v587 = vunpack.c.l.b16 %v199
      %v588 = vunpack.c.l.b16 %v200
      %v589 = vunpack.c.l.b16 %v201
      %v590 = vunpack.c.l.b16 %v202
      %v591 = vunpack.c.l.b16 %v203
      %v592 = vunpack.c.l.b16 %v204
      %v593 = vunpack.c.l.b16 %v205
      %v594 = vunpack.c.l.b16 %v206
      %v595 = vunpack.c.l.b16 %v207
      %v596 = vunpack.c.l.b16 %v208
      %v597 = vunpack.c.l.b16 %v209
      %v598 = vunpack.c.l.b16 %v210
      %v599 = vunpack.c.l.b16 %v211
      %v600 = vunpack.c.l.b16 %v212
      %v601 = vunpack.c.l.b16 %v213
      %v602 = vunpack.c.l.b16 %v214
      %v603 = vpack.c.b16 %v588, %v587
      %v604 = vpack.c.b16 %v590, %v589
      %v605 = vpack.c.b16 %v592, %v591
      %v606 = vpack.c.b16 %v594, %v593
      %v607 = vpack.c.b16 %v596, %v595
      %v608 = vpack.c.b16 %v598, %v597
      %v609 = vpack.c.b16 %v600, %v599
      %v610 = vpack.c.b16 %v602, %v601
      %v612 = vsel %vm445, %v603, 0
      %v615 = vsel %vm445, %v604, 0
      %v618 = vsel %vm445, %v605, 0
      %v621 = vsel %vm445, %v606, 0
      %v624 = vsel %vm445, %v607, 0
      %v627 = vsel %vm445, %v608, 0
      %v630 = vsel %vm445, %v609, 0
      %v633 = vsel %vm445, %v610, 0
      %v636 = vsel %vm470, %v215, 0
      %638 = vmatprep.subr.bf16.mxu0 0
      %639 = vmatpush1.bf16.msra.mxu0 %v636
      %640 = vmatprep.subr.bf16.mxu0 0
      %641 = vmatpush1.bf16.msra.mxu0 0
      %642 = vmatprep.subr.bf16.mxu0 0
      %643 = vmatpush1.bf16.msra.mxu0 0
      %644 = vmatprep.subr.bf16.mxu0 0
      %645 = vmatpush1.bf16.msra.mxu0 0
      %646 = vmatprep.subr.bf16.mxu0 0
      %647 = vmatpush1.bf16.msra.mxu0 0
      %648 = vmatprep.subr.bf16.mxu0 0
      %649 = vmatpush1.bf16.msra.mxu0 0
      %650 = vmatprep.subr.bf16.mxu0 0
      %651 = vmatpush1.bf16.msra.mxu0 0
      %652 = vmatprep.subr.bf16.mxu0 0
      %653 = vmatpush1.bf16.msra.mxu0 0
      %654 = vmatprep.subr.bf16.mxu0 0
      %655 = vmatpush1.bf16.msra.mxu0 0
      %656 = vmatprep.subr.bf16.mxu0 0
      %657 = vmatpush1.bf16.msra.mxu0 0
      %658 = vmatprep.subr.bf16.mxu0 0
      %659 = vmatpush1.bf16.msra.mxu0 0
      %660 = vmatprep.subr.bf16.mxu0 0
      %661 = vmatpush1.bf16.msra.mxu0 0
      %662 = vmatprep.subr.bf16.mxu0 0
      %663 = vmatpush1.bf16.msra.mxu0 0
      %664 = vmatprep.subr.bf16.mxu0 0
      %665 = vmatpush1.bf16.msra.mxu0 0
      %666 = vmatprep.subr.bf16.mxu0 0
      %667 = vmatpush1.bf16.msra.mxu0 0
      %668 = vmatprep.subr.bf16.mxu0 0
      %669 = vmatpush1.bf16.msra.mxu0 0
      %670 = vmatprep.mubr.bf16.mxu0 0
      %671 = vmatmul.mubr.bf16.gmra.mrb[0].mxu0 %v612
      %v672 = vpop.f32.mrb[0].mxu0
      %v673 = vadd.f32 %v509, %v672
      %v674 = vpop.f32.mrb[0].mxu0
      %v675 = vpop.f32.mrb[0].mxu0
      %v676 = vadd.f32 %v512, %v675
      %v677 = vpop.f32.mrb[0].mxu0
      %678 = vmatprep.mubr.bf16.mxu0 0
      %679 = vmatmul.mubr.bf16.gmra.mrb[0].mxu0 %v615
      %v680 = vpop.f32.mrb[0].mxu0
      %v681 = vadd.f32 %v517, %v680
      %v682 = vpop.f32.mrb[0].mxu0
      %v683 = vpop.f32.mrb[0].mxu0
      %v684 = vadd.f32 %v520, %v683
      %v685 = vpop.f32.mrb[0].mxu0
      %686 = vmatprep.mubr.bf16.mxu0 0
      %687 = vmatmul.mubr.bf16.gmra.mrb[0].mxu0 %v618
      %v688 = vpop.f32.mrb[0].mxu0
      %v689 = vadd.f32 %v525, %v688
      %v690 = vpop.f32.mrb[0].mxu0
      %v691 = vpop.f32.mrb[0].mxu0
      %v692 = vadd.f32 %v528, %v691
      %v693 = vpop.f32.mrb[0].mxu0
      %694 = vmatprep.mubr.bf16.mxu0 0
      %695 = vmatmul.mubr.bf16.gmra.mrb[0].mxu0 %v621
      %v696 = vpop.f32.mrb[0].mxu0
      %v697 = vadd.f32 %v533, %v696
      %v698 = vpop.f32.mrb[0].mxu0
      %v699 = vpop.f32.mrb[0].mxu0
      %v700 = vadd.f32 %v536, %v699
      %v701 = vpop.f32.mrb[0].mxu0
      %702 = vmatprep.mubr.bf16.mxu0 0
      %703 = vmatmul.mubr.bf16.gmra.mrb[0].mxu0 %v624
      %v704 = vpop.f32.mrb[0].mxu0
      %v705 = vadd.f32 %v541, %v704
      %v706 = vpop.f32.mrb[0].mxu0
      %v707 = vpop.f32.mrb[0].mxu0
      %v708 = vadd.f32 %v544, %v707
      %v709 = vpop.f32.mrb[0].mxu0
      %710 = vmatprep.mubr.bf16.mxu0 0
      %711 = vmatmul.mubr.bf16.gmra.mrb[0].mxu0 %v627
      %v712 = vpop.f32.mrb[0].mxu0
      %v713 = vadd.f32 %v549, %v712
      %v714 = vpop.f32.mrb[0].mxu0
      %v715 = vpop.f32.mrb[0].mxu0
      %v716 = vadd.f32 %v552, %v715
      %v717 = vpop.f32.mrb[0].mxu0
      %718 = vmatprep.mubr.bf16.mxu0 0
      %719 = vmatmul.mubr.bf16.gmra.mrb[0].mxu0 %v630
      %v720 = vpop.f32.mrb[0].mxu0
      %v721 = vadd.f32 %v557, %v720
      %v722 = vpop.f32.mrb[0].mxu0
      %v723 = vpop.f32.mrb[0].mxu0
      %v724 = vadd.f32 %v560, %v723
      %v725 = vpop.f32.mrb[0].mxu0
      %726 = vmatprep.mubr.bf16.mxu0 0
      %727 = vmatmul.mubr.bf16.gmra.mrb[0].mxu0 %v633
      %v728 = vpop.f32.mrb[0].mxu0
      %v729 = vadd.f32 %v565, %v728
      %v730 = vpop.f32.mrb[0].mxu0
      %v731 = vpop.f32.mrb[0].mxu0
      %v732 = vadd.f32 %v568, %v731
      %v733 = vpop.f32.mrb[0].mxu0
      %734 = vdwg.mxu0
      %v735 = vld [vmem:[%s198] sm:$0xe]
      %v736 = vld [vmem:[%s198 + $0xc] sm:$0xe]
      %v737 = vld [vmem:[%s198 + $0x18] sm:$0xe]
      %v738 = vld [vmem:[%s198 + $0x24] sm:$0xe]
      %v739 = vld [vmem:[%s198 + $0x30] sm:$0xe]
      %v740 = vld [vmem:[%s198 + $0x3c] sm:$0xe]
      %v741 = vld [vmem:[%s198 + $0x48] sm:$0xe]
      %v742 = vld [vmem:[%s198 + $0x54] sm:$0xe]
      %vm759 = vcmask 1042432
      %vm760 = vcmask 1046532
      %vm761 = vmor %vm759, %vm760
      %v762 = vrot.slane %v735, 5
      %v763 = vrot.slane %v762, 4
      %v764 = vrot.slane %v200, 5
      %v765 = vsel %vm761, %v763, %v764
      %v766 = vrot.slane %v764, 4
      %v767 = vrot.slane %v216, 5
      %v768 = vsel %vm761, %v766, %v767
      %v769 = vrot.slane %v736, 5
      %v770 = vrot.slane %v769, 4
      %v771 = vrot.slane %v202, 5
      %v772 = vsel %vm761, %v770, %v771
      %v773 = vrot.slane %v771, 4
      %v774 = vrot.slane %v217, 5
      %v775 = vsel %vm761, %v773, %v774
      %v776 = vrot.slane %v737, 5
      %v777 = vrot.slane %v776, 4
      %v778 = vrot.slane %v204, 5
      %v779 = vsel %vm761, %v777, %v778
      %v780 = vrot.slane %v778, 4
      %v781 = vrot.slane %v218, 5
      %v782 = vsel %vm761, %v780, %v781
      %v783 = vrot.slane %v738, 5
      %v784 = vrot.slane %v783, 4
      %v785 = vrot.slane %v206, 5
      %v786 = vsel %vm761, %v784, %v785
      %v787 = vrot.slane %v785, 4
      %v788 = vrot.slane %v219, 5
      %v789 = vsel %vm761, %v787, %v788
      %v790 = vrot.slane %v739, 5
      %v791 = vrot.slane %v790, 4
      %v792 = vrot.slane %v208, 5
      %v793 = vsel %vm761, %v791, %v792
      %v794 = vrot.slane %v792, 4
      %v795 = vrot.slane %v220, 5
      %v796 = vsel %vm761, %v794, %v795
      %v797 = vrot.slane %v740, 5
      %v798 = vrot.slane %v797, 4
      %v799 = vrot.slane %v210, 5
      %v800 = vsel %vm761, %v798, %v799
      %v801 = vrot.slane %v799, 4
      %v802 = vrot.slane %v221, 5
      %v803 = vsel %vm761, %v801, %v802
      %v804 = vrot.slane %v741, 5
      %v805 = vrot.slane %v804, 4
      %v806 = vrot.slane %v212, 5
      %v807 = vsel %vm761, %v805, %v806
      %v808 = vrot.slane %v806, 4
      %v809 = vrot.slane %v222, 5
      %v810 = vsel %vm761, %v808, %v809
      %v811 = vrot.slane %v742, 5
      %v812 = vrot.slane %v811, 4
      %v813 = vrot.slane %v214, 5
      %v814 = vsel %vm761, %v812, %v813
      %v815 = vrot.slane %v813, 4
      %v816 = vrot.slane %v223, 5
      %v817 = vsel %vm761, %v815, %v816
      %s818 = scalar_lea.vmem %s1, 4
      %v819 = vld [vmem:[%s818] sm:$0x3]
      %v820 = vunpack.c.l.b16 %v765
      %v821 = vunpack.c.l.b16 %v768
      %v822 = vunpack.c.l.b16 %v772
      %v823 = vunpack.c.l.b16 %v775
      %v824 = vunpack.c.l.b16 %v779
      %v825 = vunpack.c.l.b16 %v782
      %v826 = vunpack.c.l.b16 %v786
      %v827 = vunpack.c.l.b16 %v789
      %v828 = vunpack.c.l.b16 %v793
      %v829 = vunpack.c.l.b16 %v796
      %v830 = vunpack.c.l.b16 %v800
      %v831 = vunpack.c.l.b16 %v803
      %v832 = vunpack.c.l.b16 %v807
      %v833 = vunpack.c.l.b16 %v810
      %v834 = vunpack.c.l.b16 %v814
      %v835 = vunpack.c.l.b16 %v817
      %v836 = vpack.c.b16 %v821, %v820
      %v837 = vpack.c.b16 %v823, %v822
      %v838 = vpack.c.b16 %v825, %v824
      %v839 = vpack.c.b16 %v827, %v826
      %v840 = vpack.c.b16 %v829, %v828
      %v841 = vpack.c.b16 %v831, %v830
      %v842 = vpack.c.b16 %v833, %v832
      %v843 = vpack.c.b16 %v835, %v834
      %v845 = vsel %vm445, %v836, 0
      %v848 = vsel %vm445, %v837, 0
      %v851 = vsel %vm445, %v838, 0
      %v854 = vsel %vm445, %v839, 0
      %v857 = vsel %vm445, %v840, 0
      %v860 = vsel %vm445, %v841, 0
      %v863 = vsel %vm445, %v842, 0
      %v866 = vsel %vm445, %v843, 0
      %v869 = vsel %vm470, %v819, 0
      %871 = vmatprep.subr.bf16.mxu0 0
      %872 = vmatpush1.bf16.msra.mxu0 %v869
      %873 = vmatprep.subr.bf16.mxu0 0
      %874 = vmatpush1.bf16.msra.mxu0 0
      %875 = vmatprep.subr.bf16.mxu0 0
      %876 = vmatpush1.bf16.msra.mxu0 0
      %877 = vmatprep.subr.bf16.mxu0 0
      %878 = vmatpush1.bf16.msra.mxu0 0
      %879 = vmatprep.subr.bf16.mxu0 0
      %880 = vmatpush1.bf16.msra.mxu0 0
      %881 = vmatprep.subr.bf16.mxu0 0
      %882 = vmatpush1.bf16.msra.mxu0 0
      %883 = vmatprep.subr.bf16.mxu0 0
      %884 = vmatpush1.bf16.msra.mxu0 0
      %885 = vmatprep.subr.bf16.mxu0 0
      %886 = vmatpush1.bf16.msra.mxu0 0
      %887 = vmatprep.subr.bf16.mxu0 0
      %888 = vmatpush1.bf16.msra.mxu0 0
      %889 = vmatprep.subr.bf16.mxu0 0
      %890 = vmatpush1.bf16.msra.mxu0 0
      %891 = vmatprep.subr.bf16.mxu0 0
      %892 = vmatpush1.bf16.msra.mxu0 0
      %893 = vmatprep.subr.bf16.mxu0 0
      %894 = vmatpush1.bf16.msra.mxu0 0
      %895 = vmatprep.subr.bf16.mxu0 0
      %896 = vmatpush1.bf16.msra.mxu0 0
      %897 = vmatprep.subr.bf16.mxu0 0
      %898 = vmatpush1.bf16.msra.mxu0 0
      %899 = vmatprep.subr.bf16.mxu0 0
      %900 = vmatpush1.bf16.msra.mxu0 0
      %901 = vmatprep.subr.bf16.mxu0 0
      %902 = vmatpush1.bf16.msra.mxu0 0
      %903 = vmatprep.mubr.bf16.mxu0 0
      %904 = vmatmul.mubr.bf16.gmra.mrb[0].mxu0 %v845
      %v905 = vpop.f32.mrb[0].mxu0
      %v906 = vadd.f32 0.0, %v905
      %v907 = vpop.f32.mrb[0].mxu0
      %v908 = vpop.f32.mrb[0].mxu0
      %v909 = vadd.f32 0.0, %v908
      %v910 = vpop.f32.mrb[0].mxu0
      %911 = vmatprep.mubr.bf16.mxu0 0
      %912 = vmatmul.mubr.bf16.gmra.mrb[0].mxu0 %v848
      %v913 = vpop.f32.mrb[0].mxu0
      %v914 = vadd.f32 0.0, %v913
      %v915 = vpop.f32.mrb[0].mxu0
      %v916 = vpop.f32.mrb[0].mxu0
      %v917 = vadd.f32 0.0, %v916
      %v918 = vpop.f32.mrb[0].mxu0
      %919 = vmatprep.mubr.bf16.mxu0 0
      %920 = vmatmul.mubr.bf16.gmra.mrb[0].mxu0 %v851
      %v921 = vpop.f32.mrb[0].mxu0
      %v922 = vadd.f32 0.0, %v921
      %v923 = vpop.f32.mrb[0].mxu0
      %v924 = vpop.f32.mrb[0].mxu0
      %v925 = vadd.f32 0.0, %v924
      %v926 = vpop.f32.mrb[0].mxu0
      %927 = vmatprep.mubr.bf16.mxu0 0
      %928 = vmatmul.mubr.bf16.gmra.mrb[0].mxu0 %v854
      %v929 = vpop.f32.mrb[0].mxu0
      %v930 = vadd.f32 0.0, %v929
      %v931 = vpop.f32.mrb[0].mxu0
      %v932 = vpop.f32.mrb[0].mxu0
      %v933 = vadd.f32 0.0, %v932
      %v934 = vpop.f32.mrb[0].mxu0
      %935 = vmatprep.mubr.bf16.mxu0 0
      %936 = vmatmul.mubr.bf16.gmra.mrb[0].mxu0 %v857
      %v937 = vpop.f32.mrb[0].mxu0
      %v938 = vadd.f32 0.0, %v937
      %v939 = vpop.f32.mrb[0].mxu0
      %v940 = vpop.f32.mrb[0].mxu0
      %v941 = vadd.f32 0.0, %v940
      %v942 = vpop.f32.mrb[0].mxu0
      %943 = vmatprep.mubr.bf16.mxu0 0
      %944 = vmatmul.mubr.bf16.gmra.mrb[0].mxu0 %v860
      %v945 = vpop.f32.mrb[0].mxu0
      %v946 = vadd.f32 0.0, %v945
      %v947 = vpop.f32.mrb[0].mxu0
      %v948 = vpop.f32.mrb[0].mxu0
      %v949 = vadd.f32 0.0, %v948
      %v950 = vpop.f32.mrb[0].mxu0
      %951 = vmatprep.mubr.bf16.mxu0 0
      %952 = vmatmul.mubr.bf16.gmra.mrb[0].mxu0 %v863
      %v953 = vpop.f32.mrb[0].mxu0
      %v954 = vadd.f32 0.0, %v953
      %v955 = vpop.f32.mrb[0].mxu0
      %v956 = vpop.f32.mrb[0].mxu0
      %v957 = vadd.f32 0.0, %v956
      %v958 = vpop.f32.mrb[0].mxu0
      %959 = vmatprep.mubr.bf16.mxu0 0
      %960 = vmatmul.mubr.bf16.gmra.mrb[0].mxu0 %v866
      %v961 = vpop.f32.mrb[0].mxu0
      %v962 = vadd.f32 0.0, %v961
      %v963 = vpop.f32.mrb[0].mxu0
      %v964 = vpop.f32.mrb[0].mxu0
      %v965 = vadd.f32 0.0, %v964
      %v966 = vpop.f32.mrb[0].mxu0
      %967 = vdwg.mxu0
      %v968 = vadd.f32 %v673, %v906
      %v969 = vadd.f32 %v676, %v909
      %v970 = vadd.f32 %v681, %v914
      %v971 = vadd.f32 %v684, %v917
      %v972 = vadd.f32 %v689, %v922
      %v973 = vadd.f32 %v692, %v925
      %v974 = vadd.f32 %v697, %v930
      %v975 = vadd.f32 %v700, %v933
      %v976 = vadd.f32 %v705, %v938
      %v977 = vadd.f32 %v708, %v941
      %v978 = vadd.f32 %v713, %v946
      %v979 = vadd.f32 %v716, %v949
      %v980 = vadd.f32 %v721, %v954
      %v981 = vadd.f32 %v724, %v957
      %v982 = vadd.f32 %v729, %v962
      %v983 = vadd.f32 %v732, %v965
      %s984 = sadd.s32 %s195, 1
      %s985 = smul.u32 %s984, 3
      %s986 = smul.addr %s985, 4
      %s987 = scalar_lea.vmem %s183, %s986
      %v988 = vld [vmem:[%s987] sm:$0xf]
      %v989 = vld [vmem:[%s987 + $0x4] sm:$0xf]
      %v990 = vld [vmem:[%s987 + $0xc] sm:$0xf]
      %v991 = vld [vmem:[%s987 + $0x10] sm:$0xf]
      %v992 = vld [vmem:[%s987 + $0x18] sm:$0xf]
      %v993 = vld [vmem:[%s987 + $0x1c] sm:$0xf]
      %v994 = vld [vmem:[%s987 + $0x24] sm:$0xf]
      %v995 = vld [vmem:[%s987 + $0x28] sm:$0xf]
      %v996 = vld [vmem:[%s987 + $0x30] sm:$0xf]
      %v997 = vld [vmem:[%s987 + $0x34] sm:$0xf]
      %v998 = vld [vmem:[%s987 + $0x3c] sm:$0xf]
      %v999 = vld [vmem:[%s987 + $0x40] sm:$0xf]
      %v1000 = vld [vmem:[%s987 + $0x48] sm:$0xf]
      %v1001 = vld [vmem:[%s987 + $0x4c] sm:$0xf]
      %v1002 = vld [vmem:[%s987 + $0x54] sm:$0xf]
      %v1003 = vld [vmem:[%s987 + $0x58] sm:$0xf]
      %s1004 = scalar_lea.vmem %s1, 6
      %v1005 = vld [vmem:[%s1004] sm:$0x3]
      %v1022 = vunpack.c.l.b16 %v988
      %v1023 = vunpack.c.l.b16 %v989
      %v1024 = vunpack.c.l.b16 %v990
      %v1025 = vunpack.c.l.b16 %v991
      %v1026 = vunpack.c.l.b16 %v992
      %v1027 = vunpack.c.l.b16 %v993
      %v1028 = vunpack.c.l.b16 %v994
      %v1029 = vunpack.c.l.b16 %v995
      %v1030 = vunpack.c.l.b16 %v996
      %v1031 = vunpack.c.l.b16 %v997
      %v1032 = vunpack.c.l.b16 %v998
      %v1033 = vunpack.c.l.b16 %v999
      %v1034 = vunpack.c.l.b16 %v1000
      %v1035 = vunpack.c.l.b16 %v1001
      %v1036 = vunpack.c.l.b16 %v1002
      %v1037 = vunpack.c.l.b16 %v1003
      %v1038 = vpack.c.b16 %v1023, %v1022
      %v1039 = vpack.c.b16 %v1025, %v1024
      %v1040 = vpack.c.b16 %v1027, %v1026
      %v1041 = vpack.c.b16 %v1029, %v1028
      %v1042 = vpack.c.b16 %v1031, %v1030
      %v1043 = vpack.c.b16 %v1033, %v1032
      %v1044 = vpack.c.b16 %v1035, %v1034
      %v1045 = vpack.c.b16 %v1037, %v1036
      %v1047 = vsel %vm445, %v1038, 0
      %v1050 = vsel %vm445, %v1039, 0
      %v1053 = vsel %vm445, %v1040, 0
      %v1056 = vsel %vm445, %v1041, 0
      %v1059 = vsel %vm445, %v1042, 0
      %v1062 = vsel %vm445, %v1043, 0
      %v1065 = vsel %vm445, %v1044, 0
      %v1068 = vsel %vm445, %v1045, 0
      %v1071 = vsel %vm470, %v1005, 0
      %1073 = vmatprep.subr.bf16.mxu0 0
      %1074 = vmatpush1.bf16.msra.mxu0 %v1071
      %1075 = vmatprep.subr.bf16.mxu0 0
      %1076 = vmatpush1.bf16.msra.mxu0 0
      %1077 = vmatprep.subr.bf16.mxu0 0
      %1078 = vmatpush1.bf16.msra.mxu0 0
      %1079 = vmatprep.subr.bf16.mxu0 0
      %1080 = vmatpush1.bf16.msra.mxu0 0
      %1081 = vmatprep.subr.bf16.mxu0 0
      %1082 = vmatpush1.bf16.msra.mxu0 0
      %1083 = vmatprep.subr.bf16.mxu0 0
      %1084 = vmatpush1.bf16.msra.mxu0 0
      %1085 = vmatprep.subr.bf16.mxu0 0
      %1086 = vmatpush1.bf16.msra.mxu0 0
      %1087 = vmatprep.subr.bf16.mxu0 0
      %1088 = vmatpush1.bf16.msra.mxu0 0
      %1089 = vmatprep.subr.bf16.mxu0 0
      %1090 = vmatpush1.bf16.msra.mxu0 0
      %1091 = vmatprep.subr.bf16.mxu0 0
      %1092 = vmatpush1.bf16.msra.mxu0 0
      %1093 = vmatprep.subr.bf16.mxu0 0
      %1094 = vmatpush1.bf16.msra.mxu0 0
      %1095 = vmatprep.subr.bf16.mxu0 0
      %1096 = vmatpush1.bf16.msra.mxu0 0
      %1097 = vmatprep.subr.bf16.mxu0 0
      %1098 = vmatpush1.bf16.msra.mxu0 0
      %1099 = vmatprep.subr.bf16.mxu0 0
      %1100 = vmatpush1.bf16.msra.mxu0 0
      %1101 = vmatprep.subr.bf16.mxu0 0
      %1102 = vmatpush1.bf16.msra.mxu0 0
      %1103 = vmatprep.subr.bf16.mxu0 0
      %1104 = vmatpush1.bf16.msra.mxu0 0
      %1105 = vmatprep.mubr.bf16.mxu0 0
      %1106 = vmatmul.mubr.bf16.gmra.mrb[0].mxu0 %v1047
      %v1107 = vpop.f32.mrb[0].mxu0
      %v1108 = vadd.f32 0.0, %v1107
      %v1109 = vpop.f32.mrb[0].mxu0
      %v1110 = vpop.f32.mrb[0].mxu0
      %v1111 = vadd.f32 0.0, %v1110
      %v1112 = vpop.f32.mrb[0].mxu0
      %1113 = vmatprep.mubr.bf16.mxu0 0
      %1114 = vmatmul.mubr.bf16.gmra.mrb[0].mxu0 %v1050
      %v1115 = vpop.f32.mrb[0].mxu0
      %v1116 = vadd.f32 0.0, %v1115
      %v1117 = vpop.f32.mrb[0].mxu0
      %v1118 = vpop.f32.mrb[0].mxu0
      %v1119 = vadd.f32 0.0, %v1118
      %v1120 = vpop.f32.mrb[0].mxu0
      %1121 = vmatprep.mubr.bf16.mxu0 0
      %1122 = vmatmul.mubr.bf16.gmra.mrb[0].mxu0 %v1053
      %v1123 = vpop.f32.mrb[0].mxu0
      %v1124 = vadd.f32 0.0, %v1123
      %v1125 = vpop.f32.mrb[0].mxu0
      %v1126 = vpop.f32.mrb[0].mxu0
      %v1127 = vadd.f32 0.0, %v1126
      %v1128 = vpop.f32.mrb[0].mxu0
      %1129 = vmatprep.mubr.bf16.mxu0 0
      %1130 = vmatmul.mubr.bf16.gmra.mrb[0].mxu0 %v1056
      %v1131 = vpop.f32.mrb[0].mxu0
      %v1132 = vadd.f32 0.0, %v1131
      %v1133 = vpop.f32.mrb[0].mxu0
      %v1134 = vpop.f32.mrb[0].mxu0
      %v1135 = vadd.f32 0.0, %v1134
      %v1136 = vpop.f32.mrb[0].mxu0
      %1137 = vmatprep.mubr.bf16.mxu0 0
      %1138 = vmatmul.mubr.bf16.gmra.mrb[0].mxu0 %v1059
      %v1139 = vpop.f32.mrb[0].mxu0
      %v1140 = vadd.f32 0.0, %v1139
      %v1141 = vpop.f32.mrb[0].mxu0
      %v1142 = vpop.f32.mrb[0].mxu0
      %v1143 = vadd.f32 0.0, %v1142
      %v1144 = vpop.f32.mrb[0].mxu0
      %1145 = vmatprep.mubr.bf16.mxu0 0
      %1146 = vmatmul.mubr.bf16.gmra.mrb[0].mxu0 %v1062
      %v1147 = vpop.f32.mrb[0].mxu0
      %v1148 = vadd.f32 0.0, %v1147
      %v1149 = vpop.f32.mrb[0].mxu0
      %v1150 = vpop.f32.mrb[0].mxu0
      %v1151 = vadd.f32 0.0, %v1150
      %v1152 = vpop.f32.mrb[0].mxu0
      %1153 = vmatprep.mubr.bf16.mxu0 0
      %1154 = vmatmul.mubr.bf16.gmra.mrb[0].mxu0 %v1065
      %v1155 = vpop.f32.mrb[0].mxu0
      %v1156 = vadd.f32 0.0, %v1155
      %v1157 = vpop.f32.mrb[0].mxu0
      %v1158 = vpop.f32.mrb[0].mxu0
      %v1159 = vadd.f32 0.0, %v1158
      %v1160 = vpop.f32.mrb[0].mxu0
      %1161 = vmatprep.mubr.bf16.mxu0 0
      %1162 = vmatmul.mubr.bf16.gmra.mrb[0].mxu0 %v1068
      %v1163 = vpop.f32.mrb[0].mxu0
      %v1164 = vadd.f32 0.0, %v1163
      %v1165 = vpop.f32.mrb[0].mxu0
      %v1166 = vpop.f32.mrb[0].mxu0
      %v1167 = vadd.f32 0.0, %v1166
      %v1168 = vpop.f32.mrb[0].mxu0
      %1169 = vdwg.mxu0
      %v1170 = vadd.f32 %v968, %v1108
      %v1171 = vadd.f32 %v969, %v1111
      %v1172 = vadd.f32 %v970, %v1116
      %v1173 = vadd.f32 %v971, %v1119
      %v1174 = vadd.f32 %v972, %v1124
      %v1175 = vadd.f32 %v973, %v1127
      %v1176 = vadd.f32 %v974, %v1132
      %v1177 = vadd.f32 %v975, %v1135
      %v1178 = vadd.f32 %v976, %v1140
      %v1179 = vadd.f32 %v977, %v1143
      %v1180 = vadd.f32 %v978, %v1148
      %v1181 = vadd.f32 %v979, %v1151
      %v1182 = vadd.f32 %v980, %v1156
      %v1183 = vadd.f32 %v981, %v1159
      %v1184 = vadd.f32 %v982, %v1164
      %v1185 = vadd.f32 %v983, %v1167
      %v1186 = vld [vmem:[%s987] sm:$0xf]
      %v1187 = vld [vmem:[%s987 + $0x4] sm:$0xf]
      %v1188 = vld [vmem:[%s987 + $0x8] sm:$0x1]
      %v1189 = vld [vmem:[%s987 + $0xc] sm:$0xf]
      %v1190 = vld [vmem:[%s987 + $0x10] sm:$0xf]
      %v1191 = vld [vmem:[%s987 + $0x14] sm:$0x1]
      %v1192 = vld [vmem:[%s987 + $0x18] sm:$0xf]
      %v1193 = vld [vmem:[%s987 + $0x1c] sm:$0xf]
      %v1194 = vld [vmem:[%s987 + $0x20] sm:$0x1]
      %v1195 = vld [vmem:[%s987 + $0x24] sm:$0xf]
      %v1196 = vld [vmem:[%s987 + $0x28] sm:$0xf]
      %v1197 = vld [vmem:[%s987 + $0x2c] sm:$0x1]
      %v1198 = vld [vmem:[%s987 + $0x30] sm:$0xf]
      %v1199 = vld [vmem:[%s987 + $0x34] sm:$0xf]
      %v1200 = vld [vmem:[%s987 + $0x38] sm:$0x1]
      %v1201 = vld [vmem:[%s987 + $0x3c] sm:$0xf]
      %v1202 = vld [vmem:[%s987 + $0x40] sm:$0xf]
      %v1203 = vld [vmem:[%s987 + $0x44] sm:$0x1]
      %v1204 = vld [vmem:[%s987 + $0x48] sm:$0xf]
      %v1205 = vld [vmem:[%s987 + $0x4c] sm:$0xf]
      %v1206 = vld [vmem:[%s987 + $0x50] sm:$0x1]
      %v1207 = vld [vmem:[%s987 + $0x54] sm:$0xf]
      %v1208 = vld [vmem:[%s987 + $0x58] sm:$0xf]
      %v1209 = vld [vmem:[%s987 + $0x5c] sm:$0x1]
      %v1211 = vshrl.u32 %v1186, 16
      %v1213 = vrot.slane %v1211, 4
      %v1214 = vshll.u32 %v1186, 16
      %v1216 = vrot.slane %v1214, 5
      %v1217 = vor.u32 %v1213, %v1216
      %v1218 = vrot.slane %v1217, 4
      %v1220 = vshll.u32 %v1187, 16
      %v1222 = vrot.slane %v1220, 5
      %v1223 = vsel %vm226, %v1218, %v1222
      %v1224 = vshrl.u32 %v1187, 16
      %v1226 = vrot.slane %v1224, 4
      %v1227 = vor.u32 %v1226, %v1222
      %v1228 = vrot.slane %v1227, 4
      %v1230 = vshll.u32 %v1188, 16
      %v1232 = vrot.slane %v1230, 5
      %v1233 = vsel %vm226, %v1228, %v1232
      %v1235 = vshrl.u32 %v1189, 16
      %v1237 = vrot.slane %v1235, 4
      %v1238 = vshll.u32 %v1189, 16
      %v1240 = vrot.slane %v1238, 5
      %v1241 = vor.u32 %v1237, %v1240
      %v1242 = vrot.slane %v1241, 4
      %v1244 = vshll.u32 %v1190, 16
      %v1246 = vrot.slane %v1244, 5
      %v1247 = vsel %vm226, %v1242, %v1246
      %v1248 = vshrl.u32 %v1190, 16
      %v1250 = vrot.slane %v1248, 4
      %v1251 = vor.u32 %v1250, %v1246
      %v1252 = vrot.slane %v1251, 4
      %v1254 = vshll.u32 %v1191, 16
      %v1256 = vrot.slane %v1254, 5
      %v1257 = vsel %vm226, %v1252, %v1256
      %v1259 = vshrl.u32 %v1192, 16
      %v1261 = vrot.slane %v1259, 4
      %v1262 = vshll.u32 %v1192, 16
      %v1264 = vrot.slane %v1262, 5
      %v1265 = vor.u32 %v1261, %v1264
      %v1266 = vrot.slane %v1265, 4
      %v1268 = vshll.u32 %v1193, 16
      %v1270 = vrot.slane %v1268, 5
      %v1271 = vsel %vm226, %v1266, %v1270
      %v1272 = vshrl.u32 %v1193, 16
      %v1274 = vrot.slane %v1272, 4
      %v1275 = vor.u32 %v1274, %v1270
      %v1276 = vrot.slane %v1275, 4
      %v1278 = vshll.u32 %v1194, 16
      %v1280 = vrot.slane %v1278, 5
      %v1281 = vsel %vm226, %v1276, %v1280
      %v1283 = vshrl.u32 %v1195, 16
      %v1285 = vrot.slane %v1283, 4
      %v1286 = vshll.u32 %v1195, 16
      %v1288 = vrot.slane %v1286, 5
      %v1289 = vor.u32 %v1285, %v1288
      %v1290 = vrot.slane %v1289, 4
      %v1292 = vshll.u32 %v1196, 16
      %v1294 = vrot.slane %v1292, 5
      %v1295 = vsel %vm226, %v1290, %v1294
      %v1296 = vshrl.u32 %v1196, 16
      %v1298 = vrot.slane %v1296, 4
      %v1299 = vor.u32 %v1298, %v1294
      %v1300 = vrot.slane %v1299, 4
      %v1302 = vshll.u32 %v1197, 16
      %v1304 = vrot.slane %v1302, 5
      %v1305 = vsel %vm226, %v1300, %v1304
      %v1307 = vshrl.u32 %v1198, 16
      %v1309 = vrot.slane %v1307, 4
      %v1310 = vshll.u32 %v1198, 16
      %v1312 = vrot.slane %v1310, 5
      %v1313 = vor.u32 %v1309, %v1312
      %v1314 = vrot.slane %v1313, 4
      %v1316 = vshll.u32 %v1199, 16
      %v1318 = vrot.slane %v1316, 5
      %v1319 = vsel %vm226, %v1314, %v1318
      %v1320 = vshrl.u32 %v1199, 16
      %v1322 = vrot.slane %v1320, 4
      %v1323 = vor.u32 %v1322, %v1318
      %v1324 = vrot.slane %v1323, 4
      %v1326 = vshll.u32 %v1200, 16
      %v1328 = vrot.slane %v1326, 5
      %v1329 = vsel %vm226, %v1324, %v1328
      %v1331 = vshrl.u32 %v1201, 16
      %v1333 = vrot.slane %v1331, 4
      %v1334 = vshll.u32 %v1201, 16
      %v1336 = vrot.slane %v1334, 5
      %v1337 = vor.u32 %v1333, %v1336
      %v1338 = vrot.slane %v1337, 4
      %v1340 = vshll.u32 %v1202, 16
      %v1342 = vrot.slane %v1340, 5
      %v1343 = vsel %vm226, %v1338, %v1342
      %v1344 = vshrl.u32 %v1202, 16
      %v1346 = vrot.slane %v1344, 4
      %v1347 = vor.u32 %v1346, %v1342
      %v1348 = vrot.slane %v1347, 4
      %v1350 = vshll.u32 %v1203, 16
      %v1352 = vrot.slane %v1350, 5
      %v1353 = vsel %vm226, %v1348, %v1352
      %v1355 = vshrl.u32 %v1204, 16
      %v1357 = vrot.slane %v1355, 4
      %v1358 = vshll.u32 %v1204, 16
      %v1360 = vrot.slane %v1358, 5
      %v1361 = vor.u32 %v1357, %v1360
      %v1362 = vrot.slane %v1361, 4
      %v1364 = vshll.u32 %v1205, 16
      %v1366 = vrot.slane %v1364, 5
      %v1367 = vsel %vm226, %v1362, %v1366
      %v1368 = vshrl.u32 %v1205, 16
      %v1370 = vrot.slane %v1368, 4
      %v1371 = vor.u32 %v1370, %v1366
      %v1372 = vrot.slane %v1371, 4
      %v1374 = vshll.u32 %v1206, 16
      %v1376 = vrot.slane %v1374, 5
      %v1377 = vsel %vm226, %v1372, %v1376
      %v1379 = vshrl.u32 %v1207, 16
      %v1381 = vrot.slane %v1379, 4
      %v1382 = vshll.u32 %v1207, 16
      %v1384 = vrot.slane %v1382, 5
      %v1385 = vor.u32 %v1381, %v1384
      %v1386 = vrot.slane %v1385, 4
      %v1388 = vshll.u32 %v1208, 16
      %v1390 = vrot.slane %v1388, 5
      %v1391 = vsel %vm226, %v1386, %v1390
      %v1392 = vshrl.u32 %v1208, 16
      %v1394 = vrot.slane %v1392, 4
      %v1395 = vor.u32 %v1394, %v1390
      %v1396 = vrot.slane %v1395, 4
      %v1398 = vshll.u32 %v1209, 16
      %v1400 = vrot.slane %v1398, 5
      %v1401 = vsel %vm226, %v1396, %v1400
      %s1402 = scalar_lea.vmem %s1, 8
      %v1403 = vld [vmem:[%s1402] sm:$0x3]
      %v1404 = vunpack.c.l.b16 %v1223
      %v1405 = vunpack.c.l.b16 %v1233
      %v1406 = vunpack.c.l.b16 %v1247
      %v1407 = vunpack.c.l.b16 %v1257
      %v1408 = vunpack.c.l.b16 %v1271
      %v1409 = vunpack.c.l.b16 %v1281
      %v1410 = vunpack.c.l.b16 %v1295
      %v1411 = vunpack.c.l.b16 %v1305
      %v1412 = vunpack.c.l.b16 %v1319
      %v1413 = vunpack.c.l.b16 %v1329
      %v1414 = vunpack.c.l.b16 %v1343
      %v1415 = vunpack.c.l.b16 %v1353
      %v1416 = vunpack.c.l.b16 %v1367
      %v1417 = vunpack.c.l.b16 %v1377
      %v1418 = vunpack.c.l.b16 %v1391
      %v1419 = vunpack.c.l.b16 %v1401
      %v1420 = vpack.c.b16 %v1405, %v1404
      %v1421 = vpack.c.b16 %v1407, %v1406
      %v1422 = vpack.c.b16 %v1409, %v1408
      %v1423 = vpack.c.b16 %v1411, %v1410
      %v1424 = vpack.c.b16 %v1413, %v1412
      %v1425 = vpack.c.b16 %v1415, %v1414
      %v1426 = vpack.c.b16 %v1417, %v1416
      %v1427 = vpack.c.b16 %v1419, %v1418
      %v1429 = vsel %vm445, %v1420, 0
      %v1432 = vsel %vm445, %v1421, 0
      %v1435 = vsel %vm445, %v1422, 0
      %v1438 = vsel %vm445, %v1423, 0
      %v1441 = vsel %vm445, %v1424, 0
      %v1444 = vsel %vm445, %v1425, 0
      %v1447 = vsel %vm445, %v1426, 0
      %v1450 = vsel %vm445, %v1427, 0
      %v1453 = vsel %vm470, %v1403, 0
      %1455 = vmatprep.subr.bf16.mxu0 0
      %1456 = vmatpush1.bf16.msra.mxu0 %v1453
      %1457 = vmatprep.subr.bf16.mxu0 0
      %1458 = vmatpush1.bf16.msra.mxu0 0
      %1459 = vmatprep.subr.bf16.mxu0 0
      %1460 = vmatpush1.bf16.msra.mxu0 0
      %1461 = vmatprep.subr.bf16.mxu0 0
      %1462 = vmatpush1.bf16.msra.mxu0 0
      %1463 = vmatprep.subr.bf16.mxu0 0
      %1464 = vmatpush1.bf16.msra.mxu0 0
      %1465 = vmatprep.subr.bf16.mxu0 0
      %1466 = vmatpush1.bf16.msra.mxu0 0
      %1467 = vmatprep.subr.bf16.mxu0 0
      %1468 = vmatpush1.bf16.msra.mxu0 0
      %1469 = vmatprep.subr.bf16.mxu0 0
      %1470 = vmatpush1.bf16.msra.mxu0 0
      %1471 = vmatprep.subr.bf16.mxu0 0
      %1472 = vmatpush1.bf16.msra.mxu0 0
      %1473 = vmatprep.subr.bf16.mxu0 0
      %1474 = vmatpush1.bf16.msra.mxu0 0
      %1475 = vmatprep.subr.bf16.mxu0 0
      %1476 = vmatpush1.bf16.msra.mxu0 0
      %1477 = vmatprep.subr.bf16.mxu0 0
      %1478 = vmatpush1.bf16.msra.mxu0 0
      %1479 = vmatprep.subr.bf16.mxu0 0
      %1480 = vmatpush1.bf16.msra.mxu0 0
      %1481 = vmatprep.subr.bf16.mxu0 0
      %1482 = vmatpush1.bf16.msra.mxu0 0
      %1483 = vmatprep.subr.bf16.mxu0 0
      %1484 = vmatpush1.bf16.msra.mxu0 0
      %1485 = vmatprep.subr.bf16.mxu0 0
      %1486 = vmatpush1.bf16.msra.mxu0 0
      %1487 = vmatprep.mubr.bf16.mxu0 0
      %1488 = vmatmul.mubr.bf16.gmra.mrb[0].mxu0 %v1429
      %v1489 = vpop.f32.mrb[0].mxu0
      %v1490 = vadd.f32 0.0, %v1489
      %v1491 = vpop.f32.mrb[0].mxu0
      %v1492 = vpop.f32.mrb[0].mxu0
      %v1493 = vadd.f32 0.0, %v1492
      %v1494 = vpop.f32.mrb[0].mxu0
      %1495 = vmatprep.mubr.bf16.mxu0 0
      %1496 = vmatmul.mubr.bf16.gmra.mrb[0].mxu0 %v1432
      %v1497 = vpop.f32.mrb[0].mxu0
      %v1498 = vadd.f32 0.0, %v1497
      %v1499 = vpop.f32.mrb[0].mxu0
      %v1500 = vpop.f32.mrb[0].mxu0
      %v1501 = vadd.f32 0.0, %v1500
      %v1502 = vpop.f32.mrb[0].mxu0
      %1503 = vmatprep.mubr.bf16.mxu0 0
      %1504 = vmatmul.mubr.bf16.gmra.mrb[0].mxu0 %v1435
      %v1505 = vpop.f32.mrb[0].mxu0
      %v1506 = vadd.f32 0.0, %v1505
      %v1507 = vpop.f32.mrb[0].mxu0
      %v1508 = vpop.f32.mrb[0].mxu0
      %v1509 = vadd.f32 0.0, %v1508
      %v1510 = vpop.f32.mrb[0].mxu0
      %1511 = vmatprep.mubr.bf16.mxu0 0
      %1512 = vmatmul.mubr.bf16.gmra.mrb[0].mxu0 %v1438
      %v1513 = vpop.f32.mrb[0].mxu0
      %v1514 = vadd.f32 0.0, %v1513
      %v1515 = vpop.f32.mrb[0].mxu0
      %v1516 = vpop.f32.mrb[0].mxu0
      %v1517 = vadd.f32 0.0, %v1516
      %v1518 = vpop.f32.mrb[0].mxu0
      %1519 = vmatprep.mubr.bf16.mxu0 0
      %1520 = vmatmul.mubr.bf16.gmra.mrb[0].mxu0 %v1441
      %v1521 = vpop.f32.mrb[0].mxu0
      %v1522 = vadd.f32 0.0, %v1521
      %v1523 = vpop.f32.mrb[0].mxu0
      %v1524 = vpop.f32.mrb[0].mxu0
      %v1525 = vadd.f32 0.0, %v1524
      %v1526 = vpop.f32.mrb[0].mxu0
      %1527 = vmatprep.mubr.bf16.mxu0 0
      %1528 = vmatmul.mubr.bf16.gmra.mrb[0].mxu0 %v1444
      %v1529 = vpop.f32.mrb[0].mxu0
      %v1530 = vadd.f32 0.0, %v1529
      %v1531 = vpop.f32.mrb[0].mxu0
      %v1532 = vpop.f32.mrb[0].mxu0
      %v1533 = vadd.f32 0.0, %v1532
      %v1534 = vpop.f32.mrb[0].mxu0
      %1535 = vmatprep.mubr.bf16.mxu0 0
      %1536 = vmatmul.mubr.bf16.gmra.mrb[0].mxu0 %v1447
      %v1537 = vpop.f32.mrb[0].mxu0
      %v1538 = vadd.f32 0.0, %v1537
      %v1539 = vpop.f32.mrb[0].mxu0
      %v1540 = vpop.f32.mrb[0].mxu0
      %v1541 = vadd.f32 0.0, %v1540
      %v1542 = vpop.f32.mrb[0].mxu0
      %1543 = vmatprep.mubr.bf16.mxu0 0
      %1544 = vmatmul.mubr.bf16.gmra.mrb[0].mxu0 %v1450
      %v1545 = vpop.f32.mrb[0].mxu0
      %v1546 = vadd.f32 0.0, %v1545
      %v1547 = vpop.f32.mrb[0].mxu0
      %v1548 = vpop.f32.mrb[0].mxu0
      %v1549 = vadd.f32 0.0, %v1548
      %v1550 = vpop.f32.mrb[0].mxu0
      %1551 = vdwg.mxu0
      %v1552 = vadd.f32 %v1170, %v1490
      %v1553 = vadd.f32 %v1171, %v1493
      %v1554 = vadd.f32 %v1172, %v1498
      %v1555 = vadd.f32 %v1173, %v1501
      %v1556 = vadd.f32 %v1174, %v1506
      %v1557 = vadd.f32 %v1175, %v1509
      %v1558 = vadd.f32 %v1176, %v1514
      %v1559 = vadd.f32 %v1177, %v1517
      %v1560 = vadd.f32 %v1178, %v1522
      %v1561 = vadd.f32 %v1179, %v1525
      %v1562 = vadd.f32 %v1180, %v1530
      %v1563 = vadd.f32 %v1181, %v1533
      %v1564 = vadd.f32 %v1182, %v1538
      %v1565 = vadd.f32 %v1183, %v1541
      %v1566 = vadd.f32 %v1184, %v1546
      %v1567 = vadd.f32 %v1185, %v1549
      %v1568 = vld [vmem:[%s987] sm:$0xe]
      %v1569 = vld [vmem:[%s987 + $0xc] sm:$0xe]
      %v1570 = vld [vmem:[%s987 + $0x18] sm:$0xe]
      %v1571 = vld [vmem:[%s987 + $0x24] sm:$0xe]
      %v1572 = vld [vmem:[%s987 + $0x30] sm:$0xe]
      %v1573 = vld [vmem:[%s987 + $0x3c] sm:$0xe]
      %v1574 = vld [vmem:[%s987 + $0x48] sm:$0xe]
      %v1575 = vld [vmem:[%s987 + $0x54] sm:$0xe]
      %v1600 = vrot.slane %v1568, 5
      %v1601 = vrot.slane %v1600, 4
      %v1602 = vrot.slane %v1187, 5
      %v1603 = vsel %vm761, %v1601, %v1602
      %v1604 = vrot.slane %v1602, 4
      %v1605 = vrot.slane %v1188, 5
      %v1606 = vsel %vm761, %v1604, %v1605
      %v1607 = vrot.slane %v1569, 5
      %v1608 = vrot.slane %v1607, 4
      %v1609 = vrot.slane %v1190, 5
      %v1610 = vsel %vm761, %v1608, %v1609
      %v1611 = vrot.slane %v1609, 4
      %v1612 = vrot.slane %v1191, 5
      %v1613 = vsel %vm761, %v1611, %v1612
      %v1614 = vrot.slane %v1570, 5
      %v1615 = vrot.slane %v1614, 4
      %v1616 = vrot.slane %v1193, 5
      %v1617 = vsel %vm761, %v1615, %v1616
      %v1618 = vrot.slane %v1616, 4
      %v1619 = vrot.slane %v1194, 5
      %v1620 = vsel %vm761, %v1618, %v1619
      %v1621 = vrot.slane %v1571, 5
      %v1622 = vrot.slane %v1621, 4
      %v1623 = vrot.slane %v1196, 5
      %v1624 = vsel %vm761, %v1622, %v1623
      %v1625 = vrot.slane %v1623, 4
      %v1626 = vrot.slane %v1197, 5
      %v1627 = vsel %vm761, %v1625, %v1626
      %v1628 = vrot.slane %v1572, 5
      %v1629 = vrot.slane %v1628, 4
      %v1630 = vrot.slane %v1199, 5
      %v1631 = vsel %vm761, %v1629, %v1630
      %v1632 = vrot.slane %v1630, 4
      %v1633 = vrot.slane %v1200, 5
      %v1634 = vsel %vm761, %v1632, %v1633
      %v1635 = vrot.slane %v1573, 5
      %v1636 = vrot.slane %v1635, 4
      %v1637 = vrot.slane %v1202, 5
      %v1638 = vsel %vm761, %v1636, %v1637
      %v1639 = vrot.slane %v1637, 4
      %v1640 = vrot.slane %v1203, 5
      %v1641 = vsel %vm761, %v1639, %v1640
      %v1642 = vrot.slane %v1574, 5
      %v1643 = vrot.slane %v1642, 4
      %v1644 = vrot.slane %v1205, 5
      %v1645 = vsel %vm761, %v1643, %v1644
      %v1646 = vrot.slane %v1644, 4
      %v1647 = vrot.slane %v1206, 5
      %v1648 = vsel %vm761, %v1646, %v1647
      %v1649 = vrot.slane %v1575, 5
      %v1650 = vrot.slane %v1649, 4
      %v1651 = vrot.slane %v1208, 5
      %v1652 = vsel %vm761, %v1650, %v1651
      %v1653 = vrot.slane %v1651, 4
      %v1654 = vrot.slane %v1209, 5
      %v1655 = vsel %vm761, %v1653, %v1654
      %s1656 = scalar_lea.vmem %s1, 10
      %v1657 = vld [vmem:[%s1656] sm:$0x3]
      %v1658 = vunpack.c.l.b16 %v1603
      %v1659 = vunpack.c.l.b16 %v1606
      %v1660 = vunpack.c.l.b16 %v1610
      %v1661 = vunpack.c.l.b16 %v1613
      %v1662 = vunpack.c.l.b16 %v1617
      %v1663 = vunpack.c.l.b16 %v1620
      %v1664 = vunpack.c.l.b16 %v1624
      %v1665 = vunpack.c.l.b16 %v1627
      %v1666 = vunpack.c.l.b16 %v1631
      %v1667 = vunpack.c.l.b16 %v1634
      %v1668 = vunpack.c.l.b16 %v1638
      %v1669 = vunpack.c.l.b16 %v1641
      %v1670 = vunpack.c.l.b16 %v1645
      %v1671 = vunpack.c.l.b16 %v1648
      %v1672 = vunpack.c.l.b16 %v1652
      %v1673 = vunpack.c.l.b16 %v1655
      %v1674 = vpack.c.b16 %v1659, %v1658
      %v1675 = vpack.c.b16 %v1661, %v1660
      %v1676 = vpack.c.b16 %v1663, %v1662
      %v1677 = vpack.c.b16 %v1665, %v1664
      %v1678 = vpack.c.b16 %v1667, %v1666
      %v1679 = vpack.c.b16 %v1669, %v1668
      %v1680 = vpack.c.b16 %v1671, %v1670
      %v1681 = vpack.c.b16 %v1673, %v1672
      %v1683 = vsel %vm445, %v1674, 0
      %v1686 = vsel %vm445, %v1675, 0
      %v1689 = vsel %vm445, %v1676, 0
      %v1692 = vsel %vm445, %v1677, 0
      %v1695 = vsel %vm445, %v1678, 0
      %v1698 = vsel %vm445, %v1679, 0
      %v1701 = vsel %vm445, %v1680, 0
      %v1704 = vsel %vm445, %v1681, 0
      %v1707 = vsel %vm470, %v1657, 0
      %1709 = vmatprep.subr.bf16.mxu0 0
      %1710 = vmatpush1.bf16.msra.mxu0 %v1707
      %1711 = vmatprep.subr.bf16.mxu0 0
      %1712 = vmatpush1.bf16.msra.mxu0 0
      %1713 = vmatprep.subr.bf16.mxu0 0
      %1714 = vmatpush1.bf16.msra.mxu0 0
      %1715 = vmatprep.subr.bf16.mxu0 0
      %1716 = vmatpush1.bf16.msra.mxu0 0
      %1717 = vmatprep.subr.bf16.mxu0 0
      %1718 = vmatpush1.bf16.msra.mxu0 0
      %1719 = vmatprep.subr.bf16.mxu0 0
      %1720 = vmatpush1.bf16.msra.mxu0 0
      %1721 = vmatprep.subr.bf16.mxu0 0
      %1722 = vmatpush1.bf16.msra.mxu0 0
      %1723 = vmatprep.subr.bf16.mxu0 0
      %1724 = vmatpush1.bf16.msra.mxu0 0
      %1725 = vmatprep.subr.bf16.mxu0 0
      %1726 = vmatpush1.bf16.msra.mxu0 0
      %1727 = vmatprep.subr.bf16.mxu0 0
      %1728 = vmatpush1.bf16.msra.mxu0 0
      %1729 = vmatprep.subr.bf16.mxu0 0
      %1730 = vmatpush1.bf16.msra.mxu0 0
      %1731 = vmatprep.subr.bf16.mxu0 0
      %1732 = vmatpush1.bf16.msra.mxu0 0
      %1733 = vmatprep.subr.bf16.mxu0 0
      %1734 = vmatpush1.bf16.msra.mxu0 0
      %1735 = vmatprep.subr.bf16.mxu0 0
      %1736 = vmatpush1.bf16.msra.mxu0 0
      %1737 = vmatprep.subr.bf16.mxu0 0
      %1738 = vmatpush1.bf16.msra.mxu0 0
      %1739 = vmatprep.subr.bf16.mxu0 0
      %1740 = vmatpush1.bf16.msra.mxu0 0
      %1741 = vmatprep.mubr.bf16.mxu0 0
      %1742 = vmatmul.mubr.bf16.gmra.mrb[0].mxu0 %v1683
      %v1743 = vpop.f32.mrb[0].mxu0
      %v1744 = vadd.f32 0.0, %v1743
      %v1745 = vpop.f32.mrb[0].mxu0
      %v1746 = vpop.f32.mrb[0].mxu0
      %v1747 = vadd.f32 0.0, %v1746
      %v1748 = vpop.f32.mrb[0].mxu0
      %1749 = vmatprep.mubr.bf16.mxu0 0
      %1750 = vmatmul.mubr.bf16.gmra.mrb[0].mxu0 %v1686
      %v1751 = vpop.f32.mrb[0].mxu0
      %v1752 = vadd.f32 0.0, %v1751
      %v1753 = vpop.f32.mrb[0].mxu0
      %v1754 = vpop.f32.mrb[0].mxu0
      %v1755 = vadd.f32 0.0, %v1754
      %v1756 = vpop.f32.mrb[0].mxu0
      %1757 = vmatprep.mubr.bf16.mxu0 0
      %1758 = vmatmul.mubr.bf16.gmra.mrb[0].mxu0 %v1689
      %v1759 = vpop.f32.mrb[0].mxu0
      %v1760 = vadd.f32 0.0, %v1759
      %v1761 = vpop.f32.mrb[0].mxu0
      %v1762 = vpop.f32.mrb[0].mxu0
      %v1763 = vadd.f32 0.0, %v1762
      %v1764 = vpop.f32.mrb[0].mxu0
      %1765 = vmatprep.mubr.bf16.mxu0 0
      %1766 = vmatmul.mubr.bf16.gmra.mrb[0].mxu0 %v1692
      %v1767 = vpop.f32.mrb[0].mxu0
      %v1768 = vadd.f32 0.0, %v1767
      %v1769 = vpop.f32.mrb[0].mxu0
      %v1770 = vpop.f32.mrb[0].mxu0
      %v1771 = vadd.f32 0.0, %v1770
      %v1772 = vpop.f32.mrb[0].mxu0
      %1773 = vmatprep.mubr.bf16.mxu0 0
      %1774 = vmatmul.mubr.bf16.gmra.mrb[0].mxu0 %v1695
      %v1775 = vpop.f32.mrb[0].mxu0
      %v1776 = vadd.f32 0.0, %v1775
      %v1777 = vpop.f32.mrb[0].mxu0
      %v1778 = vpop.f32.mrb[0].mxu0
      %v1779 = vadd.f32 0.0, %v1778
      %v1780 = vpop.f32.mrb[0].mxu0
      %1781 = vmatprep.mubr.bf16.mxu0 0
      %1782 = vmatmul.mubr.bf16.gmra.mrb[0].mxu0 %v1698
      %v1783 = vpop.f32.mrb[0].mxu0
      %v1784 = vadd.f32 0.0, %v1783
      %v1785 = vpop.f32.mrb[0].mxu0
      %v1786 = vpop.f32.mrb[0].mxu0
      %v1787 = vadd.f32 0.0, %v1786
      %v1788 = vpop.f32.mrb[0].mxu0
      %1789 = vmatprep.mubr.bf16.mxu0 0
      %1790 = vmatmul.mubr.bf16.gmra.mrb[0].mxu0 %v1701
      %v1791 = vpop.f32.mrb[0].mxu0
      %v1792 = vadd.f32 0.0, %v1791
      %v1793 = vpop.f32.mrb[0].mxu0
      %v1794 = vpop.f32.mrb[0].mxu0
      %v1795 = vadd.f32 0.0, %v1794
      %v1796 = vpop.f32.mrb[0].mxu0
      %1797 = vmatprep.mubr.bf16.mxu0 0
      %1798 = vmatmul.mubr.bf16.gmra.mrb[0].mxu0 %v1704
      %v1799 = vpop.f32.mrb[0].mxu0
      %v1800 = vadd.f32 0.0, %v1799
      %v1801 = vpop.f32.mrb[0].mxu0
      %v1802 = vpop.f32.mrb[0].mxu0
      %v1803 = vadd.f32 0.0, %v1802
      %v1804 = vpop.f32.mrb[0].mxu0
      %1805 = vdwg.mxu0
      %v1806 = vadd.f32 %v1552, %v1744
      %v1807 = vadd.f32 %v1553, %v1747
      %v1808 = vadd.f32 %v1554, %v1752
      %v1809 = vadd.f32 %v1555, %v1755
      %v1810 = vadd.f32 %v1556, %v1760
      %v1811 = vadd.f32 %v1557, %v1763
      %v1812 = vadd.f32 %v1558, %v1768
      %v1813 = vadd.f32 %v1559, %v1771
      %v1814 = vadd.f32 %v1560, %v1776
      %v1815 = vadd.f32 %v1561, %v1779
      %v1816 = vadd.f32 %v1562, %v1784
      %v1817 = vadd.f32 %v1563, %v1787
      %v1818 = vadd.f32 %v1564, %v1792
      %v1819 = vadd.f32 %v1565, %v1795
      %v1820 = vadd.f32 %v1566, %v1800
      %v1821 = vadd.f32 %v1567, %v1803
      %s1822 = sadd.s32 %s195, 2
      %s1823 = smul.u32 %s1822, 3
      %s1824 = smul.addr %s1823, 4
      %s1825 = scalar_lea.vmem %s183, %s1824
      %v1826 = vld [vmem:[%s1825] sm:$0xf]
      %v1827 = vld [vmem:[%s1825 + $0x4] sm:$0xf]
      %v1828 = vld [vmem:[%s1825 + $0xc] sm:$0xf]
      %v1829 = vld [vmem:[%s1825 + $0x10] sm:$0xf]
      %v1830 = vld [vmem:[%s1825 + $0x18] sm:$0xf]
      %v1831 = vld [vmem:[%s1825 + $0x1c] sm:$0xf]
      %v1832 = vld [vmem:[%s1825 + $0x24] sm:$0xf]
      %v1833 = vld [vmem:[%s1825 + $0x28] sm:$0xf]
      %v1834 = vld [vmem:[%s1825 + $0x30] sm:$0xf]
      %v1835 = vld [vmem:[%s1825 + $0x34] sm:$0xf]
      %v1836 = vld [vmem:[%s1825 + $0x3c] sm:$0xf]
      %v1837 = vld [vmem:[%s1825 + $0x40] sm:$0xf]
      %v1838 = vld [vmem:[%s1825 + $0x48] sm:$0xf]
      %v1839 = vld [vmem:[%s1825 + $0x4c] sm:$0xf]
      %v1840 = vld [vmem:[%s1825 + $0x54] sm:$0xf]
      %v1841 = vld [vmem:[%s1825 + $0x58] sm:$0xf]
      %s1842 = scalar_lea.vmem %s1, 12
      %v1843 = vld [vmem:[%s1842] sm:$0x3]
      %v1860 = vunpack.c.l.b16 %v1826
      %v1861 = vunpack.c.l.b16 %v1827
      %v1862 = vunpack.c.l.b16 %v1828
      %v1863 = vunpack.c.l.b16 %v1829
      %v1864 = vunpack.c.l.b16 %v1830
      %v1865 = vunpack.c.l.b16 %v1831
      %v1866 = vunpack.c.l.b16 %v1832
      %v1867 = vunpack.c.l.b16 %v1833
      %v1868 = vunpack.c.l.b16 %v1834
      %v1869 = vunpack.c.l.b16 %v1835
      %v1870 = vunpack.c.l.b16 %v1836
      %v1871 = vunpack.c.l.b16 %v1837
      %v1872 = vunpack.c.l.b16 %v1838
      %v1873 = vunpack.c.l.b16 %v1839
      %v1874 = vunpack.c.l.b16 %v1840
      %v1875 = vunpack.c.l.b16 %v1841
      %v1876 = vpack.c.b16 %v1861, %v1860
      %v1877 = vpack.c.b16 %v1863, %v1862
      %v1878 = vpack.c.b16 %v1865, %v1864
      %v1879 = vpack.c.b16 %v1867, %v1866
      %v1880 = vpack.c.b16 %v1869, %v1868
      %v1881 = vpack.c.b16 %v1871, %v1870
      %v1882 = vpack.c.b16 %v1873, %v1872
      %v1883 = vpack.c.b16 %v1875, %v1874
      %v1885 = vsel %vm445, %v1876, 0
      %v1888 = vsel %vm445, %v1877, 0
      %v1891 = vsel %vm445, %v1878, 0
      %v1894 = vsel %vm445, %v1879, 0
      %v1897 = vsel %vm445, %v1880, 0
      %v1900 = vsel %vm445, %v1881, 0
      %v1903 = vsel %vm445, %v1882, 0
      %v1906 = vsel %vm445, %v1883, 0
      %v1909 = vsel %vm470, %v1843, 0
      %1911 = vmatprep.subr.bf16.mxu0 0
      %1912 = vmatpush1.bf16.msra.mxu0 %v1909
      %1913 = vmatprep.subr.bf16.mxu0 0
      %1914 = vmatpush1.bf16.msra.mxu0 0
      %1915 = vmatprep.subr.bf16.mxu0 0
      %1916 = vmatpush1.bf16.msra.mxu0 0
      %1917 = vmatprep.subr.bf16.mxu0 0
      %1918 = vmatpush1.bf16.msra.mxu0 0
      %1919 = vmatprep.subr.bf16.mxu0 0
      %1920 = vmatpush1.bf16.msra.mxu0 0
      %1921 = vmatprep.subr.bf16.mxu0 0
      %1922 = vmatpush1.bf16.msra.mxu0 0
      %1923 = vmatprep.subr.bf16.mxu0 0
      %1924 = vmatpush1.bf16.msra.mxu0 0
      %1925 = vmatprep.subr.bf16.mxu0 0
      %1926 = vmatpush1.bf16.msra.mxu0 0
      %1927 = vmatprep.subr.bf16.mxu0 0
      %1928 = vmatpush1.bf16.msra.mxu0 0
      %1929 = vmatprep.subr.bf16.mxu0 0
      %1930 = vmatpush1.bf16.msra.mxu0 0
      %1931 = vmatprep.subr.bf16.mxu0 0
      %1932 = vmatpush1.bf16.msra.mxu0 0
      %1933 = vmatprep.subr.bf16.mxu0 0
      %1934 = vmatpush1.bf16.msra.mxu0 0
      %1935 = vmatprep.subr.bf16.mxu0 0
      %1936 = vmatpush1.bf16.msra.mxu0 0
      %1937 = vmatprep.subr.bf16.mxu0 0
      %1938 = vmatpush1.bf16.msra.mxu0 0
      %1939 = vmatprep.subr.bf16.mxu0 0
      %1940 = vmatpush1.bf16.msra.mxu0 0
      %1941 = vmatprep.subr.bf16.mxu0 0
      %1942 = vmatpush1.bf16.msra.mxu0 0
      %1943 = vmatprep.mubr.bf16.mxu0 0
      %1944 = vmatmul.mubr.bf16.gmra.mrb[0].mxu0 %v1885
      %v1945 = vpop.f32.mrb[0].mxu0
      %v1946 = vadd.f32 0.0, %v1945
      %v1947 = vpop.f32.mrb[0].mxu0
      %v1948 = vpop.f32.mrb[0].mxu0
      %v1949 = vadd.f32 0.0, %v1948
      %v1950 = vpop.f32.mrb[0].mxu0
      %1951 = vmatprep.mubr.bf16.mxu0 0
      %1952 = vmatmul.mubr.bf16.gmra.mrb[0].mxu0 %v1888
      %v1953 = vpop.f32.mrb[0].mxu0
      %v1954 = vadd.f32 0.0, %v1953
      %v1955 = vpop.f32.mrb[0].mxu0
      %v1956 = vpop.f32.mrb[0].mxu0
      %v1957 = vadd.f32 0.0, %v1956
      %v1958 = vpop.f32.mrb[0].mxu0
      %1959 = vmatprep.mubr.bf16.mxu0 0
      %1960 = vmatmul.mubr.bf16.gmra.mrb[0].mxu0 %v1891
      %v1961 = vpop.f32.mrb[0].mxu0
      %v1962 = vadd.f32 0.0, %v1961
      %v1963 = vpop.f32.mrb[0].mxu0
      %v1964 = vpop.f32.mrb[0].mxu0
      %v1965 = vadd.f32 0.0, %v1964
      %v1966 = vpop.f32.mrb[0].mxu0
      %1967 = vmatprep.mubr.bf16.mxu0 0
      %1968 = vmatmul.mubr.bf16.gmra.mrb[0].mxu0 %v1894
      %v1969 = vpop.f32.mrb[0].mxu0
      %v1970 = vadd.f32 0.0, %v1969
      %v1971 = vpop.f32.mrb[0].mxu0
      %v1972 = vpop.f32.mrb[0].mxu0
      %v1973 = vadd.f32 0.0, %v1972
      %v1974 = vpop.f32.mrb[0].mxu0
      %1975 = vmatprep.mubr.bf16.mxu0 0
      %1976 = vmatmul.mubr.bf16.gmra.mrb[0].mxu0 %v1897
      %v1977 = vpop.f32.mrb[0].mxu0
      %v1978 = vadd.f32 0.0, %v1977
      %v1979 = vpop.f32.mrb[0].mxu0
      %v1980 = vpop.f32.mrb[0].mxu0
      %v1981 = vadd.f32 0.0, %v1980
      %v1982 = vpop.f32.mrb[0].mxu0
      %1983 = vmatprep.mubr.bf16.mxu0 0
      %1984 = vmatmul.mubr.bf16.gmra.mrb[0].mxu0 %v1900
      %v1985 = vpop.f32.mrb[0].mxu0
      %v1986 = vadd.f32 0.0, %v1985
      %v1987 = vpop.f32.mrb[0].mxu0
      %v1988 = vpop.f32.mrb[0].mxu0
      %v1989 = vadd.f32 0.0, %v1988
      %v1990 = vpop.f32.mrb[0].mxu0
      %1991 = vmatprep.mubr.bf16.mxu0 0
      %1992 = vmatmul.mubr.bf16.gmra.mrb[0].mxu0 %v1903
      %v1993 = vpop.f32.mrb[0].mxu0
      %v1994 = vadd.f32 0.0, %v1993
      %v1995 = vpop.f32.mrb[0].mxu0
      %v1996 = vpop.f32.mrb[0].mxu0
      %v1997 = vadd.f32 0.0, %v1996
      %v1998 = vpop.f32.mrb[0].mxu0
      %1999 = vmatprep.mubr.bf16.mxu0 0
      %2000 = vmatmul.mubr.bf16.gmra.mrb[0].mxu0 %v1906
      %v2001 = vpop.f32.mrb[0].mxu0
      %v2002 = vadd.f32 0.0, %v2001
      %v2003 = vpop.f32.mrb[0].mxu0
      %v2004 = vpop.f32.mrb[0].mxu0
      %v2005 = vadd.f32 0.0, %v2004
      %v2006 = vpop.f32.mrb[0].mxu0
      %2007 = vdwg.mxu0
      %v2008 = vadd.f32 %v1806, %v1946
      %v2009 = vadd.f32 %v1807, %v1949
      %v2010 = vadd.f32 %v1808, %v1954
      %v2011 = vadd.f32 %v1809, %v1957
      %v2012 = vadd.f32 %v1810, %v1962
      %v2013 = vadd.f32 %v1811, %v1965
      %v2014 = vadd.f32 %v1812, %v1970
      %v2015 = vadd.f32 %v1813, %v1973
      %v2016 = vadd.f32 %v1814, %v1978
      %v2017 = vadd.f32 %v1815, %v1981
      %v2018 = vadd.f32 %v1816, %v1986
      %v2019 = vadd.f32 %v1817, %v1989
      %v2020 = vadd.f32 %v1818, %v1994
      %v2021 = vadd.f32 %v1819, %v1997
      %v2022 = vadd.f32 %v1820, %v2002
      %v2023 = vadd.f32 %v1821, %v2005
      %v2024 = vld [vmem:[%s1825] sm:$0xf]
      %v2025 = vld [vmem:[%s1825 + $0x4] sm:$0xf]
      %v2026 = vld [vmem:[%s1825 + $0x8] sm:$0x1]
      %v2027 = vld [vmem:[%s1825 + $0xc] sm:$0xf]
      %v2028 = vld [vmem:[%s1825 + $0x10] sm:$0xf]
      %v2029 = vld [vmem:[%s1825 + $0x14] sm:$0x1]
      %v2030 = vld [vmem:[%s1825 + $0x18] sm:$0xf]
      %v2031 = vld [vmem:[%s1825 + $0x1c] sm:$0xf]
      %v2032 = vld [vmem:[%s1825 + $0x20] sm:$0x1]
      %v2033 = vld [vmem:[%s1825 + $0x24] sm:$0xf]
      %v2034 = vld [vmem:[%s1825 + $0x28] sm:$0xf]
      %v2035 = vld [vmem:[%s1825 + $0x2c] sm:$0x1]
      %v2036 = vld [vmem:[%s1825 + $0x30] sm:$0xf]
      %v2037 = vld [vmem:[%s1825 + $0x34] sm:$0xf]
      %v2038 = vld [vmem:[%s1825 + $0x38] sm:$0x1]
      %v2039 = vld [vmem:[%s1825 + $0x3c] sm:$0xf]
      %v2040 = vld [vmem:[%s1825 + $0x40] sm:$0xf]
      %v2041 = vld [vmem:[%s1825 + $0x44] sm:$0x1]
      %v2042 = vld [vmem:[%s1825 + $0x48] sm:$0xf]
      %v2043 = vld [vmem:[%s1825 + $0x4c] sm:$0xf]
      %v2044 = vld [vmem:[%s1825 + $0x50] sm:$0x1]
      %v2045 = vld [vmem:[%s1825 + $0x54] sm:$0xf]
      %v2046 = vld [vmem:[%s1825 + $0x58] sm:$0xf]
      %v2047 = vld [vmem:[%s1825 + $0x5c] sm:$0x1]
      %v2049 = vshrl.u32 %v2024, 16
      %v2051 = vrot.slane %v2049, 4
      %v2052 = vshll.u32 %v2024, 16
      %v2054 = vrot.slane %v2052, 5
      %v2055 = vor.u32 %v2051, %v2054
      %v2056 = vrot.slane %v2055, 4
      %v2058 = vshll.u32 %v2025, 16
      %v2060 = vrot.slane %v2058, 5
      %v2061 = vsel %vm226, %v2056, %v2060
      %v2062 = vshrl.u32 %v2025, 16
      %v2064 = vrot.slane %v2062, 4
      %v2065 = vor.u32 %v2064, %v2060
      %v2066 = vrot.slane %v2065, 4
      %v2068 = vshll.u32 %v2026, 16
      %v2070 = vrot.slane %v2068, 5
      %v2071 = vsel %vm226, %v2066, %v2070
      %v2073 = vshrl.u32 %v2027, 16
      %v2075 = vrot.slane %v2073, 4
      %v2076 = vshll.u32 %v2027, 16
      %v2078 = vrot.slane %v2076, 5
      %v2079 = vor.u32 %v2075, %v2078
      %v2080 = vrot.slane %v2079, 4
      %v2082 = vshll.u32 %v2028, 16
      %v2084 = vrot.slane %v2082, 5
      %v2085 = vsel %vm226, %v2080, %v2084
      %v2086 = vshrl.u32 %v2028, 16
      %v2088 = vrot.slane %v2086, 4
      %v2089 = vor.u32 %v2088, %v2084
      %v2090 = vrot.slane %v2089, 4
      %v2092 = vshll.u32 %v2029, 16
      %v2094 = vrot.slane %v2092, 5
      %v2095 = vsel %vm226, %v2090, %v2094
      %v2097 = vshrl.u32 %v2030, 16
      %v2099 = vrot.slane %v2097, 4
      %v2100 = vshll.u32 %v2030, 16
      %v2102 = vrot.slane %v2100, 5
      %v2103 = vor.u32 %v2099, %v2102
      %v2104 = vrot.slane %v2103, 4
      %v2106 = vshll.u32 %v2031, 16
      %v2108 = vrot.slane %v2106, 5
      %v2109 = vsel %vm226, %v2104, %v2108
      %v2110 = vshrl.u32 %v2031, 16
      %v2112 = vrot.slane %v2110, 4
      %v2113 = vor.u32 %v2112, %v2108
      %v2114 = vrot.slane %v2113, 4
      %v2116 = vshll.u32 %v2032, 16
      %v2118 = vrot.slane %v2116, 5
      %v2119 = vsel %vm226, %v2114, %v2118
      %v2121 = vshrl.u32 %v2033, 16
      %v2123 = vrot.slane %v2121, 4
      %v2124 = vshll.u32 %v2033, 16
      %v2126 = vrot.slane %v2124, 5
      %v2127 = vor.u32 %v2123, %v2126
      %v2128 = vrot.slane %v2127, 4
      %v2130 = vshll.u32 %v2034, 16
      %v2132 = vrot.slane %v2130, 5
      %v2133 = vsel %vm226, %v2128, %v2132
      %v2134 = vshrl.u32 %v2034, 16
      %v2136 = vrot.slane %v2134, 4
      %v2137 = vor.u32 %v2136, %v2132
      %v2138 = vrot.slane %v2137, 4
      %v2140 = vshll.u32 %v2035, 16
      %v2142 = vrot.slane %v2140, 5
      %v2143 = vsel %vm226, %v2138, %v2142
      %v2145 = vshrl.u32 %v2036, 16
      %v2147 = vrot.slane %v2145, 4
      %v2148 = vshll.u32 %v2036, 16
      %v2150 = vrot.slane %v2148, 5
      %v2151 = vor.u32 %v2147, %v2150
      %v2152 = vrot.slane %v2151, 4
      %v2154 = vshll.u32 %v2037, 16
      %v2156 = vrot.slane %v2154, 5
      %v2157 = vsel %vm226, %v2152, %v2156
      %v2158 = vshrl.u32 %v2037, 16
      %v2160 = vrot.slane %v2158, 4
      %v2161 = vor.u32 %v2160, %v2156
      %v2162 = vrot.slane %v2161, 4
      %v2164 = vshll.u32 %v2038, 16
      %v2166 = vrot.slane %v2164, 5
      %v2167 = vsel %vm226, %v2162, %v2166
      %v2169 = vshrl.u32 %v2039, 16
      %v2171 = vrot.slane %v2169, 4
      %v2172 = vshll.u32 %v2039, 16
      %v2174 = vrot.slane %v2172, 5
      %v2175 = vor.u32 %v2171, %v2174
      %v2176 = vrot.slane %v2175, 4
      %v2178 = vshll.u32 %v2040, 16
      %v2180 = vrot.slane %v2178, 5
      %v2181 = vsel %vm226, %v2176, %v2180
      %v2182 = vshrl.u32 %v2040, 16
      %v2184 = vrot.slane %v2182, 4
      %v2185 = vor.u32 %v2184, %v2180
      %v2186 = vrot.slane %v2185, 4
      %v2188 = vshll.u32 %v2041, 16
      %v2190 = vrot.slane %v2188, 5
      %v2191 = vsel %vm226, %v2186, %v2190
      %v2193 = vshrl.u32 %v2042, 16
      %v2195 = vrot.slane %v2193, 4
      %v2196 = vshll.u32 %v2042, 16
      %v2198 = vrot.slane %v2196, 5
      %v2199 = vor.u32 %v2195, %v2198
      %v2200 = vrot.slane %v2199, 4
      %v2202 = vshll.u32 %v2043, 16
      %v2204 = vrot.slane %v2202, 5
      %v2205 = vsel %vm226, %v2200, %v2204
      %v2206 = vshrl.u32 %v2043, 16
      %v2208 = vrot.slane %v2206, 4
      %v2209 = vor.u32 %v2208, %v2204
      %v2210 = vrot.slane %v2209, 4
      %v2212 = vshll.u32 %v2044, 16
      %v2214 = vrot.slane %v2212, 5
      %v2215 = vsel %vm226, %v2210, %v2214
      %v2217 = vshrl.u32 %v2045, 16
      %v2219 = vrot.slane %v2217, 4
      %v2220 = vshll.u32 %v2045, 16
      %v2222 = vrot.slane %v2220, 5
      %v2223 = vor.u32 %v2219, %v2222
      %v2224 = vrot.slane %v2223, 4
      %v2226 = vshll.u32 %v2046, 16
      %v2228 = vrot.slane %v2226, 5
      %v2229 = vsel %vm226, %v2224, %v2228
      %v2230 = vshrl.u32 %v2046, 16
      %v2232 = vrot.slane %v2230, 4
      %v2233 = vor.u32 %v2232, %v2228
      %v2234 = vrot.slane %v2233, 4
      %v2236 = vshll.u32 %v2047, 16
      %v2238 = vrot.slane %v2236, 5
      %v2239 = vsel %vm226, %v2234, %v2238
      %s2240 = scalar_lea.vmem %s1, 14
      %v2241 = vld [vmem:[%s2240] sm:$0x3]
      %v2242 = vunpack.c.l.b16 %v2061
      %v2243 = vunpack.c.l.b16 %v2071
      %v2244 = vunpack.c.l.b16 %v2085
      %v2245 = vunpack.c.l.b16 %v2095
      %v2246 = vunpack.c.l.b16 %v2109
      %v2247 = vunpack.c.l.b16 %v2119
      %v2248 = vunpack.c.l.b16 %v2133
      %v2249 = vunpack.c.l.b16 %v2143
      %v2250 = vunpack.c.l.b16 %v2157
      %v2251 = vunpack.c.l.b16 %v2167
      %v2252 = vunpack.c.l.b16 %v2181
      %v2253 = vunpack.c.l.b16 %v2191
      %v2254 = vunpack.c.l.b16 %v2205
      %v2255 = vunpack.c.l.b16 %v2215
      %v2256 = vunpack.c.l.b16 %v2229
      %v2257 = vunpack.c.l.b16 %v2239
      %v2258 = vpack.c.b16 %v2243, %v2242
      %v2259 = vpack.c.b16 %v2245, %v2244
      %v2260 = vpack.c.b16 %v2247, %v2246
      %v2261 = vpack.c.b16 %v2249, %v2248
      %v2262 = vpack.c.b16 %v2251, %v2250
      %v2263 = vpack.c.b16 %v2253, %v2252
      %v2264 = vpack.c.b16 %v2255, %v2254
      %v2265 = vpack.c.b16 %v2257, %v2256
      %v2267 = vsel %vm445, %v2258, 0
      %v2270 = vsel %vm445, %v2259, 0
      %v2273 = vsel %vm445, %v2260, 0
      %v2276 = vsel %vm445, %v2261, 0
      %v2279 = vsel %vm445, %v2262, 0
      %v2282 = vsel %vm445, %v2263, 0
      %v2285 = vsel %vm445, %v2264, 0
      %v2288 = vsel %vm445, %v2265, 0
      %v2291 = vsel %vm470, %v2241, 0
      %2293 = vmatprep.subr.bf16.mxu0 0
      %2294 = vmatpush1.bf16.msra.mxu0 %v2291
      %2295 = vmatprep.subr.bf16.mxu0 0
      %2296 = vmatpush1.bf16.msra.mxu0 0
      %2297 = vmatprep.subr.bf16.mxu0 0
      %2298 = vmatpush1.bf16.msra.mxu0 0
      %2299 = vmatprep.subr.bf16.mxu0 0
      %2300 = vmatpush1.bf16.msra.mxu0 0
      %2301 = vmatprep.subr.bf16.mxu0 0
      %2302 = vmatpush1.bf16.msra.mxu0 0
      %2303 = vmatprep.subr.bf16.mxu0 0
      %2304 = vmatpush1.bf16.msra.mxu0 0
      %2305 = vmatprep.subr.bf16.mxu0 0
      %2306 = vmatpush1.bf16.msra.mxu0 0
      %2307 = vmatprep.subr.bf16.mxu0 0
      %2308 = vmatpush1.bf16.msra.mxu0 0
      %2309 = vmatprep.subr.bf16.mxu0 0
      %2310 = vmatpush1.bf16.msra.mxu0 0
      %2311 = vmatprep.subr.bf16.mxu0 0
      %2312 = vmatpush1.bf16.msra.mxu0 0
      %2313 = vmatprep.subr.bf16.mxu0 0
      %2314 = vmatpush1.bf16.msra.mxu0 0
      %2315 = vmatprep.subr.bf16.mxu0 0
      %2316 = vmatpush1.bf16.msra.mxu0 0
      %2317 = vmatprep.subr.bf16.mxu0 0
      %2318 = vmatpush1.bf16.msra.mxu0 0
      %2319 = vmatprep.subr.bf16.mxu0 0
      %2320 = vmatpush1.bf16.msra.mxu0 0
      %2321 = vmatprep.subr.bf16.mxu0 0
      %2322 = vmatpush1.bf16.msra.mxu0 0
      %2323 = vmatprep.subr.bf16.mxu0 0
      %2324 = vmatpush1.bf16.msra.mxu0 0
      %2325 = vmatprep.mubr.bf16.mxu0 0
      %2326 = vmatmul.mubr.bf16.gmra.mrb[0].mxu0 %v2267
      %v2327 = vpop.f32.mrb[0].mxu0
      %v2328 = vadd.f32 0.0, %v2327
      %v2329 = vpop.f32.mrb[0].mxu0
      %v2330 = vpop.f32.mrb[0].mxu0
      %v2331 = vadd.f32 0.0, %v2330
      %v2332 = vpop.f32.mrb[0].mxu0
      %2333 = vmatprep.mubr.bf16.mxu0 0
      %2334 = vmatmul.mubr.bf16.gmra.mrb[0].mxu0 %v2270
      %v2335 = vpop.f32.mrb[0].mxu0
      %v2336 = vadd.f32 0.0, %v2335
      %v2337 = vpop.f32.mrb[0].mxu0
      %v2338 = vpop.f32.mrb[0].mxu0
      %v2339 = vadd.f32 0.0, %v2338
      %v2340 = vpop.f32.mrb[0].mxu0
      %2341 = vmatprep.mubr.bf16.mxu0 0
      %2342 = vmatmul.mubr.bf16.gmra.mrb[0].mxu0 %v2273
      %v2343 = vpop.f32.mrb[0].mxu0
      %v2344 = vadd.f32 0.0, %v2343
      %v2345 = vpop.f32.mrb[0].mxu0
      %v2346 = vpop.f32.mrb[0].mxu0
      %v2347 = vadd.f32 0.0, %v2346
      %v2348 = vpop.f32.mrb[0].mxu0
      %2349 = vmatprep.mubr.bf16.mxu0 0
      %2350 = vmatmul.mubr.bf16.gmra.mrb[0].mxu0 %v2276
      %v2351 = vpop.f32.mrb[0].mxu0
      %v2352 = vadd.f32 0.0, %v2351
      %v2353 = vpop.f32.mrb[0].mxu0
      %v2354 = vpop.f32.mrb[0].mxu0
      %v2355 = vadd.f32 0.0, %v2354
      %v2356 = vpop.f32.mrb[0].mxu0
      %2357 = vmatprep.mubr.bf16.mxu0 0
      %2358 = vmatmul.mubr.bf16.gmra.mrb[0].mxu0 %v2279
      %v2359 = vpop.f32.mrb[0].mxu0
      %v2360 = vadd.f32 0.0, %v2359
      %v2361 = vpop.f32.mrb[0].mxu0
      %v2362 = vpop.f32.mrb[0].mxu0
      %v2363 = vadd.f32 0.0, %v2362
      %v2364 = vpop.f32.mrb[0].mxu0
      %2365 = vmatprep.mubr.bf16.mxu0 0
      %2366 = vmatmul.mubr.bf16.gmra.mrb[0].mxu0 %v2282
      %v2367 = vpop.f32.mrb[0].mxu0
      %v2368 = vadd.f32 0.0, %v2367
      %v2369 = vpop.f32.mrb[0].mxu0
      %v2370 = vpop.f32.mrb[0].mxu0
      %v2371 = vadd.f32 0.0, %v2370
      %v2372 = vpop.f32.mrb[0].mxu0
      %2373 = vmatprep.mubr.bf16.mxu0 0
      %2374 = vmatmul.mubr.bf16.gmra.mrb[0].mxu0 %v2285
      %v2375 = vpop.f32.mrb[0].mxu0
      %v2376 = vadd.f32 0.0, %v2375
      %v2377 = vpop.f32.mrb[0].mxu0
      %v2378 = vpop.f32.mrb[0].mxu0
      %v2379 = vadd.f32 0.0, %v2378
      %v2380 = vpop.f32.mrb[0].mxu0
      %2381 = vmatprep.mubr.bf16.mxu0 0
      %2382 = vmatmul.mubr.bf16.gmra.mrb[0].mxu0 %v2288
      %v2383 = vpop.f32.mrb[0].mxu0
      %v2384 = vadd.f32 0.0, %v2383
      %v2385 = vpop.f32.mrb[0].mxu0
      %v2386 = vpop.f32.mrb[0].mxu0
      %v2387 = vadd.f32 0.0, %v2386
      %v2388 = vpop.f32.mrb[0].mxu0
      %2389 = vdwg.mxu0
      %v2390 = vadd.f32 %v2008, %v2328
      %v2391 = vadd.f32 %v2009, %v2331
      %v2392 = vadd.f32 %v2010, %v2336
      %v2393 = vadd.f32 %v2011, %v2339
      %v2394 = vadd.f32 %v2012, %v2344
      %v2395 = vadd.f32 %v2013, %v2347
      %v2396 = vadd.f32 %v2014, %v2352
      %v2397 = vadd.f32 %v2015, %v2355
      %v2398 = vadd.f32 %v2016, %v2360
      %v2399 = vadd.f32 %v2017, %v2363
      %v2400 = vadd.f32 %v2018, %v2368
      %v2401 = vadd.f32 %v2019, %v2371
      %v2402 = vadd.f32 %v2020, %v2376
      %v2403 = vadd.f32 %v2021, %v2379
      %v2404 = vadd.f32 %v2022, %v2384
      %v2405 = vadd.f32 %v2023, %v2387
      %v2406 = vld [vmem:[%s1825] sm:$0xe]
      %v2407 = vld [vmem:[%s1825 + $0xc] sm:$0xe]
      %v2408 = vld [vmem:[%s1825 + $0x18] sm:$0xe]
      %v2409 = vld [vmem:[%s1825 + $0x24] sm:$0xe]
      %v2410 = vld [vmem:[%s1825 + $0x30] sm:$0xe]
      %v2411 = vld [vmem:[%s1825 + $0x3c] sm:$0xe]
      %v2412 = vld [vmem:[%s1825 + $0x48] sm:$0xe]
      %v2413 = vld [vmem:[%s1825 + $0x54] sm:$0xe]
      %v2438 = vrot.slane %v2406, 5
      %v2439 = vrot.slane %v2438, 4
      %v2440 = vrot.slane %v2025, 5
      %v2441 = vsel %vm761, %v2439, %v2440
      %v2442 = vrot.slane %v2440, 4
      %v2443 = vrot.slane %v2026, 5
      %v2444 = vsel %vm761, %v2442, %v2443
      %v2445 = vrot.slane %v2407, 5
      %v2446 = vrot.slane %v2445, 4
      %v2447 = vrot.slane %v2028, 5
      %v2448 = vsel %vm761, %v2446, %v2447
      %v2449 = vrot.slane %v2447, 4
      %v2450 = vrot.slane %v2029, 5
      %v2451 = vsel %vm761, %v2449, %v2450
      %v2452 = vrot.slane %v2408, 5
      %v2453 = vrot.slane %v2452, 4
      %v2454 = vrot.slane %v2031, 5
      %v2455 = vsel %vm761, %v2453, %v2454
      %v2456 = vrot.slane %v2454, 4
      %v2457 = vrot.slane %v2032, 5
      %v2458 = vsel %vm761, %v2456, %v2457
      %v2459 = vrot.slane %v2409, 5
      %v2460 = vrot.slane %v2459, 4
      %v2461 = vrot.slane %v2034, 5
      %v2462 = vsel %vm761, %v2460, %v2461
      %v2463 = vrot.slane %v2461, 4
      %v2464 = vrot.slane %v2035, 5
      %v2465 = vsel %vm761, %v2463, %v2464
      %v2466 = vrot.slane %v2410, 5
      %v2467 = vrot.slane %v2466, 4
      %v2468 = vrot.slane %v2037, 5
      %v2469 = vsel %vm761, %v2467, %v2468
      %v2470 = vrot.slane %v2468, 4
      %v2471 = vrot.slane %v2038, 5
      %v2472 = vsel %vm761, %v2470, %v2471
      %v2473 = vrot.slane %v2411, 5
      %v2474 = vrot.slane %v2473, 4
      %v2475 = vrot.slane %v2040, 5
      %v2476 = vsel %vm761, %v2474, %v2475
      %v2477 = vrot.slane %v2475, 4
      %v2478 = vrot.slane %v2041, 5
      %v2479 = vsel %vm761, %v2477, %v2478
      %v2480 = vrot.slane %v2412, 5
      %v2481 = vrot.slane %v2480, 4
      %v2482 = vrot.slane %v2043, 5
      %v2483 = vsel %vm761, %v2481, %v2482
      %v2484 = vrot.slane %v2482, 4
      %v2485 = vrot.slane %v2044, 5
      %v2486 = vsel %vm761, %v2484, %v2485
      %v2487 = vrot.slane %v2413, 5
      %v2488 = vrot.slane %v2487, 4
      %v2489 = vrot.slane %v2046, 5
      %v2490 = vsel %vm761, %v2488, %v2489
      %v2491 = vrot.slane %v2489, 4
      %v2492 = vrot.slane %v2047, 5
      %v2493 = vsel %vm761, %v2491, %v2492
      %s2494 = scalar_lea.vmem %s1, 16
      %v2495 = vld [vmem:[%s2494] sm:$0x3]
      %v2496 = vunpack.c.l.b16 %v2441
      %v2497 = vunpack.c.l.b16 %v2444
      %v2498 = vunpack.c.l.b16 %v2448
      %v2499 = vunpack.c.l.b16 %v2451
      %v2500 = vunpack.c.l.b16 %v2455
      %v2501 = vunpack.c.l.b16 %v2458
      %v2502 = vunpack.c.l.b16 %v2462
      %v2503 = vunpack.c.l.b16 %v2465
      %v2504 = vunpack.c.l.b16 %v2469
      %v2505 = vunpack.c.l.b16 %v2472
      %v2506 = vunpack.c.l.b16 %v2476
      %v2507 = vunpack.c.l.b16 %v2479
      %v2508 = vunpack.c.l.b16 %v2483
      %v2509 = vunpack.c.l.b16 %v2486
      %v2510 = vunpack.c.l.b16 %v2490
      %v2511 = vunpack.c.l.b16 %v2493
      %v2512 = vpack.c.b16 %v2497, %v2496
      %v2513 = vpack.c.b16 %v2499, %v2498
      %v2514 = vpack.c.b16 %v2501, %v2500
      %v2515 = vpack.c.b16 %v2503, %v2502
      %v2516 = vpack.c.b16 %v2505, %v2504
      %v2517 = vpack.c.b16 %v2507, %v2506
      %v2518 = vpack.c.b16 %v2509, %v2508
      %v2519 = vpack.c.b16 %v2511, %v2510
      %v2521 = vsel %vm445, %v2512, 0
      %v2524 = vsel %vm445, %v2513, 0
      %v2527 = vsel %vm445, %v2514, 0
      %v2530 = vsel %vm445, %v2515, 0
      %v2533 = vsel %vm445, %v2516, 0
      %v2536 = vsel %vm445, %v2517, 0
      %v2539 = vsel %vm445, %v2518, 0
      %v2542 = vsel %vm445, %v2519, 0
      %v2545 = vsel %vm470, %v2495, 0
      %2547 = vmatprep.subr.bf16.mxu0 0
      %2548 = vmatpush1.bf16.msra.mxu0 %v2545
      %2549 = vmatprep.subr.bf16.mxu0 0
      %2550 = vmatpush1.bf16.msra.mxu0 0
      %2551 = vmatprep.subr.bf16.mxu0 0
      %2552 = vmatpush1.bf16.msra.mxu0 0
      %2553 = vmatprep.subr.bf16.mxu0 0
      %2554 = vmatpush1.bf16.msra.mxu0 0
      %2555 = vmatprep.subr.bf16.mxu0 0
      %2556 = vmatpush1.bf16.msra.mxu0 0
      %2557 = vmatprep.subr.bf16.mxu0 0
      %2558 = vmatpush1.bf16.msra.mxu0 0
      %2559 = vmatprep.subr.bf16.mxu0 0
      %2560 = vmatpush1.bf16.msra.mxu0 0
      %2561 = vmatprep.subr.bf16.mxu0 0
      %2562 = vmatpush1.bf16.msra.mxu0 0
      %2563 = vmatprep.subr.bf16.mxu0 0
      %2564 = vmatpush1.bf16.msra.mxu0 0
      %2565 = vmatprep.subr.bf16.mxu0 0
      %2566 = vmatpush1.bf16.msra.mxu0 0
      %2567 = vmatprep.subr.bf16.mxu0 0
      %2568 = vmatpush1.bf16.msra.mxu0 0
      %2569 = vmatprep.subr.bf16.mxu0 0
      %2570 = vmatpush1.bf16.msra.mxu0 0
      %2571 = vmatprep.subr.bf16.mxu0 0
      %2572 = vmatpush1.bf16.msra.mxu0 0
      %2573 = vmatprep.subr.bf16.mxu0 0
      %2574 = vmatpush1.bf16.msra.mxu0 0
      %2575 = vmatprep.subr.bf16.mxu0 0
      %2576 = vmatpush1.bf16.msra.mxu0 0
      %2577 = vmatprep.subr.bf16.mxu0 0
      %2578 = vmatpush1.bf16.msra.mxu0 0
      %2579 = vmatprep.mubr.bf16.mxu0 0
      %2580 = vmatmul.mubr.bf16.gmra.mrb[0].mxu0 %v2521
      %v2581 = vpop.f32.mrb[0].mxu0
      %v2582 = vadd.f32 0.0, %v2581
      %v2583 = vpop.f32.mrb[0].mxu0
      %v2584 = vpop.f32.mrb[0].mxu0
      %v2585 = vadd.f32 0.0, %v2584
      %v2586 = vpop.f32.mrb[0].mxu0
      %2587 = vmatprep.mubr.bf16.mxu0 0
      %2588 = vmatmul.mubr.bf16.gmra.mrb[0].mxu0 %v2524
      %v2589 = vpop.f32.mrb[0].mxu0
      %v2590 = vadd.f32 0.0, %v2589
      %v2591 = vpop.f32.mrb[0].mxu0
      %v2592 = vpop.f32.mrb[0].mxu0
      %v2593 = vadd.f32 0.0, %v2592
      %v2594 = vpop.f32.mrb[0].mxu0
      %2595 = vmatprep.mubr.bf16.mxu0 0
      %2596 = vmatmul.mubr.bf16.gmra.mrb[0].mxu0 %v2527
      %v2597 = vpop.f32.mrb[0].mxu0
      %v2598 = vadd.f32 0.0, %v2597
      %v2599 = vpop.f32.mrb[0].mxu0
      %v2600 = vpop.f32.mrb[0].mxu0
      %v2601 = vadd.f32 0.0, %v2600
      %v2602 = vpop.f32.mrb[0].mxu0
      %2603 = vmatprep.mubr.bf16.mxu0 0
      %2604 = vmatmul.mubr.bf16.gmra.mrb[0].mxu0 %v2530
      %v2605 = vpop.f32.mrb[0].mxu0
      %v2606 = vadd.f32 0.0, %v2605
      %v2607 = vpop.f32.mrb[0].mxu0
      %v2608 = vpop.f32.mrb[0].mxu0
      %v2609 = vadd.f32 0.0, %v2608
      %v2610 = vpop.f32.mrb[0].mxu0
      %2611 = vmatprep.mubr.bf16.mxu0 0
      %2612 = vmatmul.mubr.bf16.gmra.mrb[0].mxu0 %v2533
      %v2613 = vpop.f32.mrb[0].mxu0
      %v2614 = vadd.f32 0.0, %v2613
      %v2615 = vpop.f32.mrb[0].mxu0
      %v2616 = vpop.f32.mrb[0].mxu0
      %v2617 = vadd.f32 0.0, %v2616
      %v2618 = vpop.f32.mrb[0].mxu0
      %2619 = vmatprep.mubr.bf16.mxu0 0
      %2620 = vmatmul.mubr.bf16.gmra.mrb[0].mxu0 %v2536
      %v2621 = vpop.f32.mrb[0].mxu0
      %v2622 = vadd.f32 0.0, %v2621
      %v2623 = vpop.f32.mrb[0].mxu0
      %v2624 = vpop.f32.mrb[0].mxu0
      %v2625 = vadd.f32 0.0, %v2624
      %v2626 = vpop.f32.mrb[0].mxu0
      %2627 = vmatprep.mubr.bf16.mxu0 0
      %2628 = vmatmul.mubr.bf16.gmra.mrb[0].mxu0 %v2539
      %v2629 = vpop.f32.mrb[0].mxu0
      %v2630 = vadd.f32 0.0, %v2629
      %v2631 = vpop.f32.mrb[0].mxu0
      %v2632 = vpop.f32.mrb[0].mxu0
      %v2633 = vadd.f32 0.0, %v2632
      %v2634 = vpop.f32.mrb[0].mxu0
      %2635 = vmatprep.mubr.bf16.mxu0 0
      %2636 = vmatmul.mubr.bf16.gmra.mrb[0].mxu0 %v2542
      %v2637 = vpop.f32.mrb[0].mxu0
      %v2638 = vadd.f32 0.0, %v2637
      %v2639 = vpop.f32.mrb[0].mxu0
      %v2640 = vpop.f32.mrb[0].mxu0
      %v2641 = vadd.f32 0.0, %v2640
      %v2642 = vpop.f32.mrb[0].mxu0
      %2643 = vdwg.mxu0
      %v2644 = vadd.f32 %v2390, %v2582
      %v2645 = vadd.f32 %v2391, %v2585
      %v2646 = vadd.f32 %v2392, %v2590
      %v2647 = vadd.f32 %v2393, %v2593
      %v2648 = vadd.f32 %v2394, %v2598
      %v2649 = vadd.f32 %v2395, %v2601
      %v2650 = vadd.f32 %v2396, %v2606
      %v2651 = vadd.f32 %v2397, %v2609
      %v2652 = vadd.f32 %v2398, %v2614
      %v2653 = vadd.f32 %v2399, %v2617
      %v2654 = vadd.f32 %v2400, %v2622
      %v2655 = vadd.f32 %v2401, %v2625
      %v2656 = vadd.f32 %v2402, %v2630
      %v2657 = vadd.f32 %v2403, %v2633
      %v2658 = vadd.f32 %v2404, %v2638
      %v2659 = vadd.f32 %v2405, %v2641
      %v2660 = vld [vmem:[%s2] sm:$0x1]
      %v2662 = vlaneseq
      %v2663 = vshrl.u32 %v2662, 7
      %v2664 = vsub.s32 0, %v2663
      %v2665 = vrot.slane %v2660, %v2664
      %v2667 = vadd.f32 %v2644, %v2665
      %v2668 = vadd.f32 %v2645, %v2665
      %v2669 = vadd.f32 %v2646, %v2665
      %v2670 = vadd.f32 %v2647, %v2665
      %v2671 = vadd.f32 %v2648, %v2665
      %v2672 = vadd.f32 %v2649, %v2665
      %v2673 = vadd.f32 %v2650, %v2665
      %v2674 = vadd.f32 %v2651, %v2665
      %v2675 = vadd.f32 %v2652, %v2665
      %v2676 = vadd.f32 %v2653, %v2665
      %v2677 = vadd.f32 %v2654, %v2665
      %v2678 = vadd.f32 %v2655, %v2665
      %v2679 = vadd.f32 %v2656, %v2665
      %v2680 = vadd.f32 %v2657, %v2665
      %v2681 = vadd.f32 %v2658, %v2665
      %v2682 = vadd.f32 %v2659, %v2665
      %v2683 = vxor.u32 %v2667, 2147483648
      %v2684 = vxor.u32 %v2668, 2147483648
      %v2685 = vxor.u32 %v2669, 2147483648
      %v2686 = vxor.u32 %v2670, 2147483648
      %v2687 = vxor.u32 %v2671, 2147483648
      %v2688 = vxor.u32 %v2672, 2147483648
      %v2689 = vxor.u32 %v2673, 2147483648
      %v2690 = vxor.u32 %v2674, 2147483648
      %v2691 = vxor.u32 %v2675, 2147483648
      %v2692 = vxor.u32 %v2676, 2147483648
      %v2693 = vxor.u32 %v2677, 2147483648
      %v2694 = vxor.u32 %v2678, 2147483648
      %v2695 = vxor.u32 %v2679, 2147483648
      %v2696 = vxor.u32 %v2680, 2147483648
      %v2697 = vxor.u32 %v2681, 2147483648
      %v2698 = vxor.u32 %v2682, 2147483648
      %v2699 = vmul.f32 %v2683, 1.442695
      %v2700 = vpow.pop %v2699
      %v2701 = vmul.f32 %v2684, 1.442695
      %v2702 = vpow.pop %v2701
      %v2703 = vmul.f32 %v2685, 1.442695
      %v2704 = vpow.pop %v2703
      %v2705 = vmul.f32 %v2686, 1.442695
      %v2706 = vpow.pop %v2705
      %v2707 = vmul.f32 %v2687, 1.442695
      %v2708 = vpow.pop %v2707
      %v2709 = vmul.f32 %v2688, 1.442695
      %v2710 = vpow.pop %v2709
      %v2711 = vmul.f32 %v2689, 1.442695
      %v2712 = vpow.pop %v2711
      %v2713 = vmul.f32 %v2690, 1.442695
      %v2714 = vpow.pop %v2713
      %v2715 = vmul.f32 %v2691, 1.442695
      %v2716 = vpow.pop %v2715
      %v2717 = vmul.f32 %v2692, 1.442695
      %v2718 = vpow.pop %v2717
      %v2719 = vmul.f32 %v2693, 1.442695
      %v2720 = vpow.pop %v2719
      %v2721 = vmul.f32 %v2694, 1.442695
      %v2722 = vpow.pop %v2721
      %v2723 = vmul.f32 %v2695, 1.442695
      %v2724 = vpow.pop %v2723
      %v2725 = vmul.f32 %v2696, 1.442695
      %v2726 = vpow.pop %v2725
      %v2727 = vmul.f32 %v2697, 1.442695
      %v2728 = vpow.pop %v2727
      %v2729 = vmul.f32 %v2698, 1.442695
      %v2730 = vpow.pop %v2729
      %v2731 = vadd.f32 %v2700, 1.0
      %v2732 = vadd.f32 %v2702, 1.0
      %v2733 = vadd.f32 %v2704, 1.0
      %v2734 = vadd.f32 %v2706, 1.0
      %v2735 = vadd.f32 %v2708, 1.0
      %v2736 = vadd.f32 %v2710, 1.0
      %v2737 = vadd.f32 %v2712, 1.0
      %v2738 = vadd.f32 %v2714, 1.0
      %v2739 = vadd.f32 %v2716, 1.0
      %v2740 = vadd.f32 %v2718, 1.0
      %v2741 = vadd.f32 %v2720, 1.0
      %v2742 = vadd.f32 %v2722, 1.0
      %v2743 = vadd.f32 %v2724, 1.0
      %v2744 = vadd.f32 %v2726, 1.0
      %v2745 = vadd.f32 %v2728, 1.0
      %v2746 = vadd.f32 %v2730, 1.0
      %v2747 = vrcp.pop %v2731
      %v2748 = vmul.f32 1.0, %v2747
      %v2749 = vrcp.pop %v2732
      %v2750 = vmul.f32 1.0, %v2749
      %v2751 = vrcp.pop %v2733
      %v2752 = vmul.f32 1.0, %v2751
      %v2753 = vrcp.pop %v2734
      %v2754 = vmul.f32 1.0, %v2753
      %v2755 = vrcp.pop %v2735
      %v2756 = vmul.f32 1.0, %v2755
      %v2757 = vrcp.pop %v2736
      %v2758 = vmul.f32 1.0, %v2757
      %v2759 = vrcp.pop %v2737
      %v2760 = vmul.f32 1.0, %v2759
      %v2761 = vrcp.pop %v2738
      %v2762 = vmul.f32 1.0, %v2761
      %v2763 = vrcp.pop %v2739
      %v2764 = vmul.f32 1.0, %v2763
      %v2765 = vrcp.pop %v2740
      %v2766 = vmul.f32 1.0, %v2765
      %v2767 = vrcp.pop %v2741
      %v2768 = vmul.f32 1.0, %v2767
      %v2769 = vrcp.pop %v2742
      %v2770 = vmul.f32 1.0, %v2769
      %v2771 = vrcp.pop %v2743
      %v2772 = vmul.f32 1.0, %v2771
      %v2773 = vrcp.pop %v2744
      %v2774 = vmul.f32 1.0, %v2773
      %v2775 = vrcp.pop %v2745
      %v2776 = vmul.f32 1.0, %v2775
      %v2777 = vrcp.pop %v2746
      %v2778 = vmul.f32 1.0, %v2777
      %v2779 = vmul.f32 %v2667, %v2748
      %v2780 = vmul.f32 %v2668, %v2750
      %v2781 = vmul.f32 %v2669, %v2752
      %v2782 = vmul.f32 %v2670, %v2754
      %v2783 = vmul.f32 %v2671, %v2756
      %v2784 = vmul.f32 %v2672, %v2758
      %v2785 = vmul.f32 %v2673, %v2760
      %v2786 = vmul.f32 %v2674, %v2762
      %v2787 = vmul.f32 %v2675, %v2764
      %v2788 = vmul.f32 %v2676, %v2766
      %v2789 = vmul.f32 %v2677, %v2768
      %v2790 = vmul.f32 %v2678, %v2770
      %v2791 = vmul.f32 %v2679, %v2772
      %v2792 = vmul.f32 %v2680, %v2774
      %v2793 = vmul.f32 %v2681, %v2776
      %v2794 = vmul.f32 %v2682, %v2778
      %v2795 = vpack.c.bf16 %v2780, %v2779
      %v2796 = vpack.c.bf16 %v2782, %v2781
      %v2797 = vpack.c.bf16 %v2784, %v2783
      %v2798 = vpack.c.bf16 %v2786, %v2785
      %v2799 = vpack.c.bf16 %v2788, %v2787
      %v2800 = vpack.c.bf16 %v2790, %v2789
      %v2801 = vpack.c.bf16 %v2792, %v2791
      %v2802 = vpack.c.bf16 %v2794, %v2793
      %v2811 = vunpack.c.l.b16 %v2795
      %v2812 = vunpack.c.h.b16 %v2795
      %v2813 = vunpack.c.l.b16 %v2796
      %v2814 = vunpack.c.h.b16 %v2796
      %v2815 = vunpack.c.l.b16 %v2797
      %v2816 = vunpack.c.h.b16 %v2797
      %v2817 = vunpack.c.l.b16 %v2798
      %v2818 = vunpack.c.h.b16 %v2798
      %v2819 = vunpack.c.l.b16 %v2799
      %v2820 = vunpack.c.h.b16 %v2799
      %v2821 = vunpack.c.l.b16 %v2800
      %v2822 = vunpack.c.h.b16 %v2800
      %v2823 = vunpack.c.l.b16 %v2801
      %v2824 = vunpack.c.h.b16 %v2801
      %v2825 = vunpack.c.l.b16 %v2802
      %v2826 = vunpack.c.h.b16 %v2802
      %v2827 = vpack.c.b16 %v2811, %v2811
      %v2828 = vpack.c.b16 %v2812, %v2812
      %v2829 = vpack.c.b16 %v2813, %v2813
      %v2830 = vpack.c.b16 %v2814, %v2814
      %v2831 = vpack.c.b16 %v2815, %v2815
      %v2832 = vpack.c.b16 %v2816, %v2816
      %v2833 = vpack.c.b16 %v2817, %v2817
      %v2834 = vpack.c.b16 %v2818, %v2818
      %v2835 = vpack.c.b16 %v2819, %v2819
      %v2836 = vpack.c.b16 %v2820, %v2820
      %v2837 = vpack.c.b16 %v2821, %v2821
      %v2838 = vpack.c.b16 %v2822, %v2822
      %v2839 = vpack.c.b16 %v2823, %v2823
      %v2840 = vpack.c.b16 %v2824, %v2824
      %v2841 = vpack.c.b16 %v2825, %v2825
      %v2842 = vpack.c.b16 %v2826, %v2826
      %2859 = vst [vmem:[%s192] sm:$0xf] %v2827
      %2860 = vst [vmem:[%s192 + $0x4] sm:$0xf] %v2828
      %2861 = vst [vmem:[%s192 + $0x8] sm:$0xf] %v2829
      %2862 = vst [vmem:[%s192 + $0xc] sm:$0xf] %v2830
      %2863 = vst [vmem:[%s192 + $0x10] sm:$0xf] %v2831
      %2864 = vst [vmem:[%s192 + $0x14] sm:$0xf] %v2832
      %2865 = vst [vmem:[%s192 + $0x18] sm:$0xf] %v2833
      %2866 = vst [vmem:[%s192 + $0x1c] sm:$0xf] %v2834
      %2867 = vst [vmem:[%s192 + $0x20] sm:$0xf] %v2835
      %2868 = vst [vmem:[%s192 + $0x24] sm:$0xf] %v2836
      %2869 = vst [vmem:[%s192 + $0x28] sm:$0xf] %v2837
      %2870 = vst [vmem:[%s192 + $0x2c] sm:$0xf] %v2838
      %2871 = vst [vmem:[%s192 + $0x30] sm:$0xf] %v2839
      %2872 = vst [vmem:[%s192 + $0x34] sm:$0xf] %v2840
      %2873 = vst [vmem:[%s192 + $0x38] sm:$0xf] %v2841
      %2874 = vst [vmem:[%s192 + $0x3c] sm:$0xf] %v2842
      %s2875 = smul.u32 16, %s19
      %p2876 = scmp.lt.s32.totalorder %s18, 1
      %s2877 = scalar_select %p2876, %s18, 1
      %p2878 = scmp.lt.s32.totalorder %s2875, 31
      %s2879 = scalar_select %p2878, %s2875, 31
      %s2880 = smul.addr %s2877, 32
      %s2881 = sadd.s32 %s2879, %s2880
      %s2882 = smul.addr %s2881, 4
      %s2883 = scalar_lea.vmem %s3, %s2882
      // Predicated region
      $region33: #{_conv_forward_impl.1} parent=31 // pred_check
        %p2884 = pneg %p114
      $region34: #{_conv_forward_impl.1} parent=31 // pred_check_branch
        %2886 = sbr.rel (%p2884) target = $region36
      $region35: #{_conv_forward_impl.1} parent=31 // pred_region
        %s2887 = smul.u32 16, %s19
      $region36: #{_conv_forward_impl.1} parent=31 // pred_fallthru
        _
    $region32: #{_conv_forward_impl.1} parent=5 // pred_fallthru
      _
    %p2888 = scmp.le.s32.totalorder 2, %s9
    // Predicated region
    $region37: #{_conv_forward_impl.1} parent=5 // pred_check
      %p2889 = pneg %p2888
    $region38: #{_conv_forward_impl.1} parent=5 // pred_check_branch
      %2891 = sbr.rel (%p2889) target = $region40
    $region39: #{_conv_forward_impl.1} parent=5 // pred_region
      %s2892 = ssub.s32 %s9, 2
      // Predicated region
      $region41: #{_conv_forward_impl.1} parent=39 // pred_check
        %p2893 = pneg %p120
      $region42: #{_conv_forward_impl.1} parent=39 // pred_check_branch
        %2895 = sbr.rel (%p2893) target = $region44
      $region43: #{_conv_forward_impl.1} parent=39 // pred_region
        %s2896 = smul.u32 16, %s21
        %p2897 = scmp.lt.s32.totalorder %s20, 1
        %s2898 = scalar_select %p2897, %s20, 1
        %p2899 = scmp.lt.s32.totalorder %s2896, 31
        %s2900 = scalar_select %p2899, %s2896, 31
        %s2901 = smul.addr %s2898, 32
        %s2902 = sadd.s32 %s2900, %s2901
        %s2903 = smul.addr %s2902, 4
        %s2904 = scalar_lea.vmem %s3, %s2903
      $region44: #{_conv_forward_impl.1} parent=39 // pred_fallthru
        _
    $region40: #{_conv_forward_impl.1} parent=5 // pred_fallthru
      _
  $region6: #{_conv_forward_impl.1} parent=0 // loop_footer
    %s13 = sadd.s32 1, %s9
  $region7: #{_conv_forward_impl.1} parent=0 // loop_footer_branch
    %8 = sbr.rel target = $region3
  $region8: #{_conv_forward_impl.1} parent=0 // loop_exit
    _

</llo_original>
